<compile_context>
chip_gen: v7x
topology: tpu7x:2x2x1
jax: 0.10.0
libtpu: 0.0.40
codegen_flags: <defaults>
</compile_context>

<pallas_src>
import functools
import math

import jax
import jax.numpy as jnp
from jax import lax
from jax.experimental import pallas as pl
from jax.experimental.pallas import tpu as pltpu

_GCONST_ = -0.9189385332046727  # -0.5 * log(2*pi), same constant as anomalib get_logp
CLAMP_ALPHA = 1.9
CONDITION_VECTOR = 16           # small stand-in for the default 128 (must be % 4 == 0)
COUPLING_BLOCKS = 2             # small stand-in for the default 8
MAX_FIBER_BATCH = 4096          # VMEM-safe upper bound on fibers per grid step


# ----------------------------------------------------------------------------
# Pallas kernel: conditional normalizing-flow decoder head + per-fiber log-prob
# ----------------------------------------------------------------------------
def cflow_fiber_kernel(e_ref, c_ref, w1a_ref, w1b_all_ref, b1_ref,
                       w2_ref, b2_ref, wpa_ref, wpb_ref, tp_ref, out_ref,
                       *, n_features, n_blocks, hidden, clamp, const_term):
    """One fiber batch through K AllInOneBlock-style conditional coupling blocks.

    All fiber tensors are transposed: channels on sublanes, fibers on lanes.

    e_ref      : (C, FB)        encoder fibers, bf16
    c_ref      : (P, FB)        2-D positional condition (per-image, repeated), bf16
    w1a_ref    : (K, H, n1)     subnet first linear weight, x1 input part (transposed), bf16
    w1b_all_ref: (K*H, P)       subnet first linear weight, condition part, all blocks, bf16
    b1_ref     : (K, H, 1)      subnet first linear bias, f32
    w2_ref     : (K, 2*n2, H)   subnet second linear [log-scale; translation] stacked, bf16
    b2_ref     : (K, 2*n2, 1)   bias [log-scale; translation], f32
    wpa_ref    : (K, C, n1)     host-folded (global affine + permutation), x1 columns, bf16
    wpb_ref    : (K, C, n2)     host-folded (global affine + permutation), x2 columns, bf16
    tp_ref     : (K, C, 1)      host-folded offset term, f32
    out_ref    : (1, FB)        per-fiber log-prob / n_features (lane-dense), f32
    """
    n2 = n_features // 2
    n1 = n_features - n2

    e_bf = e_ref[...]                                    # (C, FB) bf16
    e_f32 = e_bf.astype(jnp.float32)
    x1 = e_f32[:n1, :]                                   # 8-aligned sublane slices
    x2 = e_f32[n1:, :]
    cond_bf = c_ref[...]                                 # (P, FB) bf16, loop-invariant

    # Hoisted condition projection for ALL coupling blocks: one matmul with
    # M = K*H full sublane tiles instead of K tiny K=P matmuls inside the loop.
    hc_all = jnp.dot(w1b_all_ref[...], cond_bf,
                     preferred_element_type=jnp.float32)  # (K*H, FB) f32

    fb = e_bf.shape[1]
    acc_s = jnp.zeros((n2, fb), jnp.float32)             # deferred log-det accumulator

    for k in range(n_blocks):
        # subnet_fc: Linear -> ReLU -> Linear, conditioned on concat(x1, c).
        hc = hc_all[k * hidden:(k + 1) * hidden, :]      # static, 8-aligned slice
        h = (jnp.dot(w1a_ref[k], x1.astype(jnp.bfloat16),
                     preferred_element_type=jnp.float32)
             + hc + b1_ref[k])
        h = jnp.maximum(h, 0.0)
        h_bf = h.astype(jnp.bfloat16)

        # Second linear: scale/translate halves stacked -> single matmul, then
        # an 8-aligned sublane split of the (2*n2, FB) result.
        a = jnp.dot(w2_ref[k], h_bf, preferred_element_type=jnp.float32) + b2_ref[k]
        a_s = a[:n2, :]
        a_t = a[n2:, :]

        # FrEIA AllInOneBlock._affine (GIN=False): a *= 0.1 (applied once),
        # soft-clamped log-scale, plain translation.  All elementwise math f32.
        s = clamp * jnp.tanh(0.1 * a_s)
        x2 = x2 * jnp.exp(s) + 0.1 * a_t
        acc_s = acc_s + s                                # reduce once, after the loop

        # Global affine + hard permutation, folded on host and column-split so
        # no in-kernel concatenate of [x1; x2] is needed:
        #   x <- Wp[:, :n1] @ x1 + Wp[:, n1:] @ x2 + tp
        y = (jnp.dot(wpa_ref[k], x1.astype(jnp.bfloat16),
                     preferred_element_type=jnp.float32)
             + jnp.dot(wpb_ref[k], x2.astype(jnp.bfloat16),
                       preferred_element_type=jnp.float32)
             + tp_ref[k])
        x1 = y[:n1, :]
        x2 = y[n1:, :]

    # get_logp: C*log(1/sqrt(2pi)) - 0.5*||z||^2 + log|det J|,  then / C.
    # The data-independent sum_k sum(log(scale_k)) term is folded into const_term.
    ssq = (jnp.sum(x1 * x1, axis=0, keepdims=True)
           + jnp.sum(x2 * x2, axis=0, keepdims=True))    # (1, FB), sublane reductions
    sj = jnp.sum(acc_s, axis=0, keepdims=True)           # (1, FB)
    logp = const_term - 0.5 * ssq + sj
    out_ref[...] = logp * (1.0 / n_features)             # multiply, not divide


def _pick_fiber_batch(hw, max_fb=MAX_FIBER_BATCH):
    """Largest divisor of the per-image fiber count (h*w) that fits the cap.

    With fb | hw the positional-condition index_map repeats exactly per image
    and the grid has batch_size * (hw // fb) steps (>= 2 for batch >= 2, so a
    v7x megacore always gets both TensorCores busy while v5e/v6e only pay a
    couple of grid-step overheads).
    """
    if hw <= max_fb:
        return hw
    for d in range(max_fb, 0, -1):
        if hw % d == 0:
            return d
    return hw  # unreachable


def _cost_estimate(n_features, cond_dim, hidden, n_blocks, n_fibers):
    n2 = n_features // 2
    n1 = n_features - n2
    flops_per_fiber = (2 * n_blocks * hidden * cond_dim            # hoisted cond projection
                       + n_blocks * (2 * hidden * n1               # first linear, x1 part
                                     + 2 * (2 * n2) * hidden       # second linear (stacked)
                                     + 2 * n_features * n_features))  # folded affine+perm
    transcendentals = 2 * n_blocks * n2 * n_fibers                  # tanh + exp
    bytes_accessed = (n_fibers * (n_features + cond_dim) * 2        # bf16 fiber + cond streams
                      + n_fibers * 4)                               # f32 output
    return pl.CostEstimate(flops=int(flops_per_fiber * n_fibers),
                           transcendentals=int(transcendentals),
                           bytes_accessed=int(bytes_accessed))


def cflow_decoder_logprob(e_t, c_t, dec_params, n_features):
    """Run all fiber batches of one pool layer through the Pallas flow kernel.

    e_t: (C, n_fibers) bf16 encoder fibers (fiber order = (b, h, w) row-major)
    c_t: (P, h*w)      bf16 positional condition for ONE image (batch-invariant)
    """
    _, n_fibers = e_t.shape
    cond_dim, hw = c_t.shape
    n_blocks = dec_params["w1a"].shape[0]
    hidden = dec_params["w1a"].shape[1]

    fb = _pick_fiber_batch(hw)
    assert hw % fb == 0 and n_fibers % fb == 0
    # TODO(synk): fb < 128 (tiny spatial maps) would fall back to masked vst.
    cond_blocks = hw // fb
    grid = (n_fibers // fb,)

    def full(a):
        return pl.BlockSpec(a.shape, lambda i, _nd=a.ndim: (0,) * _nd)

    const_term = n_features * _GCONST_ + dec_params["ldj_const"]

    out = pl.pallas_call(
        functools.partial(cflow_fiber_kernel,
                          n_features=n_features,
                          n_blocks=n_blocks,
                          hidden=hidden,
                          clamp=CLAMP_ALPHA,
                          const_term=const_term),
        out_shape=jax.ShapeDtypeStruct((1, n_fibers), jnp.float32),
        grid_spec=pltpu.PrefetchScalarGridSpec(
            num_scalar_prefetch=0,
            grid=grid,
            in_specs=[
                pl.BlockSpec((n_features, fb), lambda i: (0, i)),
                # condition repeats per image (fiber order is (b, h, w) row-major)
                pl.BlockSpec((cond_dim, fb), lambda i: (0, i % cond_blocks)),
                full(dec_params["w1a"]), full(dec_params["w1b_all"]),
                full(dec_params["b1"]),
                full(dec_params["w2"]), full(dec_params["b2"]),
                full(dec_params["wpa"]), full(dec_params["wpb"]),
                full(dec_params["tp"]),
            ],
            out_specs=pl.BlockSpec((1, fb), lambda i: (0, i)),
        ),
        compiler_params=pltpu.CompilerParams(
            dimension_semantics=("parallel",)),
        cost_estimate=_cost_estimate(n_features, cond_dim, hidden,
                                     n_blocks, n_fibers),
    )(e_t, c_t,
      dec_params["w1a"], dec_params["w1b_all"], dec_params["b1"],
      dec_params["w2"], dec_params["b2"],
      dec_params["wpa"], dec_params["wpb"], dec_params["tp"])
    return out[0]                                        # (n_fibers,)


# ----------------------------------------------------------------------------
# Plain-JAX glue: synthetic encoder, positional encoding, anomaly map generator
# ----------------------------------------------------------------------------
def conv_relu(x, w, b, stride):
    y = lax.conv_general_dilated(
        x, w, (stride, stride), "SAME",
        dimension_numbers=("NCHW", "OIHW", "NCHW"))
    return jnp.maximum(y + b[None, :, None, None], 0.0)


def synthetic_encoder(images, enc_params):
    """Frozen synthetic feature extractor (stands in for MobileOne)."""
    f1 = conv_relu(images, enc_params["w1"], enc_params["b1"], stride=2)  # (B,16,H/2,W/2)
    f2 = conv_relu(f1, enc_params["w2"], enc_params["b2"], stride=2)      # (B,32,H/4,W/4)
    return {"layer1": f1, "layer2": f2}


def positional_encoding_2d(condition_vector, height, width):
    """JAX port of anomalib positional_encoding_2d (exact same layout)."""
    assert condition_vector % 4 == 0
    d = condition_vector // 2
    div_term = jnp.exp(jnp.arange(0.0, d, 2.0) * (-math.log(1e4) / d))  # (d/2,)
    pos_w = jnp.arange(0.0, width)[:, None]    # (W, 1)
    pos_h = jnp.arange(0.0, height)[:, None]   # (H, 1)

    sin_w = jnp.sin(pos_w * div_term).T        # (d/2, W)
    cos_w = jnp.cos(pos_w * div_term).T
    sin_h = jnp.sin(pos_h * div_term).T        # (d/2, H)
    cos_h = jnp.cos(pos_h * div_term).T

    pe = jnp.zeros((condition_vector, height, width), jnp.float32)
    pe = pe.at[0:d:2].set(jnp.broadcast_to(sin_w[:, None, :], (d // 2, height, width)))
    pe = pe.at[1:d:2].set(jnp.broadcast_to(cos_w[:, None, :], (d // 2, height, width)))
    pe = pe.at[d::2].set(jnp.broadcast_to(sin_h[:, :, None], (d // 2, height, width)))
    pe = pe.at[d + 1::2].set(jnp.broadcast_to(cos_h[:, :, None], (d // 2, height, width)))
    return pe


def bilinear_resize_align_corners(x, out_size):
    """F.interpolate(mode='bilinear', align_corners=True) on (B, h, w)."""
    b, h, w = x.shape
    out_h, out_w = out_size

    def coords(n_in, n_out):
        if n_in == 1 or n_out == 1:
            return jnp.zeros((n_out,), jnp.float32)
        return jnp.linspace(0.0, n_in - 1.0, n_out)

    ys, xs = coords(h, out_h), coords(w, out_w)
    y0 = jnp.floor(ys).astype(jnp.int32)
    x0 = jnp.floor(xs).astype(jnp.int32)
    y1 = jnp.clip(y0 + 1, 0, h - 1)
    x1 = jnp.clip(x0 + 1, 0, w - 1)
    wy = (ys - y0.astype(jnp.float32))[None, :, None]
    wx = (xs - x0.astype(jnp.float32))[None, None, :]

    gather = lambda yi, xi: x[:, yi[:, None], xi[None, :]]
    top = gather(y0, x0) * (1.0 - wx) + gather(y0, x1) * wx
    bot = gather(y1, x0) * (1.0 - wx) + gather(y1, x1) * wx
    return top * (1.0 - wy) + bot * wy


def anomaly_map_generator(distribution, heights, widths, image_size):
    layer_maps = []
    for dist, h, w in zip(distribution, heights, widths):
        probs = jnp.exp(dist - jnp.max(dist))          # normalize likelihoods to (-inf, 0]
        layer_map = probs.reshape(-1, h, w)            # (B, h, w)
        layer_maps.append(bilinear_resize_align_corners(layer_map, image_size))
    score_map = sum(layer_maps) / len(layer_maps)
    return jnp.max(score_map) - score_map              # invert probs -> anomaly scores


# ----------------------------------------------------------------------------
# Parameter initialization (deterministic, synthetic)
# ----------------------------------------------------------------------------
def init_encoder_params(key, in_ch=3, c1=16, c2=32):
    k1, k2 = jax.random.split(key)
    return {
        "w1": 0.1 * jax.random.normal(k1, (c1, in_ch, 3, 3), jnp.float32),
        "b1": jnp.zeros((c1,), jnp.float32),
        "w2": 0.1 * jax.random.normal(k2, (c2, c1, 3, 3), jnp.float32),
        "b2": jnp.zeros((c2,), jnp.float32),
    }


def init_decoder_params(key, n_features, cond_dim, n_blocks):
    """Parameters pre-transposed / split / stacked / folded into kernel form."""
    n2 = n_features // 2
    n1 = n_features - n2
    hidden = 2 * (n1 + cond_dim)   # subnet_fc: Linear(din, 2*din) -> ReLU -> Linear(2*din, 2*n2)

    w1a, w1b, b1, w2, b2, wpa, wpb, tp = ([] for _ in range(8))
    ldj_const = 0.0
    # SOFTPLUS global-affine init so that the activated scale ~= 1.0 (FrEIA default)
    gs_init = 2.0 * math.log(math.exp(0.5 * 10.0 * 1.0) - 1.0)

    for _ in range(n_blocks):
        key, ka, kb, kc, kd, ke, kf, kg, kp, ks = jax.random.split(key, 10)
        # first linear (transposed, split into x1-part and condition-part)
        w1a.append(0.1 * jax.random.normal(ka, (hidden, n1), jnp.float32))
        w1b.append(0.1 * jax.random.normal(kb, (hidden, cond_dim), jnp.float32))
        b1.append(0.01 * jax.random.normal(kc, (hidden, 1), jnp.float32))
        # second linear (transposed); log-scale + translation halves STACKED
        w2s = 0.1 * jax.random.normal(kd, (n2, hidden), jnp.float32)
        w2t = 0.1 * jax.random.normal(ke, (n2, hidden), jnp.float32)
        b2s = 0.01 * jax.random.normal(kf, (n2, 1), jnp.float32)
        b2t = 0.01 * jax.random.normal(kg, (n2, 1), jnp.float32)
        w2.append(jnp.concatenate([w2s, w2t], axis=0))              # (2*n2, hidden)
        b2.append(jnp.concatenate([b2s, b2t], axis=0))              # (2*n2, 1)

        # hard permutation + global affine, folded:  column form Wp @ x + tp,
        # then column-split so the kernel avoids concatenating [x1; x2].
        perm = jax.random.permutation(kp, n_features)
        p_t = jnp.eye(n_features, dtype=jnp.float32)[perm].T        # F.linear(y, P) = y @ P^T
        gs = gs_init + 0.01 * jax.random.normal(ks, (n_features,), jnp.float32)
        scale = 0.1 * 2.0 * jnp.log1p(jnp.exp(0.5 * gs))            # 0.1 * softplus(beta=0.5)
        offset = jnp.zeros((n_features,), jnp.float32)
        w_fold = scale[:, None] * p_t                               # diag(scale) @ P^T
        wpt = w_fold.T                                              # column (transposed) form
        wpa.append(wpt[:, :n1])                                     # (C, n1)
        wpb.append(wpt[:, n1:])                                     # (C, n2)
        tp.append((offset[None, :] @ p_t).T)                        # (C, 1)
        ldj_const += float(jnp.sum(jnp.log(scale)))                 # constant log|det J| term

    stack_bf = lambda xs: jnp.stack(xs, 0).astype(jnp.bfloat16)     # MXU-native operands
    stack_f32 = lambda xs: jnp.stack(xs, 0)
    # Condition part of the first linear for ALL blocks, pre-concatenated so the
    # kernel can hoist the loop-invariant condition projection to one matmul.
    w1b_all = jnp.concatenate(w1b, axis=0).astype(jnp.bfloat16)     # (K*hidden, P)
    # TODO(synk): ldj_const is a closure constant; decoder params and the kernel
    #             closure must be rebuilt together (fine for this forward pass).
    return {"w1a": stack_bf(w1a), "w1b_all": w1b_all, "b1": stack_f32(b1),
            "w2": stack_bf(w2), "b2": stack_f32(b2),
            "wpa": stack_bf(wpa), "wpb": stack_bf(wpb), "tp": stack_f32(tp),
            "ldj_const": ldj_const}


# ----------------------------------------------------------------------------
# CflowModel.forward
# ----------------------------------------------------------------------------
def cflow_forward(images, enc_params, dec_params_per_layer, image_size):
    activation = synthetic_encoder(images, enc_params)
    pool_layers = ["layer1", "layer2"]

    distribution, heights, widths = [], [], []
    for layer_idx, layer in enumerate(pool_layers):
        act = activation[layer]                                  # (B, C, h, w), NCHW
        batch_size, dim_feature_vector, im_h, im_w = act.shape
        heights.append(im_h)
        widths.append(im_w)

        # transposed fiber layout: (C, B*h*w) with fiber = (b, h, w) row-major,
        # matching einops 'b c h w -> (b h w) c' fiber ordering.  bf16 stream
        # (halves the only per-step HBM input); in-kernel math stays f32.
        e_t = jnp.transpose(act, (1, 0, 2, 3)).reshape(
            dim_feature_vector, -1).astype(jnp.bfloat16)
        # positional condition for ONE image only; the kernel's index_map
        # repeats it per image (no B-fold HBM broadcast, no host-side concat).
        pos = positional_encoding_2d(CONDITION_VECTOR, im_h, im_w)           # (P, h, w)
        c_t = pos.reshape(CONDITION_VECTOR, -1).astype(jnp.bfloat16)         # (P, h*w)

        log_prob = cflow_decoder_logprob(
            e_t, c_t, dec_params_per_layer[layer_idx], dim_feature_vector)
        distribution.append(log_prob)                            # (B*h*w,)

    return anomaly_map_generator(distribution, heights, widths, image_size)


if __name__ == "__main__":
    key = jax.random.PRNGKey(0)
    k_img, k_enc, k_d1, k_d2 = jax.random.split(key, 4)

    B, C_IN, H, W = 2, 3, 64, 64
    images = jax.random.normal(k_img, (B, C_IN, H, W), jnp.float32)

    enc_params = init_encoder_params(k_enc, in_ch=C_IN, c1=16, c2=32)
    dec_params_per_layer = [
        init_decoder_params(k_d1, n_features=16, cond_dim=CONDITION_VECTOR,
                            n_blocks=COUPLING_BLOCKS),
        init_decoder_params(k_d2, n_features=32, cond_dim=CONDITION_VECTOR,
                            n_blocks=COUPLING_BLOCKS),
    ]

    out = cflow_forward(images, enc_params, dec_params_per_layer, (H, W))
    out = jax.block_until_ready(out)
    assert out.shape == (B, H, W)
    assert bool(jnp.all(jnp.isfinite(out)))
    print("KERNEL_OK")
</pallas_src>

<mosaic_0001>
module attributes {stable_mosaic.version = 11 : i64} {
  func.func @cflow_fiber_kernel(%arg0: i32, %arg1: memref<16x1024xbf16, #tpu.memory_space<vmem>>, %arg2: memref<16x1024xbf16, #tpu.memory_space<vmem>>, %arg3: memref<2x48x8xbf16, #tpu.memory_space<vmem>>, %arg4: memref<96x16xbf16, #tpu.memory_space<vmem>>, %arg5: memref<2x48x1xf32, #tpu.memory_space<vmem>>, %arg6: memref<2x16x48xbf16, #tpu.memory_space<vmem>>, %arg7: memref<2x16x1xf32, #tpu.memory_space<vmem>>, %arg8: memref<2x16x8xbf16, #tpu.memory_space<vmem>>, %arg9: memref<2x16x8xbf16, #tpu.memory_space<vmem>>, %arg10: memref<2x16x1xf32, #tpu.memory_space<vmem>>, %arg11: memref<1x1024xf32, #tpu.memory_space<vmem>>) attributes {dimension_semantics = [#tpu.dimension_semantics<parallel>], iteration_bounds = array<i64: 2>, scalar_prefetch = 0 : i64, scratch_operands = 0 : i64, tpu.core_type = #tpu.core_type<tc>, window_params = [{transform_indices = @transform_0, window_bounds = array<i64: 16, 1024>}, {transform_indices = @transform_1, window_bounds = array<i64: 16, 1024>}, {pipeline_mode = #tpu.pipeline_mode<synchronous>, transform_indices = @transform_2, window_bounds = array<i64: 2, 48, 8>}, {pipeline_mode = #tpu.pipeline_mode<synchronous>, transform_indices = @transform_3, window_bounds = array<i64: 96, 16>}, {pipeline_mode = #tpu.pipeline_mode<synchronous>, transform_indices = @transform_4, window_bounds = array<i64: 2, 48, 1>}, {pipeline_mode = #tpu.pipeline_mode<synchronous>, transform_indices = @transform_5, window_bounds = array<i64: 2, 16, 48>}, {pipeline_mode = #tpu.pipeline_mode<synchronous>, transform_indices = @transform_6, window_bounds = array<i64: 2, 16, 1>}, {pipeline_mode = #tpu.pipeline_mode<synchronous>, transform_indices = @transform_7, window_bounds = array<i64: 2, 16, 8>}, {pipeline_mode = #tpu.pipeline_mode<synchronous>, transform_indices = @transform_8, window_bounds = array<i64: 2, 16, 8>}, {pipeline_mode = #tpu.pipeline_mode<synchronous>, transform_indices = @transform_9, window_bounds = array<i64: 2, 16, 1>}, {transform_indices = @transform_10, window_bounds = array<i64: 1, 1024>}]} {
    %c0 = arith.constant 0 : index
    %c0_0 = arith.constant 0 : index
    %0 = vector.load %arg1[%c0, %c0_0] : memref<16x1024xbf16, #tpu.memory_space<vmem>>, vector<16x1024xbf16>
    %1 = arith.extf %0 : vector<16x1024xbf16> to vector<16x1024xf32>
    %2 = vector.extract_strided_slice %1 {offsets = [0, 0], sizes = [8, 1024], strides = [1, 1]} : vector<16x1024xf32> to vector<8x1024xf32>
    %3 = vector.extract_strided_slice %1 {offsets = [8, 0], sizes = [8, 1024], strides = [1, 1]} : vector<16x1024xf32> to vector<8x1024xf32>
    %c0_1 = arith.constant 0 : index
    %c0_2 = arith.constant 0 : index
    %4 = vector.load %arg2[%c0_1, %c0_2] : memref<16x1024xbf16, #tpu.memory_space<vmem>>, vector<16x1024xbf16>
    %c0_3 = arith.constant 0 : index
    %c0_4 = arith.constant 0 : index
    %5 = vector.load %arg4[%c0_3, %c0_4] : memref<96x16xbf16, #tpu.memory_space<vmem>>, vector<96x16xbf16>
    %cst = arith.constant dense<0.000000e+00> : vector<96x1024xf32>
    %6 = tpu.matmul %5, %4, %cst {dimension_numbers = #tpu.dot_dimension_numbers<[1], [0], [0], [1], [0, 0, 1, 1], [], []>} : vector<96x16xbf16>, vector<16x1024xbf16>, vector<96x1024xf32> -> vector<96x1024xf32>
    %cst_5 = arith.constant 0.000000e+00 : f32
    %7 = vector.broadcast %cst_5 : f32 to vector<8x1024xf32>
    %8 = vector.extract_strided_slice %6 {offsets = [0, 0], sizes = [48, 1024], strides = [1, 1]} : vector<96x1024xf32> to vector<48x1024xf32>
    %c0_6 = arith.constant 0 : index
    %c0_7 = arith.constant 0 : index
    %c0_8 = arith.constant 0 : index
    %9 = vector.load %arg3[%c0_6, %c0_7, %c0_8] : memref<2x48x8xbf16, #tpu.memory_space<vmem>>, vector<1x48x8xbf16>
    %10 = vector.shape_cast %9 : vector<1x48x8xbf16> to vector<48x8xbf16>
    %11 = arith.truncf %2 : vector<8x1024xf32> to vector<8x1024xbf16>
    %cst_9 = arith.constant dense<0.000000e+00> : vector<48x1024xf32>
    %12 = tpu.matmul %10, %11, %cst_9 {dimension_numbers = #tpu.dot_dimension_numbers<[1], [0], [0], [1], [0, 0, 1, 1], [], []>} : vector<48x8xbf16>, vector<8x1024xbf16>, vector<48x1024xf32> -> vector<48x1024xf32>
    %13 = arith.addf %12, %8 : vector<48x1024xf32>
    %c0_10 = arith.constant 0 : index
    %c0_11 = arith.constant 0 : index
    %c0_12 = arith.constant 0 : index
    %14 = vector.load %arg5[%c0_10, %c0_11, %c0_12] : memref<2x48x1xf32, #tpu.memory_space<vmem>>, vector<1x48x1xf32>
    %15 = vector.shape_cast %14 : vector<1x48x1xf32> to vector<48x1xf32>
    %16 = vector.broadcast %15 : vector<48x1xf32> to vector<48x1024xf32>
    %17 = arith.addf %13, %16 : vector<48x1024xf32>
    %cst_13 = arith.constant 0.000000e+00 : f32
    %18 = vector.broadcast %cst_13 : f32 to vector<48x1024xf32>
    %19 = arith.maximumf %17, %18 : vector<48x1024xf32>
    %20 = arith.truncf %19 : vector<48x1024xf32> to vector<48x1024xbf16>
    %c0_14 = arith.constant 0 : index
    %c0_15 = arith.constant 0 : index
    %c0_16 = arith.constant 0 : index
    %21 = vector.load %arg6[%c0_14, %c0_15, %c0_16] : memref<2x16x48xbf16, #tpu.memory_space<vmem>>, vector<1x16x48xbf16>
    %22 = vector.shape_cast %21 : vector<1x16x48xbf16> to vector<16x48xbf16>
    %cst_17 = arith.constant dense<0.000000e+00> : vector<16x1024xf32>
    %23 = tpu.matmul %22, %20, %cst_17 {dimension_numbers = #tpu.dot_dimension_numbers<[1], [0], [0], [1], [0, 0, 1, 1], [], []>} : vector<16x48xbf16>, vector<48x1024xbf16>, vector<16x1024xf32> -> vector<16x1024xf32>
    %c0_18 = arith.constant 0 : index
    %c0_19 = arith.constant 0 : index
    %c0_20 = arith.constant 0 : index
    %24 = vector.load %arg7[%c0_18, %c0_19, %c0_20] : memref<2x16x1xf32, #tpu.memory_space<vmem>>, vector<1x16x1xf32>
    %25 = vector.shape_cast %24 : vector<1x16x1xf32> to vector<16x1xf32>
    %26 = vector.broadcast %25 : vector<16x1xf32> to vector<16x1024xf32>
    %27 = arith.addf %23, %26 : vector<16x1024xf32>
    %28 = vector.extract_strided_slice %27 {offsets = [0, 0], sizes = [8, 1024], strides = [1, 1]} : vector<16x1024xf32> to vector<8x1024xf32>
    %29 = vector.extract_strided_slice %27 {offsets = [8, 0], sizes = [8, 1024], strides = [1, 1]} : vector<16x1024xf32> to vector<8x1024xf32>
    %cst_21 = arith.constant 1.000000e-01 : f32
    %30 = vector.broadcast %cst_21 : f32 to vector<8x1024xf32>
    %31 = arith.mulf %30, %28 : vector<8x1024xf32>
    %32 = math.tanh %31 : vector<8x1024xf32>
    %cst_22 = arith.constant 1.900000e+00 : f32
    %33 = vector.broadcast %cst_22 : f32 to vector<8x1024xf32>
    %34 = arith.mulf %33, %32 : vector<8x1024xf32>
    %35 = math.exp %34 : vector<8x1024xf32>
    %36 = arith.mulf %3, %35 : vector<8x1024xf32>
    %cst_23 = arith.constant 1.000000e-01 : f32
    %37 = vector.broadcast %cst_23 : f32 to vector<8x1024xf32>
    %38 = arith.mulf %37, %29 : vector<8x1024xf32>
    %39 = arith.addf %36, %38 : vector<8x1024xf32>
    %40 = arith.addf %7, %34 : vector<8x1024xf32>
    %c0_24 = arith.constant 0 : index
    %c0_25 = arith.constant 0 : index
    %c0_26 = arith.constant 0 : index
    %41 = vector.load %arg8[%c0_24, %c0_25, %c0_26] : memref<2x16x8xbf16, #tpu.memory_space<vmem>>, vector<1x16x8xbf16>
    %42 = vector.shape_cast %41 : vector<1x16x8xbf16> to vector<16x8xbf16>
    %43 = arith.truncf %2 : vector<8x1024xf32> to vector<8x1024xbf16>
    %cst_27 = arith.constant dense<0.000000e+00> : vector<16x1024xf32>
    %44 = tpu.matmul %42, %43, %cst_27 {dimension_numbers = #tpu.dot_dimension_numbers<[1], [0], [0], [1], [0, 0, 1, 1], [], []>} : vector<16x8xbf16>, vector<8x1024xbf16>, vector<16x1024xf32> -> vector<16x1024xf32>
    %c0_28 = arith.constant 0 : index
    %c0_29 = arith.constant 0 : index
    %c0_30 = arith.constant 0 : index
    %45 = vector.load %arg9[%c0_28, %c0_29, %c0_30] : memref<2x16x8xbf16, #tpu.memory_space<vmem>>, vector<1x16x8xbf16>
    %46 = vector.shape_cast %45 : vector<1x16x8xbf16> to vector<16x8xbf16>
    %47 = arith.truncf %39 : vector<8x1024xf32> to vector<8x1024xbf16>
    %cst_31 = arith.constant dense<0.000000e+00> : vector<16x1024xf32>
    %48 = tpu.matmul %46, %47, %cst_31 {dimension_numbers = #tpu.dot_dimension_numbers<[1], [0], [0], [1], [0, 0, 1, 1], [], []>} : vector<16x8xbf16>, vector<8x1024xbf16>, vector<16x1024xf32> -> vector<16x1024xf32>
    %49 = arith.addf %44, %48 : vector<16x1024xf32>
    %c0_32 = arith.constant 0 : index
    %c0_33 = arith.constant 0 : index
    %c0_34 = arith.constant 0 : index
    %50 = vector.load %arg10[%c0_32, %c0_33, %c0_34] : memref<2x16x1xf32, #tpu.memory_space<vmem>>, vector<1x16x1xf32>
    %51 = vector.shape_cast %50 : vector<1x16x1xf32> to vector<16x1xf32>
    %52 = vector.broadcast %51 : vector<16x1xf32> to vector<16x1024xf32>
    %53 = arith.addf %49, %52 : vector<16x1024xf32>
    %54 = vector.extract_strided_slice %53 {offsets = [0, 0], sizes = [8, 1024], strides = [1, 1]} : vector<16x1024xf32> to vector<8x1024xf32>
    %55 = vector.extract_strided_slice %53 {offsets = [8, 0], sizes = [8, 1024], strides = [1, 1]} : vector<16x1024xf32> to vector<8x1024xf32>
    %56 = vector.extract_strided_slice %6 {offsets = [48, 0], sizes = [48, 1024], strides = [1, 1]} : vector<96x1024xf32> to vector<48x1024xf32>
    %c1 = arith.constant 1 : index
    %c0_35 = arith.constant 0 : index
    %c0_36 = arith.constant 0 : index
    %57 = vector.load %arg3[%c1, %c0_35, %c0_36] : memref<2x48x8xbf16, #tpu.memory_space<vmem>>, vector<1x48x8xbf16>
    %58 = vector.shape_cast %57 : vector<1x48x8xbf16> to vector<48x8xbf16>
    %59 = arith.truncf %54 : vector<8x1024xf32> to vector<8x1024xbf16>
    %cst_37 = arith.constant dense<0.000000e+00> : vector<48x1024xf32>
    %60 = tpu.matmul %58, %59, %cst_37 {dimension_numbers = #tpu.dot_dimension_numbers<[1], [0], [0], [1], [0, 0, 1, 1], [], []>} : vector<48x8xbf16>, vector<8x1024xbf16>, vector<48x1024xf32> -> vector<48x1024xf32>
    %61 = arith.addf %60, %56 : vector<48x1024xf32>
    %c1_38 = arith.constant 1 : index
    %c0_39 = arith.constant 0 : index
    %c0_40 = arith.constant 0 : index
    %62 = vector.load %arg5[%c1_38, %c0_39, %c0_40] : memref<2x48x1xf32, #tpu.memory_space<vmem>>, vector<1x48x1xf32>
    %63 = vector.shape_cast %62 : vector<1x48x1xf32> to vector<48x1xf32>
    %64 = vector.broadcast %63 : vector<48x1xf32> to vector<48x1024xf32>
    %65 = arith.addf %61, %64 : vector<48x1024xf32>
    %cst_41 = arith.constant 0.000000e+00 : f32
    %66 = vector.broadcast %cst_41 : f32 to vector<48x1024xf32>
    %67 = arith.maximumf %65, %66 : vector<48x1024xf32>
    %68 = arith.truncf %67 : vector<48x1024xf32> to vector<48x1024xbf16>
    %c1_42 = arith.constant 1 : index
    %c0_43 = arith.constant 0 : index
    %c0_44 = arith.constant 0 : index
    %69 = vector.load %arg6[%c1_42, %c0_43, %c0_44] : memref<2x16x48xbf16, #tpu.memory_space<vmem>>, vector<1x16x48xbf16>
    %70 = vector.shape_cast %69 : vector<1x16x48xbf16> to vector<16x48xbf16>
    %cst_45 = arith.constant dense<0.000000e+00> : vector<16x1024xf32>
    %71 = tpu.matmul %70, %68, %cst_45 {dimension_numbers = #tpu.dot_dimension_numbers<[1], [0], [0], [1], [0, 0, 1, 1], [], []>} : vector<16x48xbf16>, vector<48x1024xbf16>, vector<16x1024xf32> -> vector<16x1024xf32>
    %c1_46 = arith.constant 1 : index
    %c0_47 = arith.constant 0 : index
    %c0_48 = arith.constant 0 : index
    %72 = vector.load %arg7[%c1_46, %c0_47, %c0_48] : memref<2x16x1xf32, #tpu.memory_space<vmem>>, vector<1x16x1xf32>
    %73 = vector.shape_cast %72 : vector<1x16x1xf32> to vector<16x1xf32>
    %74 = vector.broadcast %73 : vector<16x1xf32> to vector<16x1024xf32>
    %75 = arith.addf %71, %74 : vector<16x1024xf32>
    %76 = vector.extract_strided_slice %75 {offsets = [0, 0], sizes = [8, 1024], strides = [1, 1]} : vector<16x1024xf32> to vector<8x1024xf32>
    %77 = vector.extract_strided_slice %75 {offsets = [8, 0], sizes = [8, 1024], strides = [1, 1]} : vector<16x1024xf32> to vector<8x1024xf32>
    %cst_49 = arith.constant 1.000000e-01 : f32
    %78 = vector.broadcast %cst_49 : f32 to vector<8x1024xf32>
    %79 = arith.mulf %78, %76 : vector<8x1024xf32>
    %80 = math.tanh %79 : vector<8x1024xf32>
    %cst_50 = arith.constant 1.900000e+00 : f32
    %81 = vector.broadcast %cst_50 : f32 to vector<8x1024xf32>
    %82 = arith.mulf %81, %80 : vector<8x1024xf32>
    %83 = math.exp %82 : vector<8x1024xf32>
    %84 = arith.mulf %55, %83 : vector<8x1024xf32>
    %cst_51 = arith.constant 1.000000e-01 : f32
    %85 = vector.broadcast %cst_51 : f32 to vector<8x1024xf32>
    %86 = arith.mulf %85, %77 : vector<8x1024xf32>
    %87 = arith.addf %84, %86 : vector<8x1024xf32>
    %88 = arith.addf %40, %82 : vector<8x1024xf32>
    %c1_52 = arith.constant 1 : index
    %c0_53 = arith.constant 0 : index
    %c0_54 = arith.constant 0 : index
    %89 = vector.load %arg8[%c1_52, %c0_53, %c0_54] : memref<2x16x8xbf16, #tpu.memory_space<vmem>>, vector<1x16x8xbf16>
    %90 = vector.shape_cast %89 : vector<1x16x8xbf16> to vector<16x8xbf16>
    %91 = arith.truncf %54 : vector<8x1024xf32> to vector<8x1024xbf16>
    %cst_55 = arith.constant dense<0.000000e+00> : vector<16x1024xf32>
    %92 = tpu.matmul %90, %91, %cst_55 {dimension_numbers = #tpu.dot_dimension_numbers<[1], [0], [0], [1], [0, 0, 1, 1], [], []>} : vector<16x8xbf16>, vector<8x1024xbf16>, vector<16x1024xf32> -> vector<16x1024xf32>
    %c1_56 = arith.constant 1 : index
    %c0_57 = arith.constant 0 : index
    %c0_58 = arith.constant 0 : index
    %93 = vector.load %arg9[%c1_56, %c0_57, %c0_58] : memref<2x16x8xbf16, #tpu.memory_space<vmem>>, vector<1x16x8xbf16>
    %94 = vector.shape_cast %93 : vector<1x16x8xbf16> to vector<16x8xbf16>
    %95 = arith.truncf %87 : vector<8x1024xf32> to vector<8x1024xbf16>
    %cst_59 = arith.constant dense<0.000000e+00> : vector<16x1024xf32>
    %96 = tpu.matmul %94, %95, %cst_59 {dimension_numbers = #tpu.dot_dimension_numbers<[1], [0], [0], [1], [0, 0, 1, 1], [], []>} : vector<16x8xbf16>, vector<8x1024xbf16>, vector<16x1024xf32> -> vector<16x1024xf32>
    %97 = arith.addf %92, %96 : vector<16x1024xf32>
    %c1_60 = arith.constant 1 : index
    %c0_61 = arith.constant 0 : index
    %c0_62 = arith.constant 0 : index
    %98 = vector.load %arg10[%c1_60, %c0_61, %c0_62] : memref<2x16x1xf32, #tpu.memory_space<vmem>>, vector<1x16x1xf32>
    %99 = vector.shape_cast %98 : vector<1x16x1xf32> to vector<16x1xf32>
    %100 = vector.broadcast %99 : vector<16x1xf32> to vector<16x1024xf32>
    %101 = arith.addf %97, %100 : vector<16x1024xf32>
    %102 = vector.extract_strided_slice %101 {offsets = [0, 0], sizes = [8, 1024], strides = [1, 1]} : vector<16x1024xf32> to vector<8x1024xf32>
    %103 = vector.extract_strided_slice %101 {offsets = [8, 0], sizes = [8, 1024], strides = [1, 1]} : vector<16x1024xf32> to vector<8x1024xf32>
    %104 = arith.mulf %102, %102 : vector<8x1024xf32>
    %cst_63 = arith.constant dense<0.000000e+00> : vector<1024xf32>
    %105 = vector.multi_reduction <add>, %104, %cst_63 [0] : vector<8x1024xf32> to vector<1024xf32>
    %106 = vector.shape_cast %105 : vector<1024xf32> to vector<1x1024xf32>
    %107 = arith.mulf %103, %103 : vector<8x1024xf32>
    %cst_64 = arith.constant dense<0.000000e+00> : vector<1024xf32>
    %108 = vector.multi_reduction <add>, %107, %cst_64 [0] : vector<8x1024xf32> to vector<1024xf32>
    %109 = vector.shape_cast %108 : vector<1024xf32> to vector<1x1024xf32>
    %110 = arith.addf %106, %109 : vector<1x1024xf32>
    %cst_65 = arith.constant dense<0.000000e+00> : vector<1024xf32>
    %111 = vector.multi_reduction <add>, %88, %cst_65 [0] : vector<8x1024xf32> to vector<1024xf32>
    %112 = vector.shape_cast %111 : vector<1024xf32> to vector<1x1024xf32>
    %cst_66 = arith.constant 5.000000e-01 : f32
    %113 = vector.broadcast %cst_66 : f32 to vector<1x1024xf32>
    %114 = arith.mulf %113, %110 : vector<1x1024xf32>
    %cst_67 = arith.constant -14.6954565 : f32
    %115 = vector.broadcast %cst_67 : f32 to vector<1x1024xf32>
    %116 = arith.subf %115, %114 : vector<1x1024xf32>
    %117 = arith.addf %116, %112 : vector<1x1024xf32>
    %cst_68 = arith.constant 6.250000e-02 : f32
    %118 = vector.broadcast %cst_68 : f32 to vector<1x1024xf32>
    %119 = arith.mulf %117, %118 : vector<1x1024xf32>
    %c0_69 = arith.constant 0 : index
    %c0_70 = arith.constant 0 : index
    %120 = vector.load %arg11[%c0_69, %c0_70] : memref<1x1024xf32, #tpu.memory_space<vmem>>, vector<1x1024xf32>
    tpu.vector_store %arg11[%c0_69, %c0_70], %119 {strides = array<i32>} : memref<1x1024xf32, #tpu.memory_space<vmem>>, vector<1x1024xf32>,
    return
  }
  func.func @transform_0(%arg0: i32) -> (i32, i32) {
    %c0_i32 = arith.constant 0 : i32
    %c0_i32_0 = arith.constant 0 : i32
    return %c0_i32, %arg0 : i32, i32
  }
  func.func @transform_1(%arg0: i32) -> (i32, i32) {
    %c1_i32 = arith.constant 1 : i32
    %c0_i32 = arith.constant 0 : i32
    %0 = arith.cmpi eq, %c1_i32, %c0_i32 : i32
    %c1_i32_0 = arith.constant 1 : i32
    %1 = arith.select %0, %c1_i32_0, %c1_i32 : i32
    %2 = arith.remsi %arg0, %1 : i32
    %c0_i32_1 = arith.constant 0 : i32
    %3 = arith.cmpi ne, %2, %c0_i32_1 : i32
    %c0_i32_2 = arith.constant 0 : i32
    %4 = arith.cmpi slt, %2, %c0_i32_2 : i32
    %c0_i32_3 = arith.constant 0 : i32
    %5 = arith.cmpi slt, %1, %c0_i32_3 : i32
    %6 = arith.xori %4, %5 : i1
    %7 = arith.andi %6, %3 : i1
    %8 = arith.addi %2, %1 : i32
    %9 = arith.select %7, %8, %2 : i32
    %c0_i32_4 = arith.constant 0 : i32
    %c0_i32_5 = arith.constant 0 : i32
    return %c0_i32_4, %9 : i32, i32
  }
  func.func @transform_2(%arg0: i32) -> (i32, i32, i32) {
    %c0_i32 = arith.constant 0 : i32
    %c0_i32_0 = arith.constant 0 : i32
    %c0_i32_1 = arith.constant 0 : i32
    %c0_i32_2 = arith.constant 0 : i32
    return %c0_i32, %c0_i32_0, %c0_i32_1 : i32, i32, i32
  }
  func.func @transform_3(%arg0: i32) -> (i32, i32) {
    %c0_i32 = arith.constant 0 : i32
    %c0_i32_0 = arith.constant 0 : i32
    %c0_i32_1 = arith.constant 0 : i32
    return %c0_i32, %c0_i32_0 : i32, i32
  }
  func.func @transform_4(%arg0: i32) -> (i32, i32, i32) {
    %c0_i32 = arith.constant 0 : i32
    %c0_i32_0 = arith.constant 0 : i32
    %c0_i32_1 = arith.constant 0 : i32
    %c0_i32_2 = arith.constant 0 : i32
    return %c0_i32, %c0_i32_0, %c0_i32_1 : i32, i32, i32
  }
  func.func @transform_5(%arg0: i32) -> (i32, i32, i32) {
    %c0_i32 = arith.constant 0 : i32
    %c0_i32_0 = arith.constant 0 : i32
    %c0_i32_1 = arith.constant 0 : i32
    %c0_i32_2 = arith.constant 0 : i32
    return %c0_i32, %c0_i32_0, %c0_i32_1 : i32, i32, i32
  }
  func.func @transform_6(%arg0: i32) -> (i32, i32, i32) {
    %c0_i32 = arith.constant 0 : i32
    %c0_i32_0 = arith.constant 0 : i32
    %c0_i32_1 = arith.constant 0 : i32
    %c0_i32_2 = arith.constant 0 : i32
    return %c0_i32, %c0_i32_0, %c0_i32_1 : i32, i32, i32
  }
  func.func @transform_7(%arg0: i32) -> (i32, i32, i32) {
    %c0_i32 = arith.constant 0 : i32
    %c0_i32_0 = arith.constant 0 : i32
    %c0_i32_1 = arith.constant 0 : i32
    %c0_i32_2 = arith.constant 0 : i32
    return %c0_i32, %c0_i32_0, %c0_i32_1 : i32, i32, i32
  }
  func.func @transform_8(%arg0: i32) -> (i32, i32, i32) {
    %c0_i32 = arith.constant 0 : i32
    %c0_i32_0 = arith.constant 0 : i32
    %c0_i32_1 = arith.constant 0 : i32
    %c0_i32_2 = arith.constant 0 : i32
    return %c0_i32, %c0_i32_0, %c0_i32_1 : i32, i32, i32
  }
  func.func @transform_9(%arg0: i32) -> (i32, i32, i32) {
    %c0_i32 = arith.constant 0 : i32
    %c0_i32_0 = arith.constant 0 : i32
    %c0_i32_1 = arith.constant 0 : i32
    %c0_i32_2 = arith.constant 0 : i32
    return %c0_i32, %c0_i32_0, %c0_i32_1 : i32, i32, i32
  }
  func.func @transform_10(%arg0: i32) -> (i32, i32) {
    %c0_i32 = arith.constant 0 : i32
    %c0_i32_0 = arith.constant 0 : i32
    return %c0_i32, %arg0 : i32, i32
  }
}

</mosaic_0001>

<llo_original>
// kernel: tpu_custom_call.1
$region0: #{tpu_custom_call.1}
  #allocation0 [shape = 'u32[]', space=smem, size = 0x4, offset = 0x4, fixed_abs, tag = 'smem constant byte address 0x4 - core index']
  #allocation1 [shape = 'u32[144,128]{1,0:T(1,128)}', space=vmem, size = 0x12000, scoped, tag = 'internal scratch']
  %s0 = inlined_call_operand.vmem [shape: bf16[16,2048], index: 0, kind: input, shape index: {}]
  %s1 = inlined_call_operand.vmem [shape: bf16[16,1024], index: 1, kind: input, shape index: {}]
  %s2 = inlined_call_operand.vmem [shape: bf16[2,48,8], index: 2, kind: input, shape index: {}]
  %s3 = inlined_call_operand.vmem [shape: bf16[96,16], index: 3, kind: input, shape index: {}]
  %s4 = inlined_call_operand.vmem [shape: f32[2,48,1], index: 4, kind: input, shape index: {}]
  %s5 = inlined_call_operand.vmem [shape: bf16[2,16,48], index: 5, kind: input, shape index: {}]
  %s6 = inlined_call_operand.vmem [shape: f32[2,16,1], index: 6, kind: input, shape index: {}]
  %s7 = inlined_call_operand.vmem [shape: bf16[2,16,8], index: 7, kind: input, shape index: {}]
  %s8 = inlined_call_operand.vmem [shape: bf16[2,16,8], index: 8, kind: input, shape index: {}]
  %s9 = inlined_call_operand.vmem [shape: f32[2,16,1], index: 9, kind: input, shape index: {}]
  %s10 = inlined_call_operand.hbm [shape: f32[1,2048], index: 10, kind: output, shape index: {}]
  %s11 = sld [smem:[#allocation0]]
  $region96: #{tpu_custom_call.1} parent=0
    _
  %s13 = ssub.s32 1, %s11
  %s14 = scalar_select 0, %s13, %s11
  $region1: #{tpu_custom_call.1} parent=0
    #allocation2 [shape = 'u8[65536]{0}', space=vmem, size = 0x10000, scoped, tag = 'input window, operand 0']
    #allocation3 [shape = 'u8[8192]{0}', space=vmem, size = 0x2000, scoped, tag = 'output window, operand 0']
    #allocation4 [shape = 's32[2]{0}', space=sflag, size = 0x8, scoped, tag = 'scoped memory for tpu_custom_call.1']
    %15 = vsyncpa [#allocation4], 0
    %s16 = scalar_lea.sflag [#allocation4], 1
    %17 = vsyncpa %s16, 0
    loop: start=0, step=1, limit=4
    $region2: #{tpu_custom_call.1} parent=1 // loop_pre_header
      _
    $region3: #{tpu_custom_call.1} parent=1 // loop_header
      %s19 = sphi 0, %s23
      %p20 = scmp.ge.s32.totalorder %s19, 4
      %s29 = sphi 0, %s31
      %s32 = sphi 0, %s29
      %s33 = sphi 0, %s32
      %s49 = sphi 0, %s33
      %s53 = sphi 0, %s53
      %s55 = sphi 0, %s53
      %s56 = sphi 0, %s55
      %s70 = sphi 0, %s56
      %s74 = sphi 0, %s74
      %s76 = sphi 0, %s74
      %s77 = sphi 0, %s76
      %s91 = sphi 0, %s77
      %s95 = sphi 0, %s95
      %s97 = sphi 0, %s95
      %s98 = sphi 0, %s97
      %s112 = sphi 0, %s98
      %s116 = sphi 0, %s116
      %s118 = sphi 0, %s116
      %s119 = sphi 0, %s118
      %s133 = sphi 0, %s119
      %s137 = sphi 0, %s137
      %s139 = sphi 0, %s137
      %s140 = sphi 0, %s139
      %s154 = sphi 0, %s140
      %s158 = sphi 0, %s158
      %s160 = sphi 0, %s158
      %s161 = sphi 0, %s160
      %s175 = sphi 0, %s161
      %s179 = sphi 0, %s179
      %s181 = sphi 0, %s179
      %s182 = sphi 0, %s181
      %s196 = sphi 0, %s182
      %s200 = sphi 0, %s200
      %s202 = sphi 0, %s200
      %s203 = sphi 0, %s202
      %s217 = sphi 0, %s203
      %s221 = sphi 0, %s221
      %s223 = sphi 0, %s221
      %s224 = sphi 0, %s223
      %s238 = sphi 0, %s224
      %s244 = sphi 0, %s246
      %s247 = sphi 0, %s244
      %s248 = sphi 0, %s247
      %s264 = sphi 0, %s248
    $region4: #{tpu_custom_call.1} parent=1 // loop_header_branch
      %22 = sbr.rel (%p20) target = $region8
    $region5: #{tpu_custom_call.1} parent=1 // loop_body
      %s24 = ssub.s32 %s19, 1
      %s25 = ssub.s32 %s19, 2
      %s26 = sadd.s32 %s19, 1
      %s27 = ssub.s32 %s19, %s26
      %p28 = scmp.eq.s32.totalorder %s27, 0
      %s30 = sadd.s32 %s29, 1
      %s31 = scalar_select %p28, %s29, %s30
      %p34 = pneg %p28
      %p35 = scmp.eq.s32.totalorder %s19, 1
      %p36 = por %p34, %p35
      %p37 = scmp.ne.s32.totalorder %s29, %s32
      %p38 = scmp.eq.s32.totalorder %s19, 0
      %p39 = por %p37, %p38
      %p40 = scmp.ne.s32.totalorder %s29, %s32
      %p41 = scmp.eq.s32.totalorder %s24, 1
      %p42 = por %p40, %p41
      %p43 = scmp.ne.s32.totalorder %s32, %s33
      %p44 = scmp.eq.s32.totalorder %s24, 0
      %p45 = por %p43, %p44
      %p46 = scmp.ne.s32.totalorder %s32, %s33
      %p47 = scmp.eq.s32.totalorder %s25, 1
      %p48 = por %p46, %p47
      %p50 = scmp.ne.s32.totalorder %s33, %s49
      %p51 = scmp.eq.s32.totalorder %s25, 0
      %p52 = por %p50, %p51
      %s54 = sadd.s32 %s53, 1
      %p57 = scmp.eq.s32.totalorder %s19, 1
      %p58 = scmp.ne.s32.totalorder %s53, %s55
      %p59 = scmp.eq.s32.totalorder %s19, 0
      %p60 = por %p58, %p59
      %p61 = scmp.ne.s32.totalorder %s53, %s55
      %p62 = scmp.eq.s32.totalorder %s24, 1
      %p63 = por %p61, %p62
      %p64 = scmp.ne.s32.totalorder %s55, %s56
      %p65 = scmp.eq.s32.totalorder %s24, 0
      %p66 = por %p64, %p65
      %p67 = scmp.ne.s32.totalorder %s55, %s56
      %p68 = scmp.eq.s32.totalorder %s25, 1
      %p69 = por %p67, %p68
      %p71 = scmp.ne.s32.totalorder %s56, %s70
      %p72 = scmp.eq.s32.totalorder %s25, 0
      %p73 = por %p71, %p72
      %s75 = sadd.s32 %s74, 1
      %p78 = scmp.eq.s32.totalorder %s19, 1
      %p79 = scmp.ne.s32.totalorder %s74, %s76
      %p80 = scmp.eq.s32.totalorder %s19, 0
      %p81 = por %p79, %p80
      %p82 = scmp.ne.s32.totalorder %s74, %s76
      %p83 = scmp.eq.s32.totalorder %s24, 1
      %p84 = por %p82, %p83
      %p85 = scmp.ne.s32.totalorder %s76, %s77
      %p86 = scmp.eq.s32.totalorder %s24, 0
      %p87 = por %p85, %p86
      %p88 = scmp.ne.s32.totalorder %s76, %s77
      %p89 = scmp.eq.s32.totalorder %s25, 1
      %p90 = por %p88, %p89
      %p92 = scmp.ne.s32.totalorder %s77, %s91
      %p93 = scmp.eq.s32.totalorder %s25, 0
      %p94 = por %p92, %p93
      %s96 = sadd.s32 %s95, 1
      %p99 = scmp.eq.s32.totalorder %s19, 1
      %p100 = scmp.ne.s32.totalorder %s95, %s97
      %p101 = scmp.eq.s32.totalorder %s19, 0
      %p102 = por %p100, %p101
      %p103 = scmp.ne.s32.totalorder %s95, %s97
      %p104 = scmp.eq.s32.totalorder %s24, 1
      %p105 = por %p103, %p104
      %p106 = scmp.ne.s32.totalorder %s97, %s98
      %p107 = scmp.eq.s32.totalorder %s24, 0
      %p108 = por %p106, %p107
      %p109 = scmp.ne.s32.totalorder %s97, %s98
      %p110 = scmp.eq.s32.totalorder %s25, 1
      %p111 = por %p109, %p110
      %p113 = scmp.ne.s32.totalorder %s98, %s112
      %p114 = scmp.eq.s32.totalorder %s25, 0
      %p115 = por %p113, %p114
      %s117 = sadd.s32 %s116, 1
      %p120 = scmp.eq.s32.totalorder %s19, 1
      %p121 = scmp.ne.s32.totalorder %s116, %s118
      %p122 = scmp.eq.s32.totalorder %s19, 0
      %p123 = por %p121, %p122
      %p124 = scmp.ne.s32.totalorder %s116, %s118
      %p125 = scmp.eq.s32.totalorder %s24, 1
      %p126 = por %p124, %p125
      %p127 = scmp.ne.s32.totalorder %s118, %s119
      %p128 = scmp.eq.s32.totalorder %s24, 0
      %p129 = por %p127, %p128
      %p130 = scmp.ne.s32.totalorder %s118, %s119
      %p131 = scmp.eq.s32.totalorder %s25, 1
      %p132 = por %p130, %p131
      %p134 = scmp.ne.s32.totalorder %s119, %s133
      %p135 = scmp.eq.s32.totalorder %s25, 0
      %p136 = por %p134, %p135
      %s138 = sadd.s32 %s137, 1
      %p141 = scmp.eq.s32.totalorder %s19, 1
      %p142 = scmp.ne.s32.totalorder %s137, %s139
      %p143 = scmp.eq.s32.totalorder %s19, 0
      %p144 = por %p142, %p143
      %p145 = scmp.ne.s32.totalorder %s137, %s139
      %p146 = scmp.eq.s32.totalorder %s24, 1
      %p147 = por %p145, %p146
      %p148 = scmp.ne.s32.totalorder %s139, %s140
      %p149 = scmp.eq.s32.totalorder %s24, 0
      %p150 = por %p148, %p149
      %p151 = scmp.ne.s32.totalorder %s139, %s140
      %p152 = scmp.eq.s32.totalorder %s25, 1
      %p153 = por %p151, %p152
      %p155 = scmp.ne.s32.totalorder %s140, %s154
      %p156 = scmp.eq.s32.totalorder %s25, 0
      %p157 = por %p155, %p156
      %s159 = sadd.s32 %s158, 1
      %p162 = scmp.eq.s32.totalorder %s19, 1
      %p163 = scmp.ne.s32.totalorder %s158, %s160
      %p164 = scmp.eq.s32.totalorder %s19, 0
      %p165 = por %p163, %p164
      %p166 = scmp.ne.s32.totalorder %s158, %s160
      %p167 = scmp.eq.s32.totalorder %s24, 1
      %p168 = por %p166, %p167
      %p169 = scmp.ne.s32.totalorder %s160, %s161
      %p170 = scmp.eq.s32.totalorder %s24, 0
      %p171 = por %p169, %p170
      %p172 = scmp.ne.s32.totalorder %s160, %s161
      %p173 = scmp.eq.s32.totalorder %s25, 1
      %p174 = por %p172, %p173
      %p176 = scmp.ne.s32.totalorder %s161, %s175
      %p177 = scmp.eq.s32.totalorder %s25, 0
      %p178 = por %p176, %p177
      %s180 = sadd.s32 %s179, 1
      %p183 = scmp.eq.s32.totalorder %s19, 1
      %p184 = scmp.ne.s32.totalorder %s179, %s181
      %p185 = scmp.eq.s32.totalorder %s19, 0
      %p186 = por %p184, %p185
      %p187 = scmp.ne.s32.totalorder %s179, %s181
      %p188 = scmp.eq.s32.totalorder %s24, 1
      %p189 = por %p187, %p188
      %p190 = scmp.ne.s32.totalorder %s181, %s182
      %p191 = scmp.eq.s32.totalorder %s24, 0
      %p192 = por %p190, %p191
      %p193 = scmp.ne.s32.totalorder %s181, %s182
      %p194 = scmp.eq.s32.totalorder %s25, 1
      %p195 = por %p193, %p194
      %p197 = scmp.ne.s32.totalorder %s182, %s196
      %p198 = scmp.eq.s32.totalorder %s25, 0
      %p199 = por %p197, %p198
      %s201 = sadd.s32 %s200, 1
      %p204 = scmp.eq.s32.totalorder %s19, 1
      %p205 = scmp.ne.s32.totalorder %s200, %s202
      %p206 = scmp.eq.s32.totalorder %s19, 0
      %p207 = por %p205, %p206
      %p208 = scmp.ne.s32.totalorder %s200, %s202
      %p209 = scmp.eq.s32.totalorder %s24, 1
      %p210 = por %p208, %p209
      %p211 = scmp.ne.s32.totalorder %s202, %s203
      %p212 = scmp.eq.s32.totalorder %s24, 0
      %p213 = por %p211, %p212
      %p214 = scmp.ne.s32.totalorder %s202, %s203
      %p215 = scmp.eq.s32.totalorder %s25, 1
      %p216 = por %p214, %p215
      %p218 = scmp.ne.s32.totalorder %s203, %s217
      %p219 = scmp.eq.s32.totalorder %s25, 0
      %p220 = por %p218, %p219
      %s222 = sadd.s32 %s221, 1
      %p225 = scmp.eq.s32.totalorder %s19, 1
      %p226 = scmp.ne.s32.totalorder %s221, %s223
      %p227 = scmp.eq.s32.totalorder %s19, 0
      %p228 = por %p226, %p227
      %p229 = scmp.ne.s32.totalorder %s221, %s223
      %p230 = scmp.eq.s32.totalorder %s24, 1
      %p231 = por %p229, %p230
      %p232 = scmp.ne.s32.totalorder %s223, %s224
      %p233 = scmp.eq.s32.totalorder %s24, 0
      %p234 = por %p232, %p233
      %p235 = scmp.ne.s32.totalorder %s223, %s224
      %p236 = scmp.eq.s32.totalorder %s25, 1
      %p237 = por %p235, %p236
      %p239 = scmp.ne.s32.totalorder %s224, %s238
      %p240 = scmp.eq.s32.totalorder %s25, 0
      %p241 = por %p239, %p240
      %s242 = ssub.s32 %s19, %s26
      %p243 = scmp.eq.s32.totalorder %s242, 0
      %s245 = sadd.s32 %s244, 1
      %s246 = scalar_select %p243, %s244, %s245
      %p249 = pneg %p243
      %p250 = scmp.eq.s32.totalorder %s19, 1
      %p251 = por %p249, %p250
      %p252 = scmp.ne.s32.totalorder %s244, %s247
      %p253 = scmp.eq.s32.totalorder %s19, 0
      %p254 = por %p252, %p253
      %p255 = scmp.ne.s32.totalorder %s244, %s247
      %p256 = scmp.eq.s32.totalorder %s24, 1
      %p257 = por %p255, %p256
      %p258 = scmp.ne.s32.totalorder %s247, %s248
      %p259 = scmp.eq.s32.totalorder %s24, 0
      %p260 = por %p258, %p259
      %p261 = scmp.ne.s32.totalorder %s247, %s248
      %p262 = scmp.eq.s32.totalorder %s25, 1
      %p263 = por %p261, %p262
      %p265 = scmp.ne.s32.totalorder %s248, %s264
      %p266 = scmp.eq.s32.totalorder %s25, 0
      %p267 = por %p265, %p266
      %p268 = scmp.le.s32.totalorder 1, %s19
      %p269 = scmp.lt.s32.totalorder %s19, 3
      %p270 = pnand %p268, %p269
      %p271 = pneg %p270
      // Predicated region
      $region9: #{tpu_custom_call.1} parent=5 // pred_check
        _
      $region10: #{tpu_custom_call.1} parent=5 // pred_check_branch
        %273 = sbr.rel (%p270) target = $region12
      $region11: #{tpu_custom_call.1} parent=5 // pred_region
        %s274 = ssub.s32 %s19, 1
        // Predicated region
        $region13: #{tpu_custom_call.1} parent=11 // pred_check
          %p275 = pneg %p66
        $region14: #{tpu_custom_call.1} parent=11 // pred_check_branch
          %277 = sbr.rel (%p275) target = $region16
        $region15: #{tpu_custom_call.1} parent=11 // pred_region
          _
        $region16: #{tpu_custom_call.1} parent=11 // pred_fallthru
          _
        // Predicated region
        $region17: #{tpu_custom_call.1} parent=11 // pred_check
          %p278 = pneg %p87
        $region18: #{tpu_custom_call.1} parent=11 // pred_check_branch
          %280 = sbr.rel (%p278) target = $region20
        $region19: #{tpu_custom_call.1} parent=11 // pred_region
          _
        $region20: #{tpu_custom_call.1} parent=11 // pred_fallthru
          _
        // Predicated region
        $region21: #{tpu_custom_call.1} parent=11 // pred_check
          %p281 = pneg %p108
        $region22: #{tpu_custom_call.1} parent=11 // pred_check_branch
          %283 = sbr.rel (%p281) target = $region24
        $region23: #{tpu_custom_call.1} parent=11 // pred_region
          _
        $region24: #{tpu_custom_call.1} parent=11 // pred_fallthru
          _
        // Predicated region
        $region25: #{tpu_custom_call.1} parent=11 // pred_check
          %p284 = pneg %p129
        $region26: #{tpu_custom_call.1} parent=11 // pred_check_branch
          %286 = sbr.rel (%p284) target = $region28
        $region27: #{tpu_custom_call.1} parent=11 // pred_region
          _
        $region28: #{tpu_custom_call.1} parent=11 // pred_fallthru
          _
        // Predicated region
        $region29: #{tpu_custom_call.1} parent=11 // pred_check
          %p287 = pneg %p150
        $region30: #{tpu_custom_call.1} parent=11 // pred_check_branch
          %289 = sbr.rel (%p287) target = $region32
        $region31: #{tpu_custom_call.1} parent=11 // pred_region
          _
        $region32: #{tpu_custom_call.1} parent=11 // pred_fallthru
          _
        // Predicated region
        $region33: #{tpu_custom_call.1} parent=11 // pred_check
          %p290 = pneg %p171
        $region34: #{tpu_custom_call.1} parent=11 // pred_check_branch
          %292 = sbr.rel (%p290) target = $region36
        $region35: #{tpu_custom_call.1} parent=11 // pred_region
          _
        $region36: #{tpu_custom_call.1} parent=11 // pred_fallthru
          _
        // Predicated region
        $region37: #{tpu_custom_call.1} parent=11 // pred_check
          %p293 = pneg %p192
        $region38: #{tpu_custom_call.1} parent=11 // pred_check_branch
          %295 = sbr.rel (%p293) target = $region40
        $region39: #{tpu_custom_call.1} parent=11 // pred_region
          _
        $region40: #{tpu_custom_call.1} parent=11 // pred_fallthru
          _
        // Predicated region
        $region41: #{tpu_custom_call.1} parent=11 // pred_check
          %p296 = pneg %p213
        $region42: #{tpu_custom_call.1} parent=11 // pred_check_branch
          %298 = sbr.rel (%p296) target = $region44
        $region43: #{tpu_custom_call.1} parent=11 // pred_region
          _
        $region44: #{tpu_custom_call.1} parent=11 // pred_fallthru
          _
        // Predicated region
        $region45: #{tpu_custom_call.1} parent=11 // pred_check
          %p299 = pneg %p234
        $region46: #{tpu_custom_call.1} parent=11 // pred_check_branch
          %301 = sbr.rel (%p299) target = $region48
        $region47: #{tpu_custom_call.1} parent=11 // pred_region
          _
        $region48: #{tpu_custom_call.1} parent=11 // pred_fallthru
          _
      $region12: #{tpu_custom_call.1} parent=5 // pred_fallthru
        _
      %p302 = scmp.lt.s32.totalorder %s19, 2
      // Predicated region
      $region49: #{tpu_custom_call.1} parent=5 // pred_check
        %p303 = pneg %p302
      $region50: #{tpu_custom_call.1} parent=5 // pred_check_branch
        %305 = sbr.rel (%p303) target = $region52
      $region51: #{tpu_custom_call.1} parent=5 // pred_region
        // Predicated region
        $region53: #{tpu_custom_call.1} parent=51 // pred_check
          %p306 = pneg %p39
        $region54: #{tpu_custom_call.1} parent=51 // pred_check_branch
          %308 = sbr.rel (%p306) target = $region56
        $region55: #{tpu_custom_call.1} parent=51 // pred_region
          %s309 = sand.u32 %s29, 1
          %s310 = sand.u32 %s29, 1
          %s311 = smul.addr %s310, 64
          %s312 = scalar_lea.vmem [#allocation2], %s311
          %s313 = smul.u32 8, %s19
          %s314 = smul.addr %s313, 4
          %s315 = scalar_lea.vmem %s0, %s314
          // Predicated region
          $region57: #{tpu_custom_call.1} parent=55 // pred_check
            _
          $region58: #{tpu_custom_call.1} parent=55 // pred_check_branch
            %317 = sbr.rel (0) target = $region60
          $region59: #{tpu_custom_call.1} parent=55 // pred_region
            // Predicated region
            $region61: #{tpu_custom_call.1} parent=59 // pred_check
              _
            $region62: #{tpu_custom_call.1} parent=59 // pred_check_branch
              %319 = sbr.rel (0) target = $region64
            $region63: #{tpu_custom_call.1} parent=59 // pred_region
              loop: start=0, step=1, limit=1
              $region65: #{tpu_custom_call.1} parent=63 // loop_pre_header
                _
              $region66: #{tpu_custom_call.1} parent=63 // loop_header
                %s321 = sphi 0, %s325
                %p322 = scmp.ge.s32.totalorder %s321, 1
                %s326 = sphi %s315, %s315
                %s327 = sphi %s312, %s312
              $region67: #{tpu_custom_call.1} parent=63 // loop_header_branch
                %324 = sbr.rel (%p322) target = $region71
              $region68: #{tpu_custom_call.1} parent=63 // loop_body
                %v328 = vld [vmem:[%s326] sm:$0xff]
                %329 = vst [vmem:[%s327] sm:$0xff] %v328
                %v330 = vld [vmem:[%s326 + $0x8] sm:$0xff]
                %331 = vst [vmem:[%s327 + $0x8] sm:$0xff] %v330
                %v332 = vld [vmem:[%s326 + $0x10] sm:$0xff]
                %333 = vst [vmem:[%s327 + $0x10] sm:$0xff] %v332
                %v334 = vld [vmem:[%s326 + $0x18] sm:$0xff]
                %335 = vst [vmem:[%s327 + $0x18] sm:$0xff] %v334
                %v336 = vld [vmem:[%s326 + $0x40] sm:$0xff]
                %337 = vst [vmem:[%s327 + $0x20] sm:$0xff] %v336
                %v338 = vld [vmem:[%s326 + $0x48] sm:$0xff]
                %339 = vst [vmem:[%s327 + $0x28] sm:$0xff] %v338
                %v340 = vld [vmem:[%s326 + $0x50] sm:$0xff]
                %341 = vst [vmem:[%s327 + $0x30] sm:$0xff] %v340
                %v342 = vld [vmem:[%s326 + $0x58] sm:$0xff]
                %343 = vst [vmem:[%s327 + $0x38] sm:$0xff] %v342
              $region69: #{tpu_custom_call.1} parent=63 // loop_footer
                %s325 = sadd.s32 1, %s321
              $region70: #{tpu_custom_call.1} parent=63 // loop_footer_branch
                %320 = sbr.rel target = $region66
              $region71: #{tpu_custom_call.1} parent=63 // loop_exit
                _
            $region64: #{tpu_custom_call.1} parent=59 // pred_fallthru
              _
            // Predicated region
            $region72: #{tpu_custom_call.1} parent=59 // pred_check
              _
            $region73: #{tpu_custom_call.1} parent=59 // pred_check_branch
              %345 = sbr.rel target = $region75
            $region74: #{tpu_custom_call.1} parent=59 // pred_region
              _
            $region75: #{tpu_custom_call.1} parent=59 // pred_fallthru
              _
          $region60: #{tpu_custom_call.1} parent=55 // pred_fallthru
            _
          %346 = vnop
        $region56: #{tpu_custom_call.1} parent=51 // pred_fallthru
          _
      $region52: #{tpu_custom_call.1} parent=5 // pred_fallthru
        _
      %p347 = scmp.le.s32.totalorder 1, %s19
      %p348 = scmp.lt.s32.totalorder %s19, 3
      %p349 = pnand %p347, %p348
      %p350 = pneg %p349
      // Predicated region
      $region76: #{tpu_custom_call.1} parent=5 // pred_check
        _
      $region77: #{tpu_custom_call.1} parent=5 // pred_check_branch
        %352 = sbr.rel (%p349) target = $region79
      $region78: #{tpu_custom_call.1} parent=5 // pred_region
        %s353 = ssub.s32 %s19, 1
        %s354 = sand.u32 %s32, 1
        %s355 = sand.u32 %s32, 1
        %s356 = smul.addr %s355, 64
        %s357 = scalar_lea.vmem [#allocation2], %s356
        // Predicated region
        $region80: #{tpu_custom_call.1} parent=78 // pred_check
          %p358 = pneg %p45
        $region81: #{tpu_custom_call.1} parent=78 // pred_check_branch
          %360 = sbr.rel (%p358) target = $region83
        $region82: #{tpu_custom_call.1} parent=78 // pred_region
          _
        $region83: #{tpu_custom_call.1} parent=78 // pred_fallthru
          _
        %s361 = sand.u32 %s32, 1
        %s362 = sand.u32 %s32, 1
        %s363 = smul.addr %s362, 64
        %s364 = scalar_lea.vmem [#allocation2], %s363
        %p365 = pneg %p45
        %p366 = pneg %p42
        %p367 = pneg %p66
        %p368 = pneg %p63
        %p369 = pneg %p87
        %p370 = pneg %p84
        %p371 = pneg %p108
        %p372 = pneg %p105
        %p373 = pneg %p129
        %p374 = pneg %p126
        %p375 = pneg %p150
        %p376 = pneg %p147
        %p377 = pneg %p171
        %p378 = pneg %p168
        %p379 = pneg %p192
        %p380 = pneg %p189
        %p381 = pneg %p213
        %p382 = pneg %p210
        %p383 = pneg %p234
        %p384 = pneg %p231
        %p385 = pneg %p260
        %p386 = pneg %p257
        %s387 = sand.u32 %s247, 1
        %s388 = scalar_lea.sflag [#allocation4], %s387
        %s389 = sand.u32 %s247, 1
        %s390 = smul.addr %s389, 8
        %s391 = scalar_lea.vmem [#allocation3], %s390
        %s392 = smul.u32 8, %s24
        %s393 = smul.u32 8, %s24
        %v395 = vld [vmem:[%s357] sm:$0xff]
        %v396 = vld [vmem:[%s357 + $0x8] sm:$0xff]
        %v397 = vld [vmem:[%s357 + $0x10] sm:$0xff]
        %v398 = vld [vmem:[%s357 + $0x18] sm:$0xff]
        %v399 = vld [vmem:[%s357 + $0x20] sm:$0xff]
        %v400 = vld [vmem:[%s357 + $0x28] sm:$0xff]
        %v401 = vld [vmem:[%s357 + $0x30] sm:$0xff]
        %v402 = vld [vmem:[%s357 + $0x38] sm:$0xff]
        %v403 = vunpack.c.l.bf16 %v395
        %v404 = vunpack.c.h.bf16 %v395
        %v405 = vunpack.c.l.bf16 %v396
        %v406 = vunpack.c.h.bf16 %v396
        %v407 = vunpack.c.l.bf16 %v397
        %v408 = vunpack.c.h.bf16 %v397
        %v409 = vunpack.c.l.bf16 %v398
        %v410 = vunpack.c.h.bf16 %v398
        %v411 = vunpack.c.l.bf16 %v399
        %v412 = vunpack.c.h.bf16 %v399
        %v413 = vunpack.c.l.bf16 %v400
        %v414 = vunpack.c.h.bf16 %v400
        %v415 = vunpack.c.l.bf16 %v401
        %v416 = vunpack.c.h.bf16 %v401
        %v417 = vunpack.c.l.bf16 %v402
        %v418 = vunpack.c.h.bf16 %v402
        %v419 = vld [vmem:[%s1] sm:$0xff]
        %v420 = vld [vmem:[%s1 + $0x8] sm:$0xff]
        %v421 = vld [vmem:[%s1 + $0x10] sm:$0xff]
        %v422 = vld [vmem:[%s1 + $0x18] sm:$0xff]
        %v423 = vld [vmem:[%s1 + $0x20] sm:$0xff]
        %v424 = vld [vmem:[%s1 + $0x28] sm:$0xff]
        %v425 = vld [vmem:[%s1 + $0x30] sm:$0xff]
        %v426 = vld [vmem:[%s1 + $0x38] sm:$0xff]
        %v427 = vld [vmem:[%s3] sm:$0xf]
        %v428 = vld [vmem:[%s3 + $0x4] sm:$0xf]
        %v429 = vld [vmem:[%s3 + $0x8] sm:$0xf]
        %v430 = vld [vmem:[%s3 + $0xc] sm:$0xf]
        %v431 = vld [vmem:[%s3 + $0x10] sm:$0xf]
        %v432 = vld [vmem:[%s3 + $0x14] sm:$0xf]
        %v433 = vld [vmem:[%s3 + $0x18] sm:$0xf]
        %v434 = vld [vmem:[%s3 + $0x1c] sm:$0xf]
        %v435 = vld [vmem:[%s3 + $0x20] sm:$0xf]
        %v436 = vld [vmem:[%s3 + $0x24] sm:$0xf]
        %v437 = vld [vmem:[%s3 + $0x28] sm:$0xf]
        %v438 = vld [vmem:[%s3 + $0x2c] sm:$0xf]
        %v451 = vunpack.c.l.b16 %v427
        %v452 = vunpack.c.l.b16 %v428
        %v453 = vunpack.c.l.b16 %v429
        %v454 = vunpack.c.l.b16 %v430
        %v455 = vunpack.c.l.b16 %v431
        %v456 = vunpack.c.l.b16 %v432
        %v457 = vunpack.c.l.b16 %v433
        %v458 = vunpack.c.l.b16 %v434
        %v459 = vunpack.c.l.b16 %v435
        %v460 = vunpack.c.l.b16 %v436
        %v461 = vunpack.c.l.b16 %v437
        %v462 = vunpack.c.l.b16 %v438
        %v463 = vpack.c.b16 %v452, %v451
        %v464 = vpack.c.b16 %v454, %v453
        %v465 = vpack.c.b16 %v456, %v455
        %v466 = vpack.c.b16 %v458, %v457
        %v467 = vpack.c.b16 %v460, %v459
        %v468 = vpack.c.b16 %v462, %v461
        %v477 = vunpack.c.l.b16 %v419
        %v478 = vunpack.c.h.b16 %v419
        %v479 = vunpack.c.l.b16 %v420
        %v480 = vunpack.c.h.b16 %v420
        %v481 = vunpack.c.l.b16 %v421
        %v482 = vunpack.c.h.b16 %v421
        %v483 = vunpack.c.l.b16 %v422
        %v484 = vunpack.c.h.b16 %v422
        %v485 = vunpack.c.l.b16 %v423
        %v486 = vunpack.c.h.b16 %v423
        %v487 = vunpack.c.l.b16 %v424
        %v488 = vunpack.c.h.b16 %v424
        %v489 = vunpack.c.l.b16 %v425
        %v490 = vunpack.c.h.b16 %v425
        %v491 = vunpack.c.l.b16 %v426
        %v492 = vunpack.c.h.b16 %v426
        %v493 = vpack.c.b16 %v485, %v477
        %v494 = vpack.c.b16 %v486, %v478
        %v495 = vpack.c.b16 %v487, %v479
        %v496 = vpack.c.b16 %v488, %v480
        %v497 = vpack.c.b16 %v489, %v481
        %v498 = vpack.c.b16 %v490, %v482
        %v499 = vpack.c.b16 %v491, %v483
        %v500 = vpack.c.b16 %v492, %v484
        %vm509 = vcmask 130048
        %v511 = vsel %vm509, %v463, 0
        %v514 = vsel %vm509, %v464, 0
        %v517 = vsel %vm509, %v465, 0
        %v520 = vsel %vm509, %v466, 0
        %v523 = vsel %vm509, %v467, 0
        %v526 = vsel %vm509, %v468, 0
        %528 = vmatprep.subr.bf16.mxu0 %v494
        %529 = vmatpush1.bf16.msra.mxu0 %v493
        %530 = vmatprep.subr.bf16.mxu0 0
        %531 = vmatpush1.bf16.msra.mxu0 0
        %532 = vmatprep.subr.bf16.mxu0 0
        %533 = vmatpush1.bf16.msra.mxu0 0
        %534 = vmatprep.subr.bf16.mxu0 0
        %535 = vmatpush1.bf16.msra.mxu0 0
        %536 = vmatprep.subr.bf16.mxu0 0
        %537 = vmatpush1.bf16.msra.mxu0 0
        %538 = vmatprep.subr.bf16.mxu0 0
        %539 = vmatpush1.bf16.msra.mxu0 0
        %540 = vmatprep.subr.bf16.mxu0 0
        %541 = vmatpush1.bf16.msra.mxu0 0
        %542 = vmatprep.subr.bf16.mxu0 0
        %543 = vmatpush1.bf16.msra.mxu0 0
        %544 = vmatprep.subr.bf16.mxu0 0
        %545 = vmatpush1.bf16.msra.mxu0 0
        %546 = vmatprep.subr.bf16.mxu0 0
        %547 = vmatpush1.bf16.msra.mxu0 0
        %548 = vmatprep.subr.bf16.mxu0 0
        %549 = vmatpush1.bf16.msra.mxu0 0
        %550 = vmatprep.subr.bf16.mxu0 0
        %551 = vmatpush1.bf16.msra.mxu0 0
        %552 = vmatprep.subr.bf16.mxu0 0
        %553 = vmatpush1.bf16.msra.mxu0 0
        %554 = vmatprep.subr.bf16.mxu0 0
        %555 = vmatpush1.bf16.msra.mxu0 0
        %556 = vmatprep.subr.bf16.mxu0 0
        %557 = vmatpush1.bf16.msra.mxu0 0
        %558 = vmatprep.subr.bf16.mxu0 0
        %559 = vmatpush1.bf16.msra.mxu0 0
        %560 = vmatprep.mubr.bf16.mxu0 0
        %561 = vmatmul.mubr.bf16.gmra.mrb[0].mxu0 %v511
        %v562 = vpop.f32.mrb[0].mxu0
        %v563 = vadd.f32 0.0, %v562
        %v564 = vpop.f32.mrb[0].mxu0
        %v565 = vadd.f32 0.0, %v564
        %v566 = vpop.f32.mrb[0].mxu0
        %v567 = vadd.f32 0.0, %v566
        %v568 = vpop.f32.mrb[0].mxu0
        %v569 = vadd.f32 0.0, %v568
        %570 = vmatprep.mubr.bf16.mxu0 0
        %571 = vmatmul.mubr.bf16.gmra.mrb[0].mxu0 %v514
        %v572 = vpop.f32.mrb[0].mxu0
        %v573 = vadd.f32 0.0, %v572
        %v574 = vpop.f32.mrb[0].mxu0
        %v575 = vadd.f32 0.0, %v574
        %v576 = vpop.f32.mrb[0].mxu0
        %v577 = vadd.f32 0.0, %v576
        %v578 = vpop.f32.mrb[0].mxu0
        %v579 = vadd.f32 0.0, %v578
        %580 = vmatprep.mubr.bf16.mxu0 0
        %581 = vmatmul.mubr.bf16.gmra.mrb[0].mxu0 %v517
        %v582 = vpop.f32.mrb[0].mxu0
        %v583 = vadd.f32 0.0, %v582
        %v584 = vpop.f32.mrb[0].mxu0
        %v585 = vadd.f32 0.0, %v584
        %v586 = vpop.f32.mrb[0].mxu0
        %v587 = vadd.f32 0.0, %v586
        %v588 = vpop.f32.mrb[0].mxu0
        %v589 = vadd.f32 0.0, %v588
        %590 = vmatprep.mubr.bf16.mxu0 0
        %591 = vmatmul.mubr.bf16.gmra.mrb[0].mxu0 %v520
        %v592 = vpop.f32.mrb[0].mxu0
        %v593 = vadd.f32 0.0, %v592
        %v594 = vpop.f32.mrb[0].mxu0
        %v595 = vadd.f32 0.0, %v594
        %v596 = vpop.f32.mrb[0].mxu0
        %v597 = vadd.f32 0.0, %v596
        %v598 = vpop.f32.mrb[0].mxu0
        %v599 = vadd.f32 0.0, %v598
        %600 = vmatprep.mubr.bf16.mxu0 0
        %601 = vmatmul.mubr.bf16.gmra.mrb[0].mxu0 %v523
        %v602 = vpop.f32.mrb[0].mxu0
        %v603 = vadd.f32 0.0, %v602
        %v604 = vpop.f32.mrb[0].mxu0
        %v605 = vadd.f32 0.0, %v604
        %v606 = vpop.f32.mrb[0].mxu0
        %v607 = vadd.f32 0.0, %v606
        %v608 = vpop.f32.mrb[0].mxu0
        %v609 = vadd.f32 0.0, %v608
        %610 = vmatprep.mubr.bf16.mxu0 0
        %611 = vmatmul.mubr.bf16.gmra.mrb[0].mxu0 %v526
        %v612 = vpop.f32.mrb[0].mxu0
        %v613 = vadd.f32 0.0, %v612
        %v614 = vpop.f32.mrb[0].mxu0
        %v615 = vadd.f32 0.0, %v614
        %v616 = vpop.f32.mrb[0].mxu0
        %v617 = vadd.f32 0.0, %v616
        %v618 = vpop.f32.mrb[0].mxu0
        %v619 = vadd.f32 0.0, %v618
        %620 = vdwg.mxu0
        %621 = vmatprep.subr.bf16.mxu0 %v496
        %622 = vmatpush1.bf16.msra.mxu0 %v495
        %623 = vmatprep.subr.bf16.mxu0 0
        %624 = vmatpush1.bf16.msra.mxu0 0
        %625 = vmatprep.subr.bf16.mxu0 0
        %626 = vmatpush1.bf16.msra.mxu0 0
        %627 = vmatprep.subr.bf16.mxu0 0
        %628 = vmatpush1.bf16.msra.mxu0 0
        %629 = vmatprep.subr.bf16.mxu0 0
        %630 = vmatpush1.bf16.msra.mxu0 0
        %631 = vmatprep.subr.bf16.mxu0 0
        %632 = vmatpush1.bf16.msra.mxu0 0
        %633 = vmatprep.subr.bf16.mxu0 0
        %634 = vmatpush1.bf16.msra.mxu0 0
        %635 = vmatprep.subr.bf16.mxu0 0
        %636 = vmatpush1.bf16.msra.mxu0 0
        %637 = vmatprep.subr.bf16.mxu0 0
        %638 = vmatpush1.bf16.msra.mxu0 0
        %639 = vmatprep.subr.bf16.mxu0 0
        %640 = vmatpush1.bf16.msra.mxu0 0
        %641 = vmatprep.subr.bf16.mxu0 0
        %642 = vmatpush1.bf16.msra.mxu0 0
        %643 = vmatprep.subr.bf16.mxu0 0
        %644 = vmatpush1.bf16.msra.mxu0 0
        %645 = vmatprep.subr.bf16.mxu0 0
        %646 = vmatpush1.bf16.msra.mxu0 0
        %647 = vmatprep.subr.bf16.mxu0 0
        %648 = vmatpush1.bf16.msra.mxu0 0
        %649 = vmatprep.subr.bf16.mxu0 0
        %650 = vmatpush1.bf16.msra.mxu0 0
        %651 = vmatprep.subr.bf16.mxu0 0
        %652 = vmatpush1.bf16.msra.mxu0 0
        %653 = vmatprep.mubr.bf16.mxu0 0
        %654 = vmatmul.mubr.bf16.gmra.mrb[0].mxu0 %v511
        %v655 = vpop.f32.mrb[0].mxu0
        %v656 = vadd.f32 0.0, %v655
        %v657 = vpop.f32.mrb[0].mxu0
        %v658 = vadd.f32 0.0, %v657
        %v659 = vpop.f32.mrb[0].mxu0
        %v660 = vadd.f32 0.0, %v659
        %v661 = vpop.f32.mrb[0].mxu0
        %v662 = vadd.f32 0.0, %v661
        %663 = vmatprep.mubr.bf16.mxu0 0
        %664 = vmatmul.mubr.bf16.gmra.mrb[0].mxu0 %v514
        %v665 = vpop.f32.mrb[0].mxu0
        %v666 = vadd.f32 0.0, %v665
        %v667 = vpop.f32.mrb[0].mxu0
        %v668 = vadd.f32 0.0, %v667
        %v669 = vpop.f32.mrb[0].mxu0
        %v670 = vadd.f32 0.0, %v669
        %v671 = vpop.f32.mrb[0].mxu0
        %v672 = vadd.f32 0.0, %v671
        %673 = vmatprep.mubr.bf16.mxu0 0
        %674 = vmatmul.mubr.bf16.gmra.mrb[0].mxu0 %v517
        %v675 = vpop.f32.mrb[0].mxu0
        %v676 = vadd.f32 0.0, %v675
        %v677 = vpop.f32.mrb[0].mxu0
        %v678 = vadd.f32 0.0, %v677
        %v679 = vpop.f32.mrb[0].mxu0
        %v680 = vadd.f32 0.0, %v679
        %v681 = vpop.f32.mrb[0].mxu0
        %v682 = vadd.f32 0.0, %v681
        %683 = vmatprep.mubr.bf16.mxu0 0
        %684 = vmatmul.mubr.bf16.gmra.mrb[0].mxu0 %v520
        %v685 = vpop.f32.mrb[0].mxu0
        %v686 = vadd.f32 0.0, %v685
        %v687 = vpop.f32.mrb[0].mxu0
        %v688 = vadd.f32 0.0, %v687
        %v689 = vpop.f32.mrb[0].mxu0
        %v690 = vadd.f32 0.0, %v689
        %v691 = vpop.f32.mrb[0].mxu0
        %v692 = vadd.f32 0.0, %v691
        %693 = vmatprep.mubr.bf16.mxu0 0
        %694 = vmatmul.mubr.bf16.gmra.mrb[0].mxu0 %v523
        %v695 = vpop.f32.mrb[0].mxu0
        %v696 = vadd.f32 0.0, %v695
        %v697 = vpop.f32.mrb[0].mxu0
        %v698 = vadd.f32 0.0, %v697
        %v699 = vpop.f32.mrb[0].mxu0
        %v700 = vadd.f32 0.0, %v699
        %v701 = vpop.f32.mrb[0].mxu0
        %v702 = vadd.f32 0.0, %v701
        %703 = vmatprep.mubr.bf16.mxu0 0
        %704 = vmatmul.mubr.bf16.gmra.mrb[0].mxu0 %v526
        %v705 = vpop.f32.mrb[0].mxu0
        %v706 = vadd.f32 0.0, %v705
        %v707 = vpop.f32.mrb[0].mxu0
        %v708 = vadd.f32 0.0, %v707
        %v709 = vpop.f32.mrb[0].mxu0
        %v710 = vadd.f32 0.0, %v709
        %v711 = vpop.f32.mrb[0].mxu0
        %v712 = vadd.f32 0.0, %v711
        %713 = vdwg.mxu0
        %714 = vmatprep.subr.bf16.mxu0 %v498
        %715 = vmatpush1.bf16.msra.mxu0 %v497
        %716 = vmatprep.subr.bf16.mxu0 0
        %717 = vmatpush1.bf16.msra.mxu0 0
        %718 = vmatprep.subr.bf16.mxu0 0
        %719 = vmatpush1.bf16.msra.mxu0 0
        %720 = vmatprep.subr.bf16.mxu0 0
        %721 = vmatpush1.bf16.msra.mxu0 0
        %722 = vmatprep.subr.bf16.mxu0 0
        %723 = vmatpush1.bf16.msra.mxu0 0
        %724 = vmatprep.subr.bf16.mxu0 0
        %725 = vmatpush1.bf16.msra.mxu0 0
        %726 = vmatprep.subr.bf16.mxu0 0
        %727 = vmatpush1.bf16.msra.mxu0 0
        %728 = vmatprep.subr.bf16.mxu0 0
        %729 = vmatpush1.bf16.msra.mxu0 0
        %730 = vmatprep.subr.bf16.mxu0 0
        %731 = vmatpush1.bf16.msra.mxu0 0
        %732 = vmatprep.subr.bf16.mxu0 0
        %733 = vmatpush1.bf16.msra.mxu0 0
        %734 = vmatprep.subr.bf16.mxu0 0
        %735 = vmatpush1.bf16.msra.mxu0 0
        %736 = vmatprep.subr.bf16.mxu0 0
        %737 = vmatpush1.bf16.msra.mxu0 0
        %738 = vmatprep.subr.bf16.mxu0 0
        %739 = vmatpush1.bf16.msra.mxu0 0
        %740 = vmatprep.subr.bf16.mxu0 0
        %741 = vmatpush1.bf16.msra.mxu0 0
        %742 = vmatprep.subr.bf16.mxu0 0
        %743 = vmatpush1.bf16.msra.mxu0 0
        %744 = vmatprep.subr.bf16.mxu0 0
        %745 = vmatpush1.bf16.msra.mxu0 0
        %746 = vmatprep.mubr.bf16.mxu0 0
        %747 = vmatmul.mubr.bf16.gmra.mrb[0].mxu0 %v511
        %v748 = vpop.f32.mrb[0].mxu0
        %v749 = vadd.f32 0.0, %v748
        %v750 = vpop.f32.mrb[0].mxu0
        %v751 = vadd.f32 0.0, %v750
        %v752 = vpop.f32.mrb[0].mxu0
        %v753 = vadd.f32 0.0, %v752
        %v754 = vpop.f32.mrb[0].mxu0
        %v755 = vadd.f32 0.0, %v754
        %756 = vmatprep.mubr.bf16.mxu0 0
        %757 = vmatmul.mubr.bf16.gmra.mrb[0].mxu0 %v514
        %v758 = vpop.f32.mrb[0].mxu0
        %v759 = vadd.f32 0.0, %v758
        %v760 = vpop.f32.mrb[0].mxu0
        %v761 = vadd.f32 0.0, %v760
        %v762 = vpop.f32.mrb[0].mxu0
        %v763 = vadd.f32 0.0, %v762
        %v764 = vpop.f32.mrb[0].mxu0
        %v765 = vadd.f32 0.0, %v764
        %766 = vmatprep.mubr.bf16.mxu0 0
        %767 = vmatmul.mubr.bf16.gmra.mrb[0].mxu0 %v517
        %v768 = vpop.f32.mrb[0].mxu0
        %v769 = vadd.f32 0.0, %v768
        %v770 = vpop.f32.mrb[0].mxu0
        %v771 = vadd.f32 0.0, %v770
        %v772 = vpop.f32.mrb[0].mxu0
        %v773 = vadd.f32 0.0, %v772
        %v774 = vpop.f32.mrb[0].mxu0
        %v775 = vadd.f32 0.0, %v774
        %776 = vmatprep.mubr.bf16.mxu0 0
        %777 = vmatmul.mubr.bf16.gmra.mrb[0].mxu0 %v520
        %v778 = vpop.f32.mrb[0].mxu0
        %v779 = vadd.f32 0.0, %v778
        %v780 = vpop.f32.mrb[0].mxu0
        %v781 = vadd.f32 0.0, %v780
        %v782 = vpop.f32.mrb[0].mxu0
        %v783 = vadd.f32 0.0, %v782
        %v784 = vpop.f32.mrb[0].mxu0
        %v785 = vadd.f32 0.0, %v784
        %786 = vmatprep.mubr.bf16.mxu0 0
        %787 = vmatmul.mubr.bf16.gmra.mrb[0].mxu0 %v523
        %v788 = vpop.f32.mrb[0].mxu0
        %v789 = vadd.f32 0.0, %v788
        %v790 = vpop.f32.mrb[0].mxu0
        %v791 = vadd.f32 0.0, %v790
        %v792 = vpop.f32.mrb[0].mxu0
        %v793 = vadd.f32 0.0, %v792
        %v794 = vpop.f32.mrb[0].mxu0
        %v795 = vadd.f32 0.0, %v794
        %796 = vmatprep.mubr.bf16.mxu0 0
        %797 = vmatmul.mubr.bf16.gmra.mrb[0].mxu0 %v526
        %v798 = vpop.f32.mrb[0].mxu0
        %v799 = vadd.f32 0.0, %v798
        %v800 = vpop.f32.mrb[0].mxu0
        %v801 = vadd.f32 0.0, %v800
        %v802 = vpop.f32.mrb[0].mxu0
        %v803 = vadd.f32 0.0, %v802
        %v804 = vpop.f32.mrb[0].mxu0
        %v805 = vadd.f32 0.0, %v804
        %806 = vdwg.mxu0
        %807 = vmatprep.subr.bf16.mxu0 %v500
        %808 = vmatpush1.bf16.msra.mxu0 %v499
        %809 = vmatprep.subr.bf16.mxu0 0
        %810 = vmatpush1.bf16.msra.mxu0 0
        %811 = vmatprep.subr.bf16.mxu0 0
        %812 = vmatpush1.bf16.msra.mxu0 0
        %813 = vmatprep.subr.bf16.mxu0 0
        %814 = vmatpush1.bf16.msra.mxu0 0
        %815 = vmatprep.subr.bf16.mxu0 0
        %816 = vmatpush1.bf16.msra.mxu0 0
        %817 = vmatprep.subr.bf16.mxu0 0
        %818 = vmatpush1.bf16.msra.mxu0 0
        %819 = vmatprep.subr.bf16.mxu0 0
        %820 = vmatpush1.bf16.msra.mxu0 0
        %821 = vmatprep.subr.bf16.mxu0 0
        %822 = vmatpush1.bf16.msra.mxu0 0
        %823 = vmatprep.subr.bf16.mxu0 0
        %824 = vmatpush1.bf16.msra.mxu0 0
        %825 = vmatprep.subr.bf16.mxu0 0
        %826 = vmatpush1.bf16.msra.mxu0 0
        %827 = vmatprep.subr.bf16.mxu0 0
        %828 = vmatpush1.bf16.msra.mxu0 0
        %829 = vmatprep.subr.bf16.mxu0 0
        %830 = vmatpush1.bf16.msra.mxu0 0
        %831 = vmatprep.subr.bf16.mxu0 0
        %832 = vmatpush1.bf16.msra.mxu0 0
        %833 = vmatprep.subr.bf16.mxu0 0
        %834 = vmatpush1.bf16.msra.mxu0 0
        %835 = vmatprep.subr.bf16.mxu0 0
        %836 = vmatpush1.bf16.msra.mxu0 0
        %837 = vmatprep.subr.bf16.mxu0 0
        %838 = vmatpush1.bf16.msra.mxu0 0
        %839 = vmatprep.mubr.bf16.mxu0 0
        %840 = vmatmul.mubr.bf16.gmra.mrb[0].mxu0 %v511
        %v841 = vpop.f32.mrb[0].mxu0
        %v842 = vadd.f32 0.0, %v841
        %v843 = vpop.f32.mrb[0].mxu0
        %v844 = vadd.f32 0.0, %v843
        %v845 = vpop.f32.mrb[0].mxu0
        %v846 = vadd.f32 0.0, %v845
        %v847 = vpop.f32.mrb[0].mxu0
        %v848 = vadd.f32 0.0, %v847
        %849 = vmatprep.mubr.bf16.mxu0 0
        %850 = vmatmul.mubr.bf16.gmra.mrb[0].mxu0 %v514
        %v851 = vpop.f32.mrb[0].mxu0
        %v852 = vadd.f32 0.0, %v851
        %v853 = vpop.f32.mrb[0].mxu0
        %v854 = vadd.f32 0.0, %v853
        %v855 = vpop.f32.mrb[0].mxu0
        %v856 = vadd.f32 0.0, %v855
        %v857 = vpop.f32.mrb[0].mxu0
        %v858 = vadd.f32 0.0, %v857
        %859 = vmatprep.mubr.bf16.mxu0 0
        %860 = vmatmul.mubr.bf16.gmra.mrb[0].mxu0 %v517
        %v861 = vpop.f32.mrb[0].mxu0
        %v862 = vadd.f32 0.0, %v861
        %v863 = vpop.f32.mrb[0].mxu0
        %v864 = vadd.f32 0.0, %v863
        %v865 = vpop.f32.mrb[0].mxu0
        %v866 = vadd.f32 0.0, %v865
        %v867 = vpop.f32.mrb[0].mxu0
        %v868 = vadd.f32 0.0, %v867
        %869 = vmatprep.mubr.bf16.mxu0 0
        %870 = vmatmul.mubr.bf16.gmra.mrb[0].mxu0 %v520
        %v871 = vpop.f32.mrb[0].mxu0
        %v872 = vadd.f32 0.0, %v871
        %v873 = vpop.f32.mrb[0].mxu0
        %v874 = vadd.f32 0.0, %v873
        %v875 = vpop.f32.mrb[0].mxu0
        %v876 = vadd.f32 0.0, %v875
        %v877 = vpop.f32.mrb[0].mxu0
        %v878 = vadd.f32 0.0, %v877
        %879 = vmatprep.mubr.bf16.mxu0 0
        %880 = vmatmul.mubr.bf16.gmra.mrb[0].mxu0 %v523
        %v881 = vpop.f32.mrb[0].mxu0
        %v882 = vadd.f32 0.0, %v881
        %v883 = vpop.f32.mrb[0].mxu0
        %v884 = vadd.f32 0.0, %v883
        %v885 = vpop.f32.mrb[0].mxu0
        %v886 = vadd.f32 0.0, %v885
        %v887 = vpop.f32.mrb[0].mxu0
        %v888 = vadd.f32 0.0, %v887
        %889 = vmatprep.mubr.bf16.mxu0 0
        %890 = vmatmul.mubr.bf16.gmra.mrb[0].mxu0 %v526
        %v891 = vpop.f32.mrb[0].mxu0
        %v892 = vadd.f32 0.0, %v891
        %v893 = vpop.f32.mrb[0].mxu0
        %v894 = vadd.f32 0.0, %v893
        %v895 = vpop.f32.mrb[0].mxu0
        %v896 = vadd.f32 0.0, %v895
        %v897 = vpop.f32.mrb[0].mxu0
        %v898 = vadd.f32 0.0, %v897
        %899 = vdwg.mxu0
        %v900 = vld [vmem:[%s2] sm:$0xf]
        %v901 = vld [vmem:[%s2 + $0x4] sm:$0xf]
        %v902 = vld [vmem:[%s2 + $0x8] sm:$0xf]
        %v903 = vld [vmem:[%s2 + $0xc] sm:$0xf]
        %v904 = vld [vmem:[%s2 + $0x10] sm:$0xf]
        %v905 = vld [vmem:[%s2 + $0x14] sm:$0xf]
        %v906 = vpack.c.bf16 %v403, %v403
        %v907 = vpack.c.bf16 %v404, %v404
        %v908 = vpack.c.bf16 %v405, %v405
        %v909 = vpack.c.bf16 %v406, %v406
        %v910 = vpack.c.bf16 %v407, %v407
        %v911 = vpack.c.bf16 %v408, %v408
        %v912 = vpack.c.bf16 %v409, %v409
        %v913 = vpack.c.bf16 %v410, %v410
        %v920 = vunpack.c.l.b16 %v900
        %v921 = vunpack.c.l.b16 %v901
        %v922 = vunpack.c.l.b16 %v902
        %v923 = vunpack.c.l.b16 %v903
        %v924 = vunpack.c.l.b16 %v904
        %v925 = vunpack.c.l.b16 %v905
        %v926 = vpack.c.b16 %v921, %v920
        %v927 = vpack.c.b16 %v923, %v922
        %v928 = vpack.c.b16 %v925, %v924
        %vm929 = vcmask 64512
        %v931 = vsel %vm929, %v926, 0
        %v934 = vsel %vm929, %v927, 0
        %v937 = vsel %vm929, %v928, 0
        %vm939 = vcmask 1043456
        %v941 = vsel %vm939, %v906, 0
        %v944 = vsel %vm939, %v907, 0
        %v947 = vsel %vm939, %v908, 0
        %v950 = vsel %vm939, %v909, 0
        %v953 = vsel %vm939, %v910, 0
        %v956 = vsel %vm939, %v911, 0
        %v959 = vsel %vm939, %v912, 0
        %v962 = vsel %vm939, %v913, 0
        %964 = vmatprep.subr.bf16.mxu0 %v944
        %965 = vmatpush1.bf16.msra.mxu0 %v941
        %966 = vmatprep.subr.bf16.mxu0 0
        %967 = vmatpush1.bf16.msra.mxu0 0
        %968 = vmatprep.subr.bf16.mxu0 0
        %969 = vmatpush1.bf16.msra.mxu0 0
        %970 = vmatprep.subr.bf16.mxu0 0
        %971 = vmatpush1.bf16.msra.mxu0 0
        %972 = vmatprep.subr.bf16.mxu0 0
        %973 = vmatpush1.bf16.msra.mxu0 0
        %974 = vmatprep.subr.bf16.mxu0 0
        %975 = vmatpush1.bf16.msra.mxu0 0
        %976 = vmatprep.subr.bf16.mxu0 0
        %977 = vmatpush1.bf16.msra.mxu0 0
        %978 = vmatprep.subr.bf16.mxu0 0
        %979 = vmatpush1.bf16.msra.mxu0 0
        %980 = vmatprep.subr.bf16.mxu0 0
        %981 = vmatpush1.bf16.msra.mxu0 0
        %982 = vmatprep.subr.bf16.mxu0 0
        %983 = vmatpush1.bf16.msra.mxu0 0
        %984 = vmatprep.subr.bf16.mxu0 0
        %985 = vmatpush1.bf16.msra.mxu0 0
        %986 = vmatprep.subr.bf16.mxu0 0
        %987 = vmatpush1.bf16.msra.mxu0 0
        %988 = vmatprep.subr.bf16.mxu0 0
        %989 = vmatpush1.bf16.msra.mxu0 0
        %990 = vmatprep.subr.bf16.mxu0 0
        %991 = vmatpush1.bf16.msra.mxu0 0
        %992 = vmatprep.subr.bf16.mxu0 0
        %993 = vmatpush1.bf16.msra.mxu0 0
        %994 = vmatprep.subr.bf16.mxu0 0
        %995 = vmatpush1.bf16.msra.mxu0 0
        %996 = vmatprep.mubr.bf16.mxu0 0
        %997 = vmatmul.mubr.bf16.gmra.mrb[0].mxu0 %v931
        %v998 = vpop.f32.mrb[0].mxu0
        %v999 = vadd.f32 %v563, %v998
        %v1000 = vpop.f32.mrb[0].mxu0
        %v1001 = vadd.f32 %v565, %v1000
        %v1002 = vpop.f32.mrb[0].mxu0
        %v1003 = vadd.f32 %v567, %v1002
        %v1004 = vpop.f32.mrb[0].mxu0
        %v1005 = vadd.f32 %v569, %v1004
        %1006 = vmatprep.mubr.bf16.mxu0 0
        %1007 = vmatmul.mubr.bf16.gmra.mrb[0].mxu0 %v934
        %v1008 = vpop.f32.mrb[0].mxu0
        %v1009 = vadd.f32 %v573, %v1008
        %v1010 = vpop.f32.mrb[0].mxu0
        %v1011 = vadd.f32 %v575, %v1010
        %v1012 = vpop.f32.mrb[0].mxu0
        %v1013 = vadd.f32 %v577, %v1012
        %v1014 = vpop.f32.mrb[0].mxu0
        %v1015 = vadd.f32 %v579, %v1014
        %1016 = vmatprep.mubr.bf16.mxu0 0
        %1017 = vmatmul.mubr.bf16.gmra.mrb[0].mxu0 %v937
        %v1018 = vpop.f32.mrb[0].mxu0
        %v1019 = vadd.f32 %v583, %v1018
        %v1020 = vpop.f32.mrb[0].mxu0
        %v1021 = vadd.f32 %v585, %v1020
        %v1022 = vpop.f32.mrb[0].mxu0
        %v1023 = vadd.f32 %v587, %v1022
        %v1024 = vpop.f32.mrb[0].mxu0
        %v1025 = vadd.f32 %v589, %v1024
        %1026 = vdwg.mxu0
        %1027 = vmatprep.subr.bf16.mxu0 %v950
        %1028 = vmatpush1.bf16.msra.mxu0 %v947
        %1029 = vmatprep.subr.bf16.mxu0 0
        %1030 = vmatpush1.bf16.msra.mxu0 0
        %1031 = vmatprep.subr.bf16.mxu0 0
        %1032 = vmatpush1.bf16.msra.mxu0 0
        %1033 = vmatprep.subr.bf16.mxu0 0
        %1034 = vmatpush1.bf16.msra.mxu0 0
        %1035 = vmatprep.subr.bf16.mxu0 0
        %1036 = vmatpush1.bf16.msra.mxu0 0
        %1037 = vmatprep.subr.bf16.mxu0 0
        %1038 = vmatpush1.bf16.msra.mxu0 0
        %1039 = vmatprep.subr.bf16.mxu0 0
        %1040 = vmatpush1.bf16.msra.mxu0 0
        %1041 = vmatprep.subr.bf16.mxu0 0
        %1042 = vmatpush1.bf16.msra.mxu0 0
        %1043 = vmatprep.subr.bf16.mxu0 0
        %1044 = vmatpush1.bf16.msra.mxu0 0
        %1045 = vmatprep.subr.bf16.mxu0 0
        %1046 = vmatpush1.bf16.msra.mxu0 0
        %1047 = vmatprep.subr.bf16.mxu0 0
        %1048 = vmatpush1.bf16.msra.mxu0 0
        %1049 = vmatprep.subr.bf16.mxu0 0
        %1050 = vmatpush1.bf16.msra.mxu0 0
        %1051 = vmatprep.subr.bf16.mxu0 0
        %1052 = vmatpush1.bf16.msra.mxu0 0
        %1053 = vmatprep.subr.bf16.mxu0 0
        %1054 = vmatpush1.bf16.msra.mxu0 0
        %1055 = vmatprep.subr.bf16.mxu0 0
        %1056 = vmatpush1.bf16.msra.mxu0 0
        %1057 = vmatprep.subr.bf16.mxu0 0
        %1058 = vmatpush1.bf16.msra.mxu0 0
        %1059 = vmatprep.mubr.bf16.mxu0 0
        %1060 = vmatmul.mubr.bf16.gmra.mrb[0].mxu0 %v931
        %v1061 = vpop.f32.mrb[0].mxu0
        %v1062 = vadd.f32 %v656, %v1061
        %v1063 = vpop.f32.mrb[0].mxu0
        %v1064 = vadd.f32 %v658, %v1063
        %v1065 = vpop.f32.mrb[0].mxu0
        %v1066 = vadd.f32 %v660, %v1065
        %v1067 = vpop.f32.mrb[0].mxu0
        %v1068 = vadd.f32 %v662, %v1067
        %1069 = vmatprep.mubr.bf16.mxu0 0
        %1070 = vmatmul.mubr.bf16.gmra.mrb[0].mxu0 %v934
        %v1071 = vpop.f32.mrb[0].mxu0
        %v1072 = vadd.f32 %v666, %v1071
        %v1073 = vpop.f32.mrb[0].mxu0
        %v1074 = vadd.f32 %v668, %v1073
        %v1075 = vpop.f32.mrb[0].mxu0
        %v1076 = vadd.f32 %v670, %v1075
        %v1077 = vpop.f32.mrb[0].mxu0
        %v1078 = vadd.f32 %v672, %v1077
        %1079 = vmatprep.mubr.bf16.mxu0 0
        %1080 = vmatmul.mubr.bf16.gmra.mrb[0].mxu0 %v937
        %v1081 = vpop.f32.mrb[0].mxu0
        %v1082 = vadd.f32 %v676, %v1081
        %v1083 = vpop.f32.mrb[0].mxu0
        %v1084 = vadd.f32 %v678, %v1083
        %v1085 = vpop.f32.mrb[0].mxu0
        %v1086 = vadd.f32 %v680, %v1085
        %v1087 = vpop.f32.mrb[0].mxu0
        %v1088 = vadd.f32 %v682, %v1087
        %1089 = vdwg.mxu0
        %1090 = vmatprep.subr.bf16.mxu0 %v956
        %1091 = vmatpush1.bf16.msra.mxu0 %v953
        %1092 = vmatprep.subr.bf16.mxu0 0
        %1093 = vmatpush1.bf16.msra.mxu0 0
        %1094 = vmatprep.subr.bf16.mxu0 0
        %1095 = vmatpush1.bf16.msra.mxu0 0
        %1096 = vmatprep.subr.bf16.mxu0 0
        %1097 = vmatpush1.bf16.msra.mxu0 0
        %1098 = vmatprep.subr.bf16.mxu0 0
        %1099 = vmatpush1.bf16.msra.mxu0 0
        %1100 = vmatprep.subr.bf16.mxu0 0
        %1101 = vmatpush1.bf16.msra.mxu0 0
        %1102 = vmatprep.subr.bf16.mxu0 0
        %1103 = vmatpush1.bf16.msra.mxu0 0
        %1104 = vmatprep.subr.bf16.mxu0 0
        %1105 = vmatpush1.bf16.msra.mxu0 0
        %1106 = vmatprep.subr.bf16.mxu0 0
        %1107 = vmatpush1.bf16.msra.mxu0 0
        %1108 = vmatprep.subr.bf16.mxu0 0
        %1109 = vmatpush1.bf16.msra.mxu0 0
        %1110 = vmatprep.subr.bf16.mxu0 0
        %1111 = vmatpush1.bf16.msra.mxu0 0
        %1112 = vmatprep.subr.bf16.mxu0 0
        %1113 = vmatpush1.bf16.msra.mxu0 0
        %1114 = vmatprep.subr.bf16.mxu0 0
        %1115 = vmatpush1.bf16.msra.mxu0 0
        %1116 = vmatprep.subr.bf16.mxu0 0
        %1117 = vmatpush1.bf16.msra.mxu0 0
        %1118 = vmatprep.subr.bf16.mxu0 0
        %1119 = vmatpush1.bf16.msra.mxu0 0
        %1120 = vmatprep.subr.bf16.mxu0 0
        %1121 = vmatpush1.bf16.msra.mxu0 0
        %1122 = vmatprep.mubr.bf16.mxu0 0
        %1123 = vmatmul.mubr.bf16.gmra.mrb[0].mxu0 %v931
        %v1124 = vpop.f32.mrb[0].mxu0
        %v1125 = vadd.f32 %v749, %v1124
        %v1126 = vpop.f32.mrb[0].mxu0
        %v1127 = vadd.f32 %v751, %v1126
        %v1128 = vpop.f32.mrb[0].mxu0
        %v1129 = vadd.f32 %v753, %v1128
        %v1130 = vpop.f32.mrb[0].mxu0
        %v1131 = vadd.f32 %v755, %v1130
        %1132 = vmatprep.mubr.bf16.mxu0 0
        %1133 = vmatmul.mubr.bf16.gmra.mrb[0].mxu0 %v934
        %v1134 = vpop.f32.mrb[0].mxu0
        %v1135 = vadd.f32 %v759, %v1134
        %v1136 = vpop.f32.mrb[0].mxu0
        %v1137 = vadd.f32 %v761, %v1136
        %v1138 = vpop.f32.mrb[0].mxu0
        %v1139 = vadd.f32 %v763, %v1138
        %v1140 = vpop.f32.mrb[0].mxu0
        %v1141 = vadd.f32 %v765, %v1140
        %1142 = vmatprep.mubr.bf16.mxu0 0
        %1143 = vmatmul.mubr.bf16.gmra.mrb[0].mxu0 %v937
        %v1144 = vpop.f32.mrb[0].mxu0
        %v1145 = vadd.f32 %v769, %v1144
        %v1146 = vpop.f32.mrb[0].mxu0
        %v1147 = vadd.f32 %v771, %v1146
        %v1148 = vpop.f32.mrb[0].mxu0
        %v1149 = vadd.f32 %v773, %v1148
        %v1150 = vpop.f32.mrb[0].mxu0
        %v1151 = vadd.f32 %v775, %v1150
        %1152 = vdwg.mxu0
        %1153 = vmatprep.subr.bf16.mxu0 %v962
        %1154 = vmatpush1.bf16.msra.mxu0 %v959
        %1155 = vmatprep.subr.bf16.mxu0 0
        %1156 = vmatpush1.bf16.msra.mxu0 0
        %1157 = vmatprep.subr.bf16.mxu0 0
        %1158 = vmatpush1.bf16.msra.mxu0 0
        %1159 = vmatprep.subr.bf16.mxu0 0
        %1160 = vmatpush1.bf16.msra.mxu0 0
        %1161 = vmatprep.subr.bf16.mxu0 0
        %1162 = vmatpush1.bf16.msra.mxu0 0
        %1163 = vmatprep.subr.bf16.mxu0 0
        %1164 = vmatpush1.bf16.msra.mxu0 0
        %1165 = vmatprep.subr.bf16.mxu0 0
        %1166 = vmatpush1.bf16.msra.mxu0 0
        %1167 = vmatprep.subr.bf16.mxu0 0
        %1168 = vmatpush1.bf16.msra.mxu0 0
        %1169 = vmatprep.subr.bf16.mxu0 0
        %1170 = vmatpush1.bf16.msra.mxu0 0
        %1171 = vmatprep.subr.bf16.mxu0 0
        %1172 = vmatpush1.bf16.msra.mxu0 0
        %1173 = vmatprep.subr.bf16.mxu0 0
        %1174 = vmatpush1.bf16.msra.mxu0 0
        %1175 = vmatprep.subr.bf16.mxu0 0
        %1176 = vmatpush1.bf16.msra.mxu0 0
        %1177 = vmatprep.subr.bf16.mxu0 0
        %1178 = vmatpush1.bf16.msra.mxu0 0
        %1179 = vmatprep.subr.bf16.mxu0 0
        %1180 = vmatpush1.bf16.msra.mxu0 0
        %1181 = vmatprep.subr.bf16.mxu0 0
        %1182 = vmatpush1.bf16.msra.mxu0 0
        %1183 = vmatprep.subr.bf16.mxu0 0
        %1184 = vmatpush1.bf16.msra.mxu0 0
        %1185 = vmatprep.mubr.bf16.mxu0 0
        %1186 = vmatmul.mubr.bf16.gmra.mrb[0].mxu0 %v931
        %v1187 = vpop.f32.mrb[0].mxu0
        %v1188 = vadd.f32 %v842, %v1187
        %v1189 = vpop.f32.mrb[0].mxu0
        %v1190 = vadd.f32 %v844, %v1189
        %v1191 = vpop.f32.mrb[0].mxu0
        %v1192 = vadd.f32 %v846, %v1191
        %v1193 = vpop.f32.mrb[0].mxu0
        %v1194 = vadd.f32 %v848, %v1193
        %1195 = vmatprep.mubr.bf16.mxu0 0
        %1196 = vmatmul.mubr.bf16.gmra.mrb[0].mxu0 %v934
        %v1197 = vpop.f32.mrb[0].mxu0
        %v1198 = vadd.f32 %v852, %v1197
        %v1199 = vpop.f32.mrb[0].mxu0
        %v1200 = vadd.f32 %v854, %v1199
        %v1201 = vpop.f32.mrb[0].mxu0
        %v1202 = vadd.f32 %v856, %v1201
        %v1203 = vpop.f32.mrb[0].mxu0
        %v1204 = vadd.f32 %v858, %v1203
        %1205 = vmatprep.mubr.bf16.mxu0 0
        %1206 = vmatmul.mubr.bf16.gmra.mrb[0].mxu0 %v937
        %v1207 = vpop.f32.mrb[0].mxu0
        %v1208 = vadd.f32 %v862, %v1207
        %v1209 = vpop.f32.mrb[0].mxu0
        %v1210 = vadd.f32 %v864, %v1209
        %v1211 = vpop.f32.mrb[0].mxu0
        %v1212 = vadd.f32 %v866, %v1211
        %v1213 = vpop.f32.mrb[0].mxu0
        %v1214 = vadd.f32 %v868, %v1213
        %1215 = vdwg.mxu0
        %v1216 = vld [vmem:[%s4] sm:$0xff]
        %v1217 = vld [vmem:[%s4 + $0x8] sm:$0xff]
        %v1218 = vld [vmem:[%s4 + $0x10] sm:$0xff]
        %v1219 = vld [vmem:[%s4 + $0x18] sm:$0xff]
        %v1220 = vld [vmem:[%s4 + $0x20] sm:$0xff]
        %v1221 = vld [vmem:[%s4 + $0x28] sm:$0xff]
        %1223 = vset.pattern.permute.xlu0 0
        %1224 = vperm.xlu0 %1223, %v1216
        %v1225 = vpop.permute.xlu0 %1224
        %1228 = vset.pattern.permute.xlu0 0
        %1229 = vperm.xlu0 %1228, %v1217
        %v1230 = vpop.permute.xlu0 %1229
        %1233 = vset.pattern.permute.xlu0 0
        %1234 = vperm.xlu0 %1233, %v1218
        %v1235 = vpop.permute.xlu0 %1234
        %1238 = vset.pattern.permute.xlu0 0
        %1239 = vperm.xlu0 %1238, %v1219
        %v1240 = vpop.permute.xlu0 %1239
        %1243 = vset.pattern.permute.xlu0 0
        %1244 = vperm.xlu0 %1243, %v1220
        %v1245 = vpop.permute.xlu0 %1244
        %1248 = vset.pattern.permute.xlu0 0
        %1249 = vperm.xlu0 %1248, %v1221
        %v1250 = vpop.permute.xlu0 %1249
        %v1252 = vadd.f32 %v999, %v1225
        %v1253 = vadd.f32 %v1001, %v1225
        %v1254 = vadd.f32 %v1062, %v1225
        %v1255 = vadd.f32 %v1064, %v1225
        %v1256 = vadd.f32 %v1125, %v1225
        %v1257 = vadd.f32 %v1127, %v1225
        %v1258 = vadd.f32 %v1188, %v1225
        %v1259 = vadd.f32 %v1190, %v1225
        %v1260 = vadd.f32 %v1003, %v1230
        %v1261 = vadd.f32 %v1005, %v1230
        %v1262 = vadd.f32 %v1066, %v1230
        %v1263 = vadd.f32 %v1068, %v1230
        %v1264 = vadd.f32 %v1129, %v1230
        %v1265 = vadd.f32 %v1131, %v1230
        %v1266 = vadd.f32 %v1192, %v1230
        %v1267 = vadd.f32 %v1194, %v1230
        %v1268 = vadd.f32 %v1009, %v1235
        %v1269 = vadd.f32 %v1011, %v1235
        %v1270 = vadd.f32 %v1072, %v1235
        %v1271 = vadd.f32 %v1074, %v1235
        %v1272 = vadd.f32 %v1135, %v1235
        %v1273 = vadd.f32 %v1137, %v1235
        %v1274 = vadd.f32 %v1198, %v1235
        %v1275 = vadd.f32 %v1200, %v1235
        %v1276 = vadd.f32 %v1013, %v1240
        %v1277 = vadd.f32 %v1015, %v1240
        %v1278 = vadd.f32 %v1076, %v1240
        %v1279 = vadd.f32 %v1078, %v1240
        %v1280 = vadd.f32 %v1139, %v1240
        %v1281 = vadd.f32 %v1141, %v1240
        %v1282 = vadd.f32 %v1202, %v1240
        %v1283 = vadd.f32 %v1204, %v1240
        %v1284 = vadd.f32 %v1019, %v1245
        %v1285 = vadd.f32 %v1021, %v1245
        %v1286 = vadd.f32 %v1082, %v1245
        %v1287 = vadd.f32 %v1084, %v1245
        %v1288 = vadd.f32 %v1145, %v1245
        %v1289 = vadd.f32 %v1147, %v1245
        %v1290 = vadd.f32 %v1208, %v1245
        %v1291 = vadd.f32 %v1210, %v1245
        %v1292 = vadd.f32 %v1023, %v1250
        %v1293 = vadd.f32 %v1025, %v1250
        %v1294 = vadd.f32 %v1086, %v1250
        %v1295 = vadd.f32 %v1088, %v1250
        %v1296 = vadd.f32 %v1149, %v1250
        %v1297 = vadd.f32 %v1151, %v1250
        %v1298 = vadd.f32 %v1212, %v1250
        %v1299 = vadd.f32 %v1214, %v1250
        %v1300 = vmax.f32 %v1252, 0.0
        %v1301 = vmax.f32 %v1253, 0.0
        %v1302 = vmax.f32 %v1254, 0.0
        %v1303 = vmax.f32 %v1255, 0.0
        %v1304 = vmax.f32 %v1256, 0.0
        %v1305 = vmax.f32 %v1257, 0.0
        %v1306 = vmax.f32 %v1258, 0.0
        %v1307 = vmax.f32 %v1259, 0.0
        %v1308 = vmax.f32 %v1260, 0.0
        %v1309 = vmax.f32 %v1261, 0.0
        %v1310 = vmax.f32 %v1262, 0.0
        %v1311 = vmax.f32 %v1263, 0.0
        %v1312 = vmax.f32 %v1264, 0.0
        %v1313 = vmax.f32 %v1265, 0.0
        %v1314 = vmax.f32 %v1266, 0.0
        %v1315 = vmax.f32 %v1267, 0.0
        %v1316 = vmax.f32 %v1268, 0.0
        %v1317 = vmax.f32 %v1269, 0.0
        %v1318 = vmax.f32 %v1270, 0.0
        %v1319 = vmax.f32 %v1271, 0.0
        %v1320 = vmax.f32 %v1272, 0.0
        %v1321 = vmax.f32 %v1273, 0.0
        %v1322 = vmax.f32 %v1274, 0.0
        %v1323 = vmax.f32 %v1275, 0.0
        %v1324 = vmax.f32 %v1276, 0.0
        %v1325 = vmax.f32 %v1277, 0.0
        %v1326 = vmax.f32 %v1278, 0.0
        %v1327 = vmax.f32 %v1279, 0.0
        %v1328 = vmax.f32 %v1280, 0.0
        %v1329 = vmax.f32 %v1281, 0.0
        %v1330 = vmax.f32 %v1282, 0.0
        %v1331 = vmax.f32 %v1283, 0.0
        %v1332 = vmax.f32 %v1284, 0.0
        %v1333 = vmax.f32 %v1285, 0.0
        %v1334 = vmax.f32 %v1286, 0.0
        %v1335 = vmax.f32 %v1287, 0.0
        %v1336 = vmax.f32 %v1288, 0.0
        %v1337 = vmax.f32 %v1289, 0.0
        %v1338 = vmax.f32 %v1290, 0.0
        %v1339 = vmax.f32 %v1291, 0.0
        %v1340 = vmax.f32 %v1292, 0.0
        %v1341 = vmax.f32 %v1293, 0.0
        %v1342 = vmax.f32 %v1294, 0.0
        %v1343 = vmax.f32 %v1295, 0.0
        %v1344 = vmax.f32 %v1296, 0.0
        %v1345 = vmax.f32 %v1297, 0.0
        %v1346 = vmax.f32 %v1298, 0.0
        %v1347 = vmax.f32 %v1299, 0.0
        %v1348 = vpack.c.bf16 %v1308, %v1300
        %v1349 = vpack.c.bf16 %v1309, %v1301
        %v1350 = vpack.c.bf16 %v1310, %v1302
        %v1351 = vpack.c.bf16 %v1311, %v1303
        %v1352 = vpack.c.bf16 %v1312, %v1304
        %v1353 = vpack.c.bf16 %v1313, %v1305
        %v1354 = vpack.c.bf16 %v1314, %v1306
        %v1355 = vpack.c.bf16 %v1315, %v1307
        %v1356 = vpack.c.bf16 %v1324, %v1316
        %v1357 = vpack.c.bf16 %v1325, %v1317
        %v1358 = vpack.c.bf16 %v1326, %v1318
        %v1359 = vpack.c.bf16 %v1327, %v1319
        %v1360 = vpack.c.bf16 %v1328, %v1320
        %v1361 = vpack.c.bf16 %v1329, %v1321
        %v1362 = vpack.c.bf16 %v1330, %v1322
        %v1363 = vpack.c.bf16 %v1331, %v1323
        %v1364 = vpack.c.bf16 %v1340, %v1332
        %v1365 = vpack.c.bf16 %v1341, %v1333
        %v1366 = vpack.c.bf16 %v1342, %v1334
        %v1367 = vpack.c.bf16 %v1343, %v1335
        %v1368 = vpack.c.bf16 %v1344, %v1336
        %v1369 = vpack.c.bf16 %v1345, %v1337
        %v1370 = vpack.c.bf16 %v1346, %v1338
        %v1371 = vpack.c.bf16 %v1347, %v1339
        %v1372 = vld [vmem:[%s5] sm:$0xf]
        %v1373 = vld [vmem:[%s5 + $0x4] sm:$0xf]
        %v1374 = vld [vmem:[%s6] sm:$0xff]
        %v1375 = vld [vmem:[%s6 + $0x8] sm:$0xff]
        %1377 = vset.pattern.permute.xlu0 0
        %1378 = vperm.xlu0 %1377, %v1374
        %v1379 = vpop.permute.xlu0 %1378
        %1382 = vset.pattern.permute.xlu0 0
        %1383 = vperm.xlu0 %1382, %v1375
        %v1384 = vpop.permute.xlu0 %1383
        %v1388 = vunpack.c.l.b16 %v1372
        %v1389 = vunpack.c.l.b16 %v1373
        %v1390 = vpack.c.b16 %v1389, %v1388
        %vm1391 = vcmask 392192
        %v1393 = vsel %vm1391, %v1390, 0
        %1395 = vmatprep.subr.bf16.mxu0 %v1349
        %1396 = vmatpush1.bf16.msra.mxu0 %v1348
        %1397 = vmatprep.subr.bf16.mxu0 %v1357
        %1398 = vmatpush1.bf16.msra.mxu0 %v1356
        %1399 = vmatprep.subr.bf16.mxu0 %v1365
        %1400 = vmatpush1.bf16.msra.mxu0 %v1364
        %1401 = vmatprep.subr.bf16.mxu0 0
        %1402 = vmatpush1.bf16.msra.mxu0 0
        %1403 = vmatprep.subr.bf16.mxu0 0
        %1404 = vmatpush1.bf16.msra.mxu0 0
        %1405 = vmatprep.subr.bf16.mxu0 0
        %1406 = vmatpush1.bf16.msra.mxu0 0
        %1407 = vmatprep.subr.bf16.mxu0 0
        %1408 = vmatpush1.bf16.msra.mxu0 0
        %1409 = vmatprep.subr.bf16.mxu0 0
        %1410 = vmatpush1.bf16.msra.mxu0 0
        %1411 = vmatprep.subr.bf16.mxu0 0
        %1412 = vmatpush1.bf16.msra.mxu0 0
        %1413 = vmatprep.subr.bf16.mxu0 0
        %1414 = vmatpush1.bf16.msra.mxu0 0
        %1415 = vmatprep.subr.bf16.mxu0 0
        %1416 = vmatpush1.bf16.msra.mxu0 0
        %1417 = vmatprep.subr.bf16.mxu0 0
        %1418 = vmatpush1.bf16.msra.mxu0 0
        %1419 = vmatprep.subr.bf16.mxu0 0
        %1420 = vmatpush1.bf16.msra.mxu0 0
        %1421 = vmatprep.subr.bf16.mxu0 0
        %1422 = vmatpush1.bf16.msra.mxu0 0
        %1423 = vmatprep.subr.bf16.mxu0 0
        %1424 = vmatpush1.bf16.msra.mxu0 0
        %1425 = vmatprep.subr.bf16.mxu0 0
        %1426 = vmatpush1.bf16.msra.mxu0 0
        %1427 = vmatprep.mubr.bf16.mxu0 0
        %1428 = vmatmul.mubr.bf16.gmra.mrb[0].mxu0 %v1393
        %v1429 = vpop.f32.mrb[0].mxu0
        %v1430 = vadd.f32 %v1379, %v1429
        %v1431 = vpop.f32.mrb[0].mxu0
        %v1432 = vadd.f32 %v1379, %v1431
        %v1433 = vpop.f32.mrb[0].mxu0
        %v1434 = vadd.f32 %v1384, %v1433
        %v1435 = vpop.f32.mrb[0].mxu0
        %v1436 = vadd.f32 %v1384, %v1435
        %1437 = vdwg.mxu0
        %1438 = vmatprep.subr.bf16.mxu0 %v1351
        %1439 = vmatpush1.bf16.msra.mxu0 %v1350
        %1440 = vmatprep.subr.bf16.mxu0 %v1359
        %1441 = vmatpush1.bf16.msra.mxu0 %v1358
        %1442 = vmatprep.subr.bf16.mxu0 %v1367
        %1443 = vmatpush1.bf16.msra.mxu0 %v1366
        %1444 = vmatprep.subr.bf16.mxu0 0
        %1445 = vmatpush1.bf16.msra.mxu0 0
        %1446 = vmatprep.subr.bf16.mxu0 0
        %1447 = vmatpush1.bf16.msra.mxu0 0
        %1448 = vmatprep.subr.bf16.mxu0 0
        %1449 = vmatpush1.bf16.msra.mxu0 0
        %1450 = vmatprep.subr.bf16.mxu0 0
        %1451 = vmatpush1.bf16.msra.mxu0 0
        %1452 = vmatprep.subr.bf16.mxu0 0
        %1453 = vmatpush1.bf16.msra.mxu0 0
        %1454 = vmatprep.subr.bf16.mxu0 0
        %1455 = vmatpush1.bf16.msra.mxu0 0
        %1456 = vmatprep.subr.bf16.mxu0 0
        %1457 = vmatpush1.bf16.msra.mxu0 0
        %1458 = vmatprep.subr.bf16.mxu0 0
        %1459 = vmatpush1.bf16.msra.mxu0 0
        %1460 = vmatprep.subr.bf16.mxu0 0
        %1461 = vmatpush1.bf16.msra.mxu0 0
        %1462 = vmatprep.subr.bf16.mxu0 0
        %1463 = vmatpush1.bf16.msra.mxu0 0
        %1464 = vmatprep.subr.bf16.mxu0 0
        %1465 = vmatpush1.bf16.msra.mxu0 0
        %1466 = vmatprep.subr.bf16.mxu0 0
        %1467 = vmatpush1.bf16.msra.mxu0 0
        %1468 = vmatprep.subr.bf16.mxu0 0
        %1469 = vmatpush1.bf16.msra.mxu0 0
        %1470 = vmatprep.mubr.bf16.mxu0 0
        %1471 = vmatmul.mubr.bf16.gmra.mrb[0].mxu0 %v1393
        %v1472 = vpop.f32.mrb[0].mxu0
        %v1473 = vadd.f32 %v1379, %v1472
        %v1474 = vpop.f32.mrb[0].mxu0
        %v1475 = vadd.f32 %v1379, %v1474
        %v1476 = vpop.f32.mrb[0].mxu0
        %v1477 = vadd.f32 %v1384, %v1476
        %v1478 = vpop.f32.mrb[0].mxu0
        %v1479 = vadd.f32 %v1384, %v1478
        %1480 = vdwg.mxu0
        %1481 = vmatprep.subr.bf16.mxu0 %v1353
        %1482 = vmatpush1.bf16.msra.mxu0 %v1352
        %1483 = vmatprep.subr.bf16.mxu0 %v1361
        %1484 = vmatpush1.bf16.msra.mxu0 %v1360
        %1485 = vmatprep.subr.bf16.mxu0 %v1369
        %1486 = vmatpush1.bf16.msra.mxu0 %v1368
        %1487 = vmatprep.subr.bf16.mxu0 0
        %1488 = vmatpush1.bf16.msra.mxu0 0
        %1489 = vmatprep.subr.bf16.mxu0 0
        %1490 = vmatpush1.bf16.msra.mxu0 0
        %1491 = vmatprep.subr.bf16.mxu0 0
        %1492 = vmatpush1.bf16.msra.mxu0 0
        %1493 = vmatprep.subr.bf16.mxu0 0
        %1494 = vmatpush1.bf16.msra.mxu0 0
        %1495 = vmatprep.subr.bf16.mxu0 0
        %1496 = vmatpush1.bf16.msra.mxu0 0
        %1497 = vmatprep.subr.bf16.mxu0 0
        %1498 = vmatpush1.bf16.msra.mxu0 0
        %1499 = vmatprep.subr.bf16.mxu0 0
        %1500 = vmatpush1.bf16.msra.mxu0 0
        %1501 = vmatprep.subr.bf16.mxu0 0
        %1502 = vmatpush1.bf16.msra.mxu0 0
        %1503 = vmatprep.subr.bf16.mxu0 0
        %1504 = vmatpush1.bf16.msra.mxu0 0
        %1505 = vmatprep.subr.bf16.mxu0 0
        %1506 = vmatpush1.bf16.msra.mxu0 0
        %1507 = vmatprep.subr.bf16.mxu0 0
        %1508 = vmatpush1.bf16.msra.mxu0 0
        %1509 = vmatprep.subr.bf16.mxu0 0
        %1510 = vmatpush1.bf16.msra.mxu0 0
        %1511 = vmatprep.subr.bf16.mxu0 0
        %1512 = vmatpush1.bf16.msra.mxu0 0
        %1513 = vmatprep.mubr.bf16.mxu0 0
        %1514 = vmatmul.mubr.bf16.gmra.mrb[0].mxu0 %v1393
        %v1515 = vpop.f32.mrb[0].mxu0
        %v1516 = vadd.f32 %v1379, %v1515
        %v1517 = vpop.f32.mrb[0].mxu0
        %v1518 = vadd.f32 %v1379, %v1517
        %v1519 = vpop.f32.mrb[0].mxu0
        %v1520 = vadd.f32 %v1384, %v1519
        %v1521 = vpop.f32.mrb[0].mxu0
        %v1522 = vadd.f32 %v1384, %v1521
        %1523 = vdwg.mxu0
        %1524 = vmatprep.subr.bf16.mxu0 %v1355
        %1525 = vmatpush1.bf16.msra.mxu0 %v1354
        %1526 = vmatprep.subr.bf16.mxu0 %v1363
        %1527 = vmatpush1.bf16.msra.mxu0 %v1362
        %1528 = vmatprep.subr.bf16.mxu0 %v1371
        %1529 = vmatpush1.bf16.msra.mxu0 %v1370
        %1530 = vmatprep.subr.bf16.mxu0 0
        %1531 = vmatpush1.bf16.msra.mxu0 0
        %1532 = vmatprep.subr.bf16.mxu0 0
        %1533 = vmatpush1.bf16.msra.mxu0 0
        %1534 = vmatprep.subr.bf16.mxu0 0
        %1535 = vmatpush1.bf16.msra.mxu0 0
        %1536 = vmatprep.subr.bf16.mxu0 0
        %1537 = vmatpush1.bf16.msra.mxu0 0
        %1538 = vmatprep.subr.bf16.mxu0 0
        %1539 = vmatpush1.bf16.msra.mxu0 0
        %1540 = vmatprep.subr.bf16.mxu0 0
        %1541 = vmatpush1.bf16.msra.mxu0 0
        %1542 = vmatprep.subr.bf16.mxu0 0
        %1543 = vmatpush1.bf16.msra.mxu0 0
        %1544 = vmatprep.subr.bf16.mxu0 0
        %1545 = vmatpush1.bf16.msra.mxu0 0
        %1546 = vmatprep.subr.bf16.mxu0 0
        %1547 = vmatpush1.bf16.msra.mxu0 0
        %1548 = vmatprep.subr.bf16.mxu0 0
        %1549 = vmatpush1.bf16.msra.mxu0 0
        %1550 = vmatprep.subr.bf16.mxu0 0
        %1551 = vmatpush1.bf16.msra.mxu0 0
        %1552 = vmatprep.subr.bf16.mxu0 0
        %1553 = vmatpush1.bf16.msra.mxu0 0
        %1554 = vmatprep.subr.bf16.mxu0 0
        %1555 = vmatpush1.bf16.msra.mxu0 0
        %1556 = vmatprep.mubr.bf16.mxu0 0
        %1557 = vmatmul.mubr.bf16.gmra.mrb[0].mxu0 %v1393
        %v1558 = vpop.f32.mrb[0].mxu0
        %v1559 = vadd.f32 %v1379, %v1558
        %v1560 = vpop.f32.mrb[0].mxu0
        %v1561 = vadd.f32 %v1379, %v1560
        %v1562 = vpop.f32.mrb[0].mxu0
        %v1563 = vadd.f32 %v1384, %v1562
        %v1564 = vpop.f32.mrb[0].mxu0
        %v1565 = vadd.f32 %v1384, %v1564
        %1566 = vdwg.mxu0
        %v1567 = vmul.f32 %v1430, 0.1
        %v1568 = vmul.f32 %v1432, 0.1
        %v1569 = vmul.f32 %v1473, 0.1
        %v1570 = vmul.f32 %v1475, 0.1
        %v1571 = vmul.f32 %v1516, 0.1
        %v1572 = vmul.f32 %v1518, 0.1
        %v1573 = vmul.f32 %v1559, 0.1
        %v1574 = vmul.f32 %v1561, 0.1
        %v1575 = vtanh.pop %v1567
        %v1576 = vtanh.pop %v1568
        %v1577 = vtanh.pop %v1569
        %v1578 = vtanh.pop %v1570
        %v1579 = vtanh.pop %v1571
        %v1580 = vtanh.pop %v1572
        %v1581 = vtanh.pop %v1573
        %v1582 = vtanh.pop %v1574
        %v1583 = vmul.f32 %v1575, 1.9
        %v1584 = vmul.f32 %v1576, 1.9
        %v1585 = vmul.f32 %v1577, 1.9
        %v1586 = vmul.f32 %v1578, 1.9
        %v1587 = vmul.f32 %v1579, 1.9
        %v1588 = vmul.f32 %v1580, 1.9
        %v1589 = vmul.f32 %v1581, 1.9
        %v1590 = vmul.f32 %v1582, 1.9
        %v1591 = vmul.f32 %v1583, 1.442695
        %v1592 = vpow.pop %v1591
        %v1593 = vmul.f32 %v1584, 1.442695
        %v1594 = vpow.pop %v1593
        %v1595 = vmul.f32 %v1585, 1.442695
        %v1596 = vpow.pop %v1595
        %v1597 = vmul.f32 %v1586, 1.442695
        %v1598 = vpow.pop %v1597
        %v1599 = vmul.f32 %v1587, 1.442695
        %v1600 = vpow.pop %v1599
        %v1601 = vmul.f32 %v1588, 1.442695
        %v1602 = vpow.pop %v1601
        %v1603 = vmul.f32 %v1589, 1.442695
        %v1604 = vpow.pop %v1603
        %v1605 = vmul.f32 %v1590, 1.442695
        %v1606 = vpow.pop %v1605
        %v1607 = vmul.f32 %v411, %v1592
        %v1608 = vmul.f32 %v412, %v1594
        %v1609 = vmul.f32 %v413, %v1596
        %v1610 = vmul.f32 %v414, %v1598
        %v1611 = vmul.f32 %v415, %v1600
        %v1612 = vmul.f32 %v416, %v1602
        %v1613 = vmul.f32 %v417, %v1604
        %v1614 = vmul.f32 %v418, %v1606
        %v1615 = vmul.f32 %v1434, 0.1
        %v1616 = vmul.f32 %v1436, 0.1
        %v1617 = vmul.f32 %v1477, 0.1
        %v1618 = vmul.f32 %v1479, 0.1
        %v1619 = vmul.f32 %v1520, 0.1
        %v1620 = vmul.f32 %v1522, 0.1
        %v1621 = vmul.f32 %v1563, 0.1
        %v1622 = vmul.f32 %v1565, 0.1
        %v1623 = vadd.f32 %v1607, %v1615
        %v1624 = vadd.f32 %v1608, %v1616
        %v1625 = vadd.f32 %v1609, %v1617
        %v1626 = vadd.f32 %v1610, %v1618
        %v1627 = vadd.f32 %v1611, %v1619
        %v1628 = vadd.f32 %v1612, %v1620
        %v1629 = vadd.f32 %v1613, %v1621
        %v1630 = vadd.f32 %v1614, %v1622
        %v1631 = vadd.f32 %v1583, 0.0
        %v1632 = vadd.f32 %v1584, 0.0
        %v1633 = vadd.f32 %v1585, 0.0
        %v1634 = vadd.f32 %v1586, 0.0
        %v1635 = vadd.f32 %v1587, 0.0
        %v1636 = vadd.f32 %v1588, 0.0
        %v1637 = vadd.f32 %v1589, 0.0
        %v1638 = vadd.f32 %v1590, 0.0
        %v1639 = vld [vmem:[%s7] sm:$0xf]
        %v1640 = vld [vmem:[%s7 + $0x4] sm:$0xf]
        %v1641 = vld [vmem:[%s8] sm:$0xf]
        %v1642 = vld [vmem:[%s8 + $0x4] sm:$0xf]
        %v1643 = vpack.c.bf16 %v1623, %v1623
        %v1644 = vpack.c.bf16 %v1624, %v1624
        %v1645 = vpack.c.bf16 %v1625, %v1625
        %v1646 = vpack.c.bf16 %v1626, %v1626
        %v1647 = vpack.c.bf16 %v1627, %v1627
        %v1648 = vpack.c.bf16 %v1628, %v1628
        %v1649 = vpack.c.bf16 %v1629, %v1629
        %v1650 = vpack.c.bf16 %v1630, %v1630
        %v1653 = vunpack.c.l.b16 %v1641
        %v1654 = vunpack.c.l.b16 %v1642
        %v1655 = vpack.c.b16 %v1654, %v1653
        %v1657 = vsel %vm929, %v1655, 0
        %v1660 = vsel %vm939, %v1643, 0
        %v1663 = vsel %vm939, %v1644, 0
        %v1666 = vsel %vm939, %v1645, 0
        %v1669 = vsel %vm939, %v1646, 0
        %v1672 = vsel %vm939, %v1647, 0
        %v1675 = vsel %vm939, %v1648, 0
        %v1678 = vsel %vm939, %v1649, 0
        %v1681 = vsel %vm939, %v1650, 0
        %1683 = vmatprep.subr.bf16.mxu0 %v1663
        %1684 = vmatpush1.bf16.msra.mxu0 %v1660
        %1685 = vmatprep.subr.bf16.mxu0 0
        %1686 = vmatpush1.bf16.msra.mxu0 0
        %1687 = vmatprep.subr.bf16.mxu0 0
        %1688 = vmatpush1.bf16.msra.mxu0 0
        %1689 = vmatprep.subr.bf16.mxu0 0
        %1690 = vmatpush1.bf16.msra.mxu0 0
        %1691 = vmatprep.subr.bf16.mxu0 0
        %1692 = vmatpush1.bf16.msra.mxu0 0
        %1693 = vmatprep.subr.bf16.mxu0 0
        %1694 = vmatpush1.bf16.msra.mxu0 0
        %1695 = vmatprep.subr.bf16.mxu0 0
        %1696 = vmatpush1.bf16.msra.mxu0 0
        %1697 = vmatprep.subr.bf16.mxu0 0
        %1698 = vmatpush1.bf16.msra.mxu0 0
        %1699 = vmatprep.subr.bf16.mxu0 0
        %1700 = vmatpush1.bf16.msra.mxu0 0
        %1701 = vmatprep.subr.bf16.mxu0 0
        %1702 = vmatpush1.bf16.msra.mxu0 0
        %1703 = vmatprep.subr.bf16.mxu0 0
        %1704 = vmatpush1.bf16.msra.mxu0 0
        %1705 = vmatprep.subr.bf16.mxu0 0
        %1706 = vmatpush1.bf16.msra.mxu0 0
        %1707 = vmatprep.subr.bf16.mxu0 0
        %1708 = vmatpush1.bf16.msra.mxu0 0
        %1709 = vmatprep.subr.bf16.mxu0 0
        %1710 = vmatpush1.bf16.msra.mxu0 0
        %1711 = vmatprep.subr.bf16.mxu0 0
        %1712 = vmatpush1.bf16.msra.mxu0 0
        %1713 = vmatprep.subr.bf16.mxu0 0
        %1714 = vmatpush1.bf16.msra.mxu0 0
        %1715 = vmatprep.mubr.bf16.mxu0 0
        %1716 = vmatmul.mubr.bf16.gmra.mrb[0].mxu0 %v1657
        %v1717 = vpop.f32.mrb[0].mxu0
        %v1718 = vadd.f32 0.0, %v1717
        %v1719 = vpop.f32.mrb[0].mxu0
        %v1720 = vadd.f32 0.0, %v1719
        %v1721 = vpop.f32.mrb[0].mxu0
        %v1722 = vadd.f32 0.0, %v1721
        %v1723 = vpop.f32.mrb[0].mxu0
        %v1724 = vadd.f32 0.0, %v1723
        %1725 = vdwg.mxu0
        %1726 = vmatprep.subr.bf16.mxu0 %v1669
        %1727 = vmatpush1.bf16.msra.mxu0 %v1666
        %1728 = vmatprep.subr.bf16.mxu0 0
        %1729 = vmatpush1.bf16.msra.mxu0 0
        %1730 = vmatprep.subr.bf16.mxu0 0
        %1731 = vmatpush1.bf16.msra.mxu0 0
        %1732 = vmatprep.subr.bf16.mxu0 0
        %1733 = vmatpush1.bf16.msra.mxu0 0
        %1734 = vmatprep.subr.bf16.mxu0 0
        %1735 = vmatpush1.bf16.msra.mxu0 0
        %1736 = vmatprep.subr.bf16.mxu0 0
        %1737 = vmatpush1.bf16.msra.mxu0 0
        %1738 = vmatprep.subr.bf16.mxu0 0
        %1739 = vmatpush1.bf16.msra.mxu0 0
        %1740 = vmatprep.subr.bf16.mxu0 0
        %1741 = vmatpush1.bf16.msra.mxu0 0
        %1742 = vmatprep.subr.bf16.mxu0 0
        %1743 = vmatpush1.bf16.msra.mxu0 0
        %1744 = vmatprep.subr.bf16.mxu0 0
        %1745 = vmatpush1.bf16.msra.mxu0 0
        %1746 = vmatprep.subr.bf16.mxu0 0
        %1747 = vmatpush1.bf16.msra.mxu0 0
        %1748 = vmatprep.subr.bf16.mxu0 0
        %1749 = vmatpush1.bf16.msra.mxu0 0
        %1750 = vmatprep.subr.bf16.mxu0 0
        %1751 = vmatpush1.bf16.msra.mxu0 0
        %1752 = vmatprep.subr.bf16.mxu0 0
        %1753 = vmatpush1.bf16.msra.mxu0 0
        %1754 = vmatprep.subr.bf16.mxu0 0
        %1755 = vmatpush1.bf16.msra.mxu0 0
        %1756 = vmatprep.subr.bf16.mxu0 0
        %1757 = vmatpush1.bf16.msra.mxu0 0
        %1758 = vmatprep.mubr.bf16.mxu0 0
        %1759 = vmatmul.mubr.bf16.gmra.mrb[0].mxu0 %v1657
        %v1760 = vpop.f32.mrb[0].mxu0
        %v1761 = vadd.f32 0.0, %v1760
        %v1762 = vpop.f32.mrb[0].mxu0
        %v1763 = vadd.f32 0.0, %v1762
        %v1764 = vpop.f32.mrb[0].mxu0
        %v1765 = vadd.f32 0.0, %v1764
        %v1766 = vpop.f32.mrb[0].mxu0
        %v1767 = vadd.f32 0.0, %v1766
        %1768 = vdwg.mxu0
        %1769 = vmatprep.subr.bf16.mxu0 %v1675
        %1770 = vmatpush1.bf16.msra.mxu0 %v1672
        %1771 = vmatprep.subr.bf16.mxu0 0
        %1772 = vmatpush1.bf16.msra.mxu0 0
        %1773 = vmatprep.subr.bf16.mxu0 0
        %1774 = vmatpush1.bf16.msra.mxu0 0
        %1775 = vmatprep.subr.bf16.mxu0 0
        %1776 = vmatpush1.bf16.msra.mxu0 0
        %1777 = vmatprep.subr.bf16.mxu0 0
        %1778 = vmatpush1.bf16.msra.mxu0 0
        %1779 = vmatprep.subr.bf16.mxu0 0
        %1780 = vmatpush1.bf16.msra.mxu0 0
        %1781 = vmatprep.subr.bf16.mxu0 0
        %1782 = vmatpush1.bf16.msra.mxu0 0
        %1783 = vmatprep.subr.bf16.mxu0 0
        %1784 = vmatpush1.bf16.msra.mxu0 0
        %1785 = vmatprep.subr.bf16.mxu0 0
        %1786 = vmatpush1.bf16.msra.mxu0 0
        %1787 = vmatprep.subr.bf16.mxu0 0
        %1788 = vmatpush1.bf16.msra.mxu0 0
        %1789 = vmatprep.subr.bf16.mxu0 0
        %1790 = vmatpush1.bf16.msra.mxu0 0
        %1791 = vmatprep.subr.bf16.mxu0 0
        %1792 = vmatpush1.bf16.msra.mxu0 0
        %1793 = vmatprep.subr.bf16.mxu0 0
        %1794 = vmatpush1.bf16.msra.mxu0 0
        %1795 = vmatprep.subr.bf16.mxu0 0
        %1796 = vmatpush1.bf16.msra.mxu0 0
        %1797 = vmatprep.subr.bf16.mxu0 0
        %1798 = vmatpush1.bf16.msra.mxu0 0
        %1799 = vmatprep.subr.bf16.mxu0 0
        %1800 = vmatpush1.bf16.msra.mxu0 0
        %1801 = vmatprep.mubr.bf16.mxu0 0
        %1802 = vmatmul.mubr.bf16.gmra.mrb[0].mxu0 %v1657
        %v1803 = vpop.f32.mrb[0].mxu0
        %v1804 = vadd.f32 0.0, %v1803
        %v1805 = vpop.f32.mrb[0].mxu0
        %v1806 = vadd.f32 0.0, %v1805
        %v1807 = vpop.f32.mrb[0].mxu0
        %v1808 = vadd.f32 0.0, %v1807
        %v1809 = vpop.f32.mrb[0].mxu0
        %v1810 = vadd.f32 0.0, %v1809
        %1811 = vdwg.mxu0
        %1812 = vmatprep.subr.bf16.mxu0 %v1681
        %1813 = vmatpush1.bf16.msra.mxu0 %v1678
        %1814 = vmatprep.subr.bf16.mxu0 0
        %1815 = vmatpush1.bf16.msra.mxu0 0
        %1816 = vmatprep.subr.bf16.mxu0 0
        %1817 = vmatpush1.bf16.msra.mxu0 0
        %1818 = vmatprep.subr.bf16.mxu0 0
        %1819 = vmatpush1.bf16.msra.mxu0 0
        %1820 = vmatprep.subr.bf16.mxu0 0
        %1821 = vmatpush1.bf16.msra.mxu0 0
        %1822 = vmatprep.subr.bf16.mxu0 0
        %1823 = vmatpush1.bf16.msra.mxu0 0
        %1824 = vmatprep.subr.bf16.mxu0 0
        %1825 = vmatpush1.bf16.msra.mxu0 0
        %1826 = vmatprep.subr.bf16.mxu0 0
        %1827 = vmatpush1.bf16.msra.mxu0 0
        %1828 = vmatprep.subr.bf16.mxu0 0
        %1829 = vmatpush1.bf16.msra.mxu0 0
        %1830 = vmatprep.subr.bf16.mxu0 0
        %1831 = vmatpush1.bf16.msra.mxu0 0
        %1832 = vmatprep.subr.bf16.mxu0 0
        %1833 = vmatpush1.bf16.msra.mxu0 0
        %1834 = vmatprep.subr.bf16.mxu0 0
        %1835 = vmatpush1.bf16.msra.mxu0 0
        %1836 = vmatprep.subr.bf16.mxu0 0
        %1837 = vmatpush1.bf16.msra.mxu0 0
        %1838 = vmatprep.subr.bf16.mxu0 0
        %1839 = vmatpush1.bf16.msra.mxu0 0
        %1840 = vmatprep.subr.bf16.mxu0 0
        %1841 = vmatpush1.bf16.msra.mxu0 0
        %1842 = vmatprep.subr.bf16.mxu0 0
        %1843 = vmatpush1.bf16.msra.mxu0 0
        %1844 = vmatprep.mubr.bf16.mxu0 0
        %1845 = vmatmul.mubr.bf16.gmra.mrb[0].mxu0 %v1657
        %v1846 = vpop.f32.mrb[0].mxu0
        %v1847 = vadd.f32 0.0, %v1846
        %v1848 = vpop.f32.mrb[0].mxu0
        %v1849 = vadd.f32 0.0, %v1848
        %v1850 = vpop.f32.mrb[0].mxu0
        %v1851 = vadd.f32 0.0, %v1850
        %v1852 = vpop.f32.mrb[0].mxu0
        %v1853 = vadd.f32 0.0, %v1852
        %1854 = vdwg.mxu0
        %v1857 = vunpack.c.l.b16 %v1639
        %v1858 = vunpack.c.l.b16 %v1640
        %v1859 = vpack.c.b16 %v1858, %v1857
        %v1861 = vsel %vm929, %v1859, 0
        %1863 = vmatprep.subr.bf16.mxu0 %v944
        %1864 = vmatpush1.bf16.msra.mxu0 %v941
        %1865 = vmatprep.subr.bf16.mxu0 0
        %1866 = vmatpush1.bf16.msra.mxu0 0
        %1867 = vmatprep.subr.bf16.mxu0 0
        %1868 = vmatpush1.bf16.msra.mxu0 0
        %1869 = vmatprep.subr.bf16.mxu0 0
        %1870 = vmatpush1.bf16.msra.mxu0 0
        %1871 = vmatprep.subr.bf16.mxu0 0
        %1872 = vmatpush1.bf16.msra.mxu0 0
        %1873 = vmatprep.subr.bf16.mxu0 0
        %1874 = vmatpush1.bf16.msra.mxu0 0
        %1875 = vmatprep.subr.bf16.mxu0 0
        %1876 = vmatpush1.bf16.msra.mxu0 0
        %1877 = vmatprep.subr.bf16.mxu0 0
        %1878 = vmatpush1.bf16.msra.mxu0 0
        %1879 = vmatprep.subr.bf16.mxu0 0
        %1880 = vmatpush1.bf16.msra.mxu0 0
        %1881 = vmatprep.subr.bf16.mxu0 0
        %1882 = vmatpush1.bf16.msra.mxu0 0
        %1883 = vmatprep.subr.bf16.mxu0 0
        %1884 = vmatpush1.bf16.msra.mxu0 0
        %1885 = vmatprep.subr.bf16.mxu0 0
        %1886 = vmatpush1.bf16.msra.mxu0 0
        %1887 = vmatprep.subr.bf16.mxu0 0
        %1888 = vmatpush1.bf16.msra.mxu0 0
        %1889 = vmatprep.subr.bf16.mxu0 0
        %1890 = vmatpush1.bf16.msra.mxu0 0
        %1891 = vmatprep.subr.bf16.mxu0 0
        %1892 = vmatpush1.bf16.msra.mxu0 0
        %1893 = vmatprep.subr.bf16.mxu0 0
        %1894 = vmatpush1.bf16.msra.mxu0 0
        %1895 = vmatprep.mubr.bf16.mxu0 0
        %1896 = vmatmul.mubr.bf16.gmra.mrb[0].mxu0 %v1861
        %v1897 = vpop.f32.mrb[0].mxu0
        %v1898 = vadd.f32 %v1718, %v1897
        %v1899 = vpop.f32.mrb[0].mxu0
        %v1900 = vadd.f32 %v1720, %v1899
        %v1901 = vpop.f32.mrb[0].mxu0
        %v1902 = vadd.f32 %v1722, %v1901
        %v1903 = vpop.f32.mrb[0].mxu0
        %v1904 = vadd.f32 %v1724, %v1903
        %1905 = vdwg.mxu0
        %1906 = vmatprep.subr.bf16.mxu0 %v950
        %1907 = vmatpush1.bf16.msra.mxu0 %v947
        %1908 = vmatprep.subr.bf16.mxu0 0
        %1909 = vmatpush1.bf16.msra.mxu0 0
        %1910 = vmatprep.subr.bf16.mxu0 0
        %1911 = vmatpush1.bf16.msra.mxu0 0
        %1912 = vmatprep.subr.bf16.mxu0 0
        %1913 = vmatpush1.bf16.msra.mxu0 0
        %1914 = vmatprep.subr.bf16.mxu0 0
        %1915 = vmatpush1.bf16.msra.mxu0 0
        %1916 = vmatprep.subr.bf16.mxu0 0
        %1917 = vmatpush1.bf16.msra.mxu0 0
        %1918 = vmatprep.subr.bf16.mxu0 0
        %1919 = vmatpush1.bf16.msra.mxu0 0
        %1920 = vmatprep.subr.bf16.mxu0 0
        %1921 = vmatpush1.bf16.msra.mxu0 0
        %1922 = vmatprep.subr.bf16.mxu0 0
        %1923 = vmatpush1.bf16.msra.mxu0 0
        %1924 = vmatprep.subr.bf16.mxu0 0
        %1925 = vmatpush1.bf16.msra.mxu0 0
        %1926 = vmatprep.subr.bf16.mxu0 0
        %1927 = vmatpush1.bf16.msra.mxu0 0
        %1928 = vmatprep.subr.bf16.mxu0 0
        %1929 = vmatpush1.bf16.msra.mxu0 0
        %1930 = vmatprep.subr.bf16.mxu0 0
        %1931 = vmatpush1.bf16.msra.mxu0 0
        %1932 = vmatprep.subr.bf16.mxu0 0
        %1933 = vmatpush1.bf16.msra.mxu0 0
        %1934 = vmatprep.subr.bf16.mxu0 0
        %1935 = vmatpush1.bf16.msra.mxu0 0
        %1936 = vmatprep.subr.bf16.mxu0 0
        %1937 = vmatpush1.bf16.msra.mxu0 0
        %1938 = vmatprep.mubr.bf16.mxu0 0
        %1939 = vmatmul.mubr.bf16.gmra.mrb[0].mxu0 %v1861
        %v1940 = vpop.f32.mrb[0].mxu0
        %v1941 = vadd.f32 %v1761, %v1940
        %v1942 = vpop.f32.mrb[0].mxu0
        %v1943 = vadd.f32 %v1763, %v1942
        %v1944 = vpop.f32.mrb[0].mxu0
        %v1945 = vadd.f32 %v1765, %v1944
        %v1946 = vpop.f32.mrb[0].mxu0
        %v1947 = vadd.f32 %v1767, %v1946
        %1948 = vdwg.mxu0
        %1949 = vmatprep.subr.bf16.mxu0 %v956
        %1950 = vmatpush1.bf16.msra.mxu0 %v953
        %1951 = vmatprep.subr.bf16.mxu0 0
        %1952 = vmatpush1.bf16.msra.mxu0 0
        %1953 = vmatprep.subr.bf16.mxu0 0
        %1954 = vmatpush1.bf16.msra.mxu0 0
        %1955 = vmatprep.subr.bf16.mxu0 0
        %1956 = vmatpush1.bf16.msra.mxu0 0
        %1957 = vmatprep.subr.bf16.mxu0 0
        %1958 = vmatpush1.bf16.msra.mxu0 0
        %1959 = vmatprep.subr.bf16.mxu0 0
        %1960 = vmatpush1.bf16.msra.mxu0 0
        %1961 = vmatprep.subr.bf16.mxu0 0
        %1962 = vmatpush1.bf16.msra.mxu0 0
        %1963 = vmatprep.subr.bf16.mxu0 0
        %1964 = vmatpush1.bf16.msra.mxu0 0
        %1965 = vmatprep.subr.bf16.mxu0 0
        %1966 = vmatpush1.bf16.msra.mxu0 0
        %1967 = vmatprep.subr.bf16.mxu0 0
        %1968 = vmatpush1.bf16.msra.mxu0 0
        %1969 = vmatprep.subr.bf16.mxu0 0
        %1970 = vmatpush1.bf16.msra.mxu0 0
        %1971 = vmatprep.subr.bf16.mxu0 0
        %1972 = vmatpush1.bf16.msra.mxu0 0
        %1973 = vmatprep.subr.bf16.mxu0 0
        %1974 = vmatpush1.bf16.msra.mxu0 0
        %1975 = vmatprep.subr.bf16.mxu0 0
        %1976 = vmatpush1.bf16.msra.mxu0 0
        %1977 = vmatprep.subr.bf16.mxu0 0
        %1978 = vmatpush1.bf16.msra.mxu0 0
        %1979 = vmatprep.subr.bf16.mxu0 0
        %1980 = vmatpush1.bf16.msra.mxu0 0
        %1981 = vmatprep.mubr.bf16.mxu0 0
        %1982 = vmatmul.mubr.bf16.gmra.mrb[0].mxu0 %v1861
        %v1983 = vpop.f32.mrb[0].mxu0
        %v1984 = vadd.f32 %v1804, %v1983
        %v1985 = vpop.f32.mrb[0].mxu0
        %v1986 = vadd.f32 %v1806, %v1985
        %v1987 = vpop.f32.mrb[0].mxu0
        %v1988 = vadd.f32 %v1808, %v1987
        %v1989 = vpop.f32.mrb[0].mxu0
        %v1990 = vadd.f32 %v1810, %v1989
        %1991 = vdwg.mxu0
        %1992 = vmatprep.subr.bf16.mxu0 %v962
        %1993 = vmatpush1.bf16.msra.mxu0 %v959
        %1994 = vmatprep.subr.bf16.mxu0 0
        %1995 = vmatpush1.bf16.msra.mxu0 0
        %1996 = vmatprep.subr.bf16.mxu0 0
        %1997 = vmatpush1.bf16.msra.mxu0 0
        %1998 = vmatprep.subr.bf16.mxu0 0
        %1999 = vmatpush1.bf16.msra.mxu0 0
        %2000 = vmatprep.subr.bf16.mxu0 0
        %2001 = vmatpush1.bf16.msra.mxu0 0
        %2002 = vmatprep.subr.bf16.mxu0 0
        %2003 = vmatpush1.bf16.msra.mxu0 0
        %2004 = vmatprep.subr.bf16.mxu0 0
        %2005 = vmatpush1.bf16.msra.mxu0 0
        %2006 = vmatprep.subr.bf16.mxu0 0
        %2007 = vmatpush1.bf16.msra.mxu0 0
        %2008 = vmatprep.subr.bf16.mxu0 0
        %2009 = vmatpush1.bf16.msra.mxu0 0
        %2010 = vmatprep.subr.bf16.mxu0 0
        %2011 = vmatpush1.bf16.msra.mxu0 0
        %2012 = vmatprep.subr.bf16.mxu0 0
        %2013 = vmatpush1.bf16.msra.mxu0 0
        %2014 = vmatprep.subr.bf16.mxu0 0
        %2015 = vmatpush1.bf16.msra.mxu0 0
        %2016 = vmatprep.subr.bf16.mxu0 0
        %2017 = vmatpush1.bf16.msra.mxu0 0
        %2018 = vmatprep.subr.bf16.mxu0 0
        %2019 = vmatpush1.bf16.msra.mxu0 0
        %2020 = vmatprep.subr.bf16.mxu0 0
        %2021 = vmatpush1.bf16.msra.mxu0 0
        %2022 = vmatprep.subr.bf16.mxu0 0
        %2023 = vmatpush1.bf16.msra.mxu0 0
        %2024 = vmatprep.mubr.bf16.mxu0 0
        %2025 = vmatmul.mubr.bf16.gmra.mrb[0].mxu0 %v1861
        %v2026 = vpop.f32.mrb[0].mxu0
        %v2027 = vadd.f32 %v1847, %v2026
        %v2028 = vpop.f32.mrb[0].mxu0
        %v2029 = vadd.f32 %v1849, %v2028
        %v2030 = vpop.f32.mrb[0].mxu0
        %v2031 = vadd.f32 %v1851, %v2030
        %v2032 = vpop.f32.mrb[0].mxu0
        %v2033 = vadd.f32 %v1853, %v2032
        %2034 = vdwg.mxu0
        %v2035 = vld [vmem:[%s9] sm:$0xff]
        %v2036 = vld [vmem:[%s9 + $0x8] sm:$0xff]
        %2038 = vset.pattern.permute.xlu0 0
        %2039 = vperm.xlu0 %2038, %v2035
        %v2040 = vpop.permute.xlu0 %2039
        %2043 = vset.pattern.permute.xlu0 0
        %2044 = vperm.xlu0 %2043, %v2036
        %v2045 = vpop.permute.xlu0 %2044
        %v2047 = vadd.f32 %v1898, %v2040
        %v2048 = vadd.f32 %v1900, %v2040
        %v2049 = vadd.f32 %v1941, %v2040
        %v2050 = vadd.f32 %v1943, %v2040
        %v2051 = vadd.f32 %v1984, %v2040
        %v2052 = vadd.f32 %v1986, %v2040
        %v2053 = vadd.f32 %v2027, %v2040
        %v2054 = vadd.f32 %v2029, %v2040
        %v2055 = vadd.f32 %v1902, %v2045
        %v2056 = vadd.f32 %v1904, %v2045
        %v2057 = vadd.f32 %v1945, %v2045
        %v2058 = vadd.f32 %v1947, %v2045
        %v2059 = vadd.f32 %v1988, %v2045
        %v2060 = vadd.f32 %v1990, %v2045
        %v2061 = vadd.f32 %v2031, %v2045
        %v2062 = vadd.f32 %v2033, %v2045
        %s2063 = scalar_lea.vmem %s2, 24
        %v2064 = vld [vmem:[%s2063] sm:$0xf]
        %v2065 = vld [vmem:[%s2063 + $0x4] sm:$0xf]
        %v2066 = vld [vmem:[%s2063 + $0x8] sm:$0xf]
        %v2067 = vld [vmem:[%s2063 + $0xc] sm:$0xf]
        %v2068 = vld [vmem:[%s2063 + $0x10] sm:$0xf]
        %v2069 = vld [vmem:[%s2063 + $0x14] sm:$0xf]
        %v2070 = vpack.c.bf16 %v2047, %v2047
        %v2071 = vpack.c.bf16 %v2048, %v2048
        %v2072 = vpack.c.bf16 %v2049, %v2049
        %v2073 = vpack.c.bf16 %v2050, %v2050
        %v2074 = vpack.c.bf16 %v2051, %v2051
        %v2075 = vpack.c.bf16 %v2052, %v2052
        %v2076 = vpack.c.bf16 %v2053, %v2053
        %v2077 = vpack.c.bf16 %v2054, %v2054
        %v2084 = vunpack.c.l.b16 %v2064
        %v2085 = vunpack.c.l.b16 %v2065
        %v2086 = vunpack.c.l.b16 %v2066
        %v2087 = vunpack.c.l.b16 %v2067
        %v2088 = vunpack.c.l.b16 %v2068
        %v2089 = vunpack.c.l.b16 %v2069
        %v2090 = vpack.c.b16 %v2085, %v2084
        %v2091 = vpack.c.b16 %v2087, %v2086
        %v2092 = vpack.c.b16 %v2089, %v2088
        %v2094 = vsel %vm929, %v2090, 0
        %v2097 = vsel %vm929, %v2091, 0
        %v2100 = vsel %vm929, %v2092, 0
        %v2103 = vsel %vm939, %v2070, 0
        %v2106 = vsel %vm939, %v2071, 0
        %v2109 = vsel %vm939, %v2072, 0
        %v2112 = vsel %vm939, %v2073, 0
        %v2115 = vsel %vm939, %v2074, 0
        %v2118 = vsel %vm939, %v2075, 0
        %v2121 = vsel %vm939, %v2076, 0
        %v2124 = vsel %vm939, %v2077, 0
        %2126 = vmatprep.subr.bf16.mxu0 %v2106
        %2127 = vmatpush1.bf16.msra.mxu0 %v2103
        %2128 = vmatprep.subr.bf16.mxu0 0
        %2129 = vmatpush1.bf16.msra.mxu0 0
        %2130 = vmatprep.subr.bf16.mxu0 0
        %2131 = vmatpush1.bf16.msra.mxu0 0
        %2132 = vmatprep.subr.bf16.mxu0 0
        %2133 = vmatpush1.bf16.msra.mxu0 0
        %2134 = vmatprep.subr.bf16.mxu0 0
        %2135 = vmatpush1.bf16.msra.mxu0 0
        %2136 = vmatprep.subr.bf16.mxu0 0
        %2137 = vmatpush1.bf16.msra.mxu0 0
        %2138 = vmatprep.subr.bf16.mxu0 0
        %2139 = vmatpush1.bf16.msra.mxu0 0
        %2140 = vmatprep.subr.bf16.mxu0 0
        %2141 = vmatpush1.bf16.msra.mxu0 0
        %2142 = vmatprep.subr.bf16.mxu0 0
        %2143 = vmatpush1.bf16.msra.mxu0 0
        %2144 = vmatprep.subr.bf16.mxu0 0
        %2145 = vmatpush1.bf16.msra.mxu0 0
        %2146 = vmatprep.subr.bf16.mxu0 0
        %2147 = vmatpush1.bf16.msra.mxu0 0
        %2148 = vmatprep.subr.bf16.mxu0 0
        %2149 = vmatpush1.bf16.msra.mxu0 0
        %2150 = vmatprep.subr.bf16.mxu0 0
        %2151 = vmatpush1.bf16.msra.mxu0 0
        %2152 = vmatprep.subr.bf16.mxu0 0
        %2153 = vmatpush1.bf16.msra.mxu0 0
        %2154 = vmatprep.subr.bf16.mxu0 0
        %2155 = vmatpush1.bf16.msra.mxu0 0
        %2156 = vmatprep.subr.bf16.mxu0 0
        %2157 = vmatpush1.bf16.msra.mxu0 0
        %2158 = vmatprep.mubr.bf16.mxu0 0
        %2159 = vmatmul.mubr.bf16.gmra.mrb[0].mxu0 %v2094
        %v2160 = vpop.f32.mrb[0].mxu0
        %v2161 = vadd.f32 %v593, %v2160
        %v2162 = vpop.f32.mrb[0].mxu0
        %v2163 = vadd.f32 %v595, %v2162
        %v2164 = vpop.f32.mrb[0].mxu0
        %v2165 = vadd.f32 %v597, %v2164
        %v2166 = vpop.f32.mrb[0].mxu0
        %v2167 = vadd.f32 %v599, %v2166
        %2168 = vmatprep.mubr.bf16.mxu0 0
        %2169 = vmatmul.mubr.bf16.gmra.mrb[0].mxu0 %v2097
        %v2170 = vpop.f32.mrb[0].mxu0
        %v2171 = vadd.f32 %v603, %v2170
        %v2172 = vpop.f32.mrb[0].mxu0
        %v2173 = vadd.f32 %v605, %v2172
        %v2174 = vpop.f32.mrb[0].mxu0
        %v2175 = vadd.f32 %v607, %v2174
        %v2176 = vpop.f32.mrb[0].mxu0
        %v2177 = vadd.f32 %v609, %v2176
        %2178 = vmatprep.mubr.bf16.mxu0 0
        %2179 = vmatmul.mubr.bf16.gmra.mrb[0].mxu0 %v2100
        %v2180 = vpop.f32.mrb[0].mxu0
        %v2181 = vadd.f32 %v613, %v2180
        %v2182 = vpop.f32.mrb[0].mxu0
        %v2183 = vadd.f32 %v615, %v2182
        %v2184 = vpop.f32.mrb[0].mxu0
        %v2185 = vadd.f32 %v617, %v2184
        %v2186 = vpop.f32.mrb[0].mxu0
        %v2187 = vadd.f32 %v619, %v2186
        %2188 = vdwg.mxu0
        %2189 = vmatprep.subr.bf16.mxu0 %v2112
        %2190 = vmatpush1.bf16.msra.mxu0 %v2109
        %2191 = vmatprep.subr.bf16.mxu0 0
        %2192 = vmatpush1.bf16.msra.mxu0 0
        %2193 = vmatprep.subr.bf16.mxu0 0
        %2194 = vmatpush1.bf16.msra.mxu0 0
        %2195 = vmatprep.subr.bf16.mxu0 0
        %2196 = vmatpush1.bf16.msra.mxu0 0
        %2197 = vmatprep.subr.bf16.mxu0 0
        %2198 = vmatpush1.bf16.msra.mxu0 0
        %2199 = vmatprep.subr.bf16.mxu0 0
        %2200 = vmatpush1.bf16.msra.mxu0 0
        %2201 = vmatprep.subr.bf16.mxu0 0
        %2202 = vmatpush1.bf16.msra.mxu0 0
        %2203 = vmatprep.subr.bf16.mxu0 0
        %2204 = vmatpush1.bf16.msra.mxu0 0
        %2205 = vmatprep.subr.bf16.mxu0 0
        %2206 = vmatpush1.bf16.msra.mxu0 0
        %2207 = vmatprep.subr.bf16.mxu0 0
        %2208 = vmatpush1.bf16.msra.mxu0 0
        %2209 = vmatprep.subr.bf16.mxu0 0
        %2210 = vmatpush1.bf16.msra.mxu0 0
        %2211 = vmatprep.subr.bf16.mxu0 0
        %2212 = vmatpush1.bf16.msra.mxu0 0
        %2213 = vmatprep.subr.bf16.mxu0 0
        %2214 = vmatpush1.bf16.msra.mxu0 0
        %2215 = vmatprep.subr.bf16.mxu0 0
        %2216 = vmatpush1.bf16.msra.mxu0 0
        %2217 = vmatprep.subr.bf16.mxu0 0
        %2218 = vmatpush1.bf16.msra.mxu0 0
        %2219 = vmatprep.subr.bf16.mxu0 0
        %2220 = vmatpush1.bf16.msra.mxu0 0
        %2221 = vmatprep.mubr.bf16.mxu0 0
        %2222 = vmatmul.mubr.bf16.gmra.mrb[0].mxu0 %v2094
        %v2223 = vpop.f32.mrb[0].mxu0
        %v2224 = vadd.f32 %v686, %v2223
        %v2225 = vpop.f32.mrb[0].mxu0
        %v2226 = vadd.f32 %v688, %v2225
        %v2227 = vpop.f32.mrb[0].mxu0
        %v2228 = vadd.f32 %v690, %v2227
        %v2229 = vpop.f32.mrb[0].mxu0
        %v2230 = vadd.f32 %v692, %v2229
        %2231 = vmatprep.mubr.bf16.mxu0 0
        %2232 = vmatmul.mubr.bf16.gmra.mrb[0].mxu0 %v2097
        %v2233 = vpop.f32.mrb[0].mxu0
        %v2234 = vadd.f32 %v696, %v2233
        %v2235 = vpop.f32.mrb[0].mxu0
        %v2236 = vadd.f32 %v698, %v2235
        %v2237 = vpop.f32.mrb[0].mxu0
        %v2238 = vadd.f32 %v700, %v2237
        %v2239 = vpop.f32.mrb[0].mxu0
        %v2240 = vadd.f32 %v702, %v2239
        %2241 = vmatprep.mubr.bf16.mxu0 0
        %2242 = vmatmul.mubr.bf16.gmra.mrb[0].mxu0 %v2100
        %v2243 = vpop.f32.mrb[0].mxu0
        %v2244 = vadd.f32 %v706, %v2243
        %v2245 = vpop.f32.mrb[0].mxu0
        %v2246 = vadd.f32 %v708, %v2245
        %v2247 = vpop.f32.mrb[0].mxu0
        %v2248 = vadd.f32 %v710, %v2247
        %v2249 = vpop.f32.mrb[0].mxu0
        %v2250 = vadd.f32 %v712, %v2249
        %2251 = vdwg.mxu0
        %2252 = vmatprep.subr.bf16.mxu0 %v2118
        %2253 = vmatpush1.bf16.msra.mxu0 %v2115
        %2254 = vmatprep.subr.bf16.mxu0 0
        %2255 = vmatpush1.bf16.msra.mxu0 0
        %2256 = vmatprep.subr.bf16.mxu0 0
        %2257 = vmatpush1.bf16.msra.mxu0 0
        %2258 = vmatprep.subr.bf16.mxu0 0
        %2259 = vmatpush1.bf16.msra.mxu0 0
        %2260 = vmatprep.subr.bf16.mxu0 0
        %2261 = vmatpush1.bf16.msra.mxu0 0
        %2262 = vmatprep.subr.bf16.mxu0 0
        %2263 = vmatpush1.bf16.msra.mxu0 0
        %2264 = vmatprep.subr.bf16.mxu0 0
        %2265 = vmatpush1.bf16.msra.mxu0 0
        %2266 = vmatprep.subr.bf16.mxu0 0
        %2267 = vmatpush1.bf16.msra.mxu0 0
        %2268 = vmatprep.subr.bf16.mxu0 0
        %2269 = vmatpush1.bf16.msra.mxu0 0
        %2270 = vmatprep.subr.bf16.mxu0 0
        %2271 = vmatpush1.bf16.msra.mxu0 0
        %2272 = vmatprep.subr.bf16.mxu0 0
        %2273 = vmatpush1.bf16.msra.mxu0 0
        %2274 = vmatprep.subr.bf16.mxu0 0
        %2275 = vmatpush1.bf16.msra.mxu0 0
        %2276 = vmatprep.subr.bf16.mxu0 0
        %2277 = vmatpush1.bf16.msra.mxu0 0
        %2278 = vmatprep.subr.bf16.mxu0 0
        %2279 = vmatpush1.bf16.msra.mxu0 0
        %2280 = vmatprep.subr.bf16.mxu0 0
        %2281 = vmatpush1.bf16.msra.mxu0 0
        %2282 = vmatprep.subr.bf16.mxu0 0
        %2283 = vmatpush1.bf16.msra.mxu0 0
        %2284 = vmatprep.mubr.bf16.mxu0 0
        %2285 = vmatmul.mubr.bf16.gmra.mrb[0].mxu0 %v2094
        %v2286 = vpop.f32.mrb[0].mxu0
        %v2287 = vadd.f32 %v779, %v2286
        %v2288 = vpop.f32.mrb[0].mxu0
        %v2289 = vadd.f32 %v781, %v2288
        %v2290 = vpop.f32.mrb[0].mxu0
        %v2291 = vadd.f32 %v783, %v2290
        %v2292 = vpop.f32.mrb[0].mxu0
        %v2293 = vadd.f32 %v785, %v2292
        %2294 = vmatprep.mubr.bf16.mxu0 0
        %2295 = vmatmul.mubr.bf16.gmra.mrb[0].mxu0 %v2097
        %v2296 = vpop.f32.mrb[0].mxu0
        %v2297 = vadd.f32 %v789, %v2296
        %v2298 = vpop.f32.mrb[0].mxu0
        %v2299 = vadd.f32 %v791, %v2298
        %v2300 = vpop.f32.mrb[0].mxu0
        %v2301 = vadd.f32 %v793, %v2300
        %v2302 = vpop.f32.mrb[0].mxu0
        %v2303 = vadd.f32 %v795, %v2302
        %2304 = vmatprep.mubr.bf16.mxu0 0
        %2305 = vmatmul.mubr.bf16.gmra.mrb[0].mxu0 %v2100
        %v2306 = vpop.f32.mrb[0].mxu0
        %v2307 = vadd.f32 %v799, %v2306
        %v2308 = vpop.f32.mrb[0].mxu0
        %v2309 = vadd.f32 %v801, %v2308
        %v2310 = vpop.f32.mrb[0].mxu0
        %v2311 = vadd.f32 %v803, %v2310
        %v2312 = vpop.f32.mrb[0].mxu0
        %v2313 = vadd.f32 %v805, %v2312
        %2314 = vdwg.mxu0
        %2315 = vmatprep.subr.bf16.mxu0 %v2124
        %2316 = vmatpush1.bf16.msra.mxu0 %v2121
        %2317 = vmatprep.subr.bf16.mxu0 0
        %2318 = vmatpush1.bf16.msra.mxu0 0
        %2319 = vmatprep.subr.bf16.mxu0 0
        %2320 = vmatpush1.bf16.msra.mxu0 0
        %2321 = vmatprep.subr.bf16.mxu0 0
        %2322 = vmatpush1.bf16.msra.mxu0 0
        %2323 = vmatprep.subr.bf16.mxu0 0
        %2324 = vmatpush1.bf16.msra.mxu0 0
        %2325 = vmatprep.subr.bf16.mxu0 0
        %2326 = vmatpush1.bf16.msra.mxu0 0
        %2327 = vmatprep.subr.bf16.mxu0 0
        %2328 = vmatpush1.bf16.msra.mxu0 0
        %2329 = vmatprep.subr.bf16.mxu0 0
        %2330 = vmatpush1.bf16.msra.mxu0 0
        %2331 = vmatprep.subr.bf16.mxu0 0
        %2332 = vmatpush1.bf16.msra.mxu0 0
        %2333 = vmatprep.subr.bf16.mxu0 0
        %2334 = vmatpush1.bf16.msra.mxu0 0
        %2335 = vmatprep.subr.bf16.mxu0 0
        %2336 = vmatpush1.bf16.msra.mxu0 0
        %2337 = vmatprep.subr.bf16.mxu0 0
        %2338 = vmatpush1.bf16.msra.mxu0 0
        %2339 = vmatprep.subr.bf16.mxu0 0
        %2340 = vmatpush1.bf16.msra.mxu0 0
        %2341 = vmatprep.subr.bf16.mxu0 0
        %2342 = vmatpush1.bf16.msra.mxu0 0
        %2343 = vmatprep.subr.bf16.mxu0 0
        %2344 = vmatpush1.bf16.msra.mxu0 0
        %2345 = vmatprep.subr.bf16.mxu0 0
        %2346 = vmatpush1.bf16.msra.mxu0 0
        %2347 = vmatprep.mubr.bf16.mxu0 0
        %2348 = vmatmul.mubr.bf16.gmra.mrb[0].mxu0 %v2094
        %v2349 = vpop.f32.mrb[0].mxu0
        %v2350 = vadd.f32 %v872, %v2349
        %v2351 = vpop.f32.mrb[0].mxu0
        %v2352 = vadd.f32 %v874, %v2351
        %v2353 = vpop.f32.mrb[0].mxu0
        %v2354 = vadd.f32 %v876, %v2353
        %v2355 = vpop.f32.mrb[0].mxu0
        %v2356 = vadd.f32 %v878, %v2355
        %2357 = vmatprep.mubr.bf16.mxu0 0
        %2358 = vmatmul.mubr.bf16.gmra.mrb[0].mxu0 %v2097
        %v2359 = vpop.f32.mrb[0].mxu0
        %v2360 = vadd.f32 %v882, %v2359
        %v2361 = vpop.f32.mrb[0].mxu0
        %v2362 = vadd.f32 %v884, %v2361
        %v2363 = vpop.f32.mrb[0].mxu0
        %v2364 = vadd.f32 %v886, %v2363
        %v2365 = vpop.f32.mrb[0].mxu0
        %v2366 = vadd.f32 %v888, %v2365
        %2367 = vmatprep.mubr.bf16.mxu0 0
        %2368 = vmatmul.mubr.bf16.gmra.mrb[0].mxu0 %v2100
        %v2369 = vpop.f32.mrb[0].mxu0
        %v2370 = vadd.f32 %v892, %v2369
        %v2371 = vpop.f32.mrb[0].mxu0
        %v2372 = vadd.f32 %v894, %v2371
        %v2373 = vpop.f32.mrb[0].mxu0
        %v2374 = vadd.f32 %v896, %v2373
        %v2375 = vpop.f32.mrb[0].mxu0
        %v2376 = vadd.f32 %v898, %v2375
        %2377 = vdwg.mxu0
        %s2378 = scalar_lea.vmem %s4, 48
        %v2379 = vld [vmem:[%s2378] sm:$0xff]
        %v2380 = vld [vmem:[%s2378 + $0x8] sm:$0xff]
        %v2381 = vld [vmem:[%s2378 + $0x10] sm:$0xff]
        %v2382 = vld [vmem:[%s2378 + $0x18] sm:$0xff]
        %v2383 = vld [vmem:[%s2378 + $0x20] sm:$0xff]
        %v2384 = vld [vmem:[%s2378 + $0x28] sm:$0xff]
        %2386 = vset.pattern.permute.xlu0 0
        %2387 = vperm.xlu0 %2386, %v2379
        %v2388 = vpop.permute.xlu0 %2387
        %2391 = vset.pattern.permute.xlu0 0
        %2392 = vperm.xlu0 %2391, %v2380
        %v2393 = vpop.permute.xlu0 %2392
        %2396 = vset.pattern.permute.xlu0 0
        %2397 = vperm.xlu0 %2396, %v2381
        %v2398 = vpop.permute.xlu0 %2397
        %2401 = vset.pattern.permute.xlu0 0
        %2402 = vperm.xlu0 %2401, %v2382
        %v2403 = vpop.permute.xlu0 %2402
        %2406 = vset.pattern.permute.xlu0 0
        %2407 = vperm.xlu0 %2406, %v2383
        %v2408 = vpop.permute.xlu0 %2407
        %2411 = vset.pattern.permute.xlu0 0
        %2412 = vperm.xlu0 %2411, %v2384
        %v2413 = vpop.permute.xlu0 %2412
        %v2415 = vadd.f32 %v2161, %v2388
        %v2416 = vadd.f32 %v2163, %v2388
        %v2417 = vadd.f32 %v2224, %v2388
        %v2418 = vadd.f32 %v2226, %v2388
        %v2419 = vadd.f32 %v2287, %v2388
        %v2420 = vadd.f32 %v2289, %v2388
        %v2421 = vadd.f32 %v2350, %v2388
        %v2422 = vadd.f32 %v2352, %v2388
        %v2423 = vadd.f32 %v2165, %v2393
        %v2424 = vadd.f32 %v2167, %v2393
        %v2425 = vadd.f32 %v2228, %v2393
        %v2426 = vadd.f32 %v2230, %v2393
        %v2427 = vadd.f32 %v2291, %v2393
        %v2428 = vadd.f32 %v2293, %v2393
        %v2429 = vadd.f32 %v2354, %v2393
        %v2430 = vadd.f32 %v2356, %v2393
        %v2431 = vadd.f32 %v2171, %v2398
        %v2432 = vadd.f32 %v2173, %v2398
        %v2433 = vadd.f32 %v2234, %v2398
        %v2434 = vadd.f32 %v2236, %v2398
        %v2435 = vadd.f32 %v2297, %v2398
        %v2436 = vadd.f32 %v2299, %v2398
        %v2437 = vadd.f32 %v2360, %v2398
        %v2438 = vadd.f32 %v2362, %v2398
        %v2439 = vadd.f32 %v2175, %v2403
        %v2440 = vadd.f32 %v2177, %v2403
        %v2441 = vadd.f32 %v2238, %v2403
        %v2442 = vadd.f32 %v2240, %v2403
        %v2443 = vadd.f32 %v2301, %v2403
        %v2444 = vadd.f32 %v2303, %v2403
        %v2445 = vadd.f32 %v2364, %v2403
        %v2446 = vadd.f32 %v2366, %v2403
        %v2447 = vadd.f32 %v2181, %v2408
        %v2448 = vadd.f32 %v2183, %v2408
        %v2449 = vadd.f32 %v2244, %v2408
        %v2450 = vadd.f32 %v2246, %v2408
        %v2451 = vadd.f32 %v2307, %v2408
        %v2452 = vadd.f32 %v2309, %v2408
        %v2453 = vadd.f32 %v2370, %v2408
        %v2454 = vadd.f32 %v2372, %v2408
        %v2455 = vadd.f32 %v2185, %v2413
        %v2456 = vadd.f32 %v2187, %v2413
        %v2457 = vadd.f32 %v2248, %v2413
        %v2458 = vadd.f32 %v2250, %v2413
        %v2459 = vadd.f32 %v2311, %v2413
        %v2460 = vadd.f32 %v2313, %v2413
        %v2461 = vadd.f32 %v2374, %v2413
        %v2462 = vadd.f32 %v2376, %v2413
        %v2463 = vmax.f32 %v2415, 0.0
        %v2464 = vmax.f32 %v2416, 0.0
        %v2465 = vmax.f32 %v2417, 0.0
        %v2466 = vmax.f32 %v2418, 0.0
        %v2467 = vmax.f32 %v2419, 0.0
        %v2468 = vmax.f32 %v2420, 0.0
        %v2469 = vmax.f32 %v2421, 0.0
        %v2470 = vmax.f32 %v2422, 0.0
        %v2471 = vmax.f32 %v2423, 0.0
        %v2472 = vmax.f32 %v2424, 0.0
        %v2473 = vmax.f32 %v2425, 0.0
        %v2474 = vmax.f32 %v2426, 0.0
        %v2475 = vmax.f32 %v2427, 0.0
        %v2476 = vmax.f32 %v2428, 0.0
        %v2477 = vmax.f32 %v2429, 0.0
        %v2478 = vmax.f32 %v2430, 0.0
        %v2479 = vmax.f32 %v2431, 0.0
        %v2480 = vmax.f32 %v2432, 0.0
        %v2481 = vmax.f32 %v2433, 0.0
        %v2482 = vmax.f32 %v2434, 0.0
        %v2483 = vmax.f32 %v2435, 0.0
        %v2484 = vmax.f32 %v2436, 0.0
        %v2485 = vmax.f32 %v2437, 0.0
        %v2486 = vmax.f32 %v2438, 0.0
        %v2487 = vmax.f32 %v2439, 0.0
        %v2488 = vmax.f32 %v2440, 0.0
        %v2489 = vmax.f32 %v2441, 0.0
        %v2490 = vmax.f32 %v2442, 0.0
        %v2491 = vmax.f32 %v2443, 0.0
        %v2492 = vmax.f32 %v2444, 0.0
        %v2493 = vmax.f32 %v2445, 0.0
        %v2494 = vmax.f32 %v2446, 0.0
        %v2495 = vmax.f32 %v2447, 0.0
        %v2496 = vmax.f32 %v2448, 0.0
        %v2497 = vmax.f32 %v2449, 0.0
        %v2498 = vmax.f32 %v2450, 0.0
        %v2499 = vmax.f32 %v2451, 0.0
        %v2500 = vmax.f32 %v2452, 0.0
        %v2501 = vmax.f32 %v2453, 0.0
        %v2502 = vmax.f32 %v2454, 0.0
        %v2503 = vmax.f32 %v2455, 0.0
        %v2504 = vmax.f32 %v2456, 0.0
        %v2505 = vmax.f32 %v2457, 0.0
        %v2506 = vmax.f32 %v2458, 0.0
        %v2507 = vmax.f32 %v2459, 0.0
        %v2508 = vmax.f32 %v2460, 0.0
        %v2509 = vmax.f32 %v2461, 0.0
        %v2510 = vmax.f32 %v2462, 0.0
        %v2511 = vpack.c.bf16 %v2471, %v2463
        %v2512 = vpack.c.bf16 %v2472, %v2464
        %v2513 = vpack.c.bf16 %v2473, %v2465
        %v2514 = vpack.c.bf16 %v2474, %v2466
        %v2515 = vpack.c.bf16 %v2475, %v2467
        %v2516 = vpack.c.bf16 %v2476, %v2468
        %v2517 = vpack.c.bf16 %v2477, %v2469
        %v2518 = vpack.c.bf16 %v2478, %v2470
        %v2519 = vpack.c.bf16 %v2487, %v2479
        %v2520 = vpack.c.bf16 %v2488, %v2480
        %v2521 = vpack.c.bf16 %v2489, %v2481
        %v2522 = vpack.c.bf16 %v2490, %v2482
        %v2523 = vpack.c.bf16 %v2491, %v2483
        %v2524 = vpack.c.bf16 %v2492, %v2484
        %v2525 = vpack.c.bf16 %v2493, %v2485
        %v2526 = vpack.c.bf16 %v2494, %v2486
        %v2527 = vpack.c.bf16 %v2503, %v2495
        %v2528 = vpack.c.bf16 %v2504, %v2496
        %v2529 = vpack.c.bf16 %v2505, %v2497
        %v2530 = vpack.c.bf16 %v2506, %v2498
        %v2531 = vpack.c.bf16 %v2507, %v2499
        %v2532 = vpack.c.bf16 %v2508, %v2500
        %v2533 = vpack.c.bf16 %v2509, %v2501
        %v2534 = vpack.c.bf16 %v2510, %v2502
        %s2535 = scalar_lea.vmem %s5, 8
        %v2536 = vld [vmem:[%s2535] sm:$0xf]
        %v2537 = vld [vmem:[%s2535 + $0x4] sm:$0xf]
        %s2538 = scalar_lea.vmem %s6, 16
        %v2539 = vld [vmem:[%s2538] sm:$0xff]
        %v2540 = vld [vmem:[%s2538 + $0x8] sm:$0xff]
        %2542 = vset.pattern.permute.xlu0 0
        %2543 = vperm.xlu0 %2542, %v2539
        %v2544 = vpop.permute.xlu0 %2543
        %2547 = vset.pattern.permute.xlu0 0
        %2548 = vperm.xlu0 %2547, %v2540
        %v2549 = vpop.permute.xlu0 %2548
        %v2553 = vunpack.c.l.b16 %v2536
        %v2554 = vunpack.c.l.b16 %v2537
        %v2555 = vpack.c.b16 %v2554, %v2553
        %v2557 = vsel %vm1391, %v2555, 0
        %2559 = vmatprep.subr.bf16.mxu0 %v2512
        %2560 = vmatpush1.bf16.msra.mxu0 %v2511
        %2561 = vmatprep.subr.bf16.mxu0 %v2520
        %2562 = vmatpush1.bf16.msra.mxu0 %v2519
        %2563 = vmatprep.subr.bf16.mxu0 %v2528
        %2564 = vmatpush1.bf16.msra.mxu0 %v2527
        %2565 = vmatprep.subr.bf16.mxu0 0
        %2566 = vmatpush1.bf16.msra.mxu0 0
        %2567 = vmatprep.subr.bf16.mxu0 0
        %2568 = vmatpush1.bf16.msra.mxu0 0
        %2569 = vmatprep.subr.bf16.mxu0 0
        %2570 = vmatpush1.bf16.msra.mxu0 0
        %2571 = vmatprep.subr.bf16.mxu0 0
        %2572 = vmatpush1.bf16.msra.mxu0 0
        %2573 = vmatprep.subr.bf16.mxu0 0
        %2574 = vmatpush1.bf16.msra.mxu0 0
        %2575 = vmatprep.subr.bf16.mxu0 0
        %2576 = vmatpush1.bf16.msra.mxu0 0
        %2577 = vmatprep.subr.bf16.mxu0 0
        %2578 = vmatpush1.bf16.msra.mxu0 0
        %2579 = vmatprep.subr.bf16.mxu0 0
        %2580 = vmatpush1.bf16.msra.mxu0 0
        %2581 = vmatprep.subr.bf16.mxu0 0
        %2582 = vmatpush1.bf16.msra.mxu0 0
        %2583 = vmatprep.subr.bf16.mxu0 0
        %2584 = vmatpush1.bf16.msra.mxu0 0
        %2585 = vmatprep.subr.bf16.mxu0 0
        %2586 = vmatpush1.bf16.msra.mxu0 0
        %2587 = vmatprep.subr.bf16.mxu0 0
        %2588 = vmatpush1.bf16.msra.mxu0 0
        %2589 = vmatprep.subr.bf16.mxu0 0
        %2590 = vmatpush1.bf16.msra.mxu0 0
        %2591 = vmatprep.mubr.bf16.mxu0 0
        %2592 = vmatmul.mubr.bf16.gmra.mrb[0].mxu0 %v2557
        %v2593 = vpop.f32.mrb[0].mxu0
        %v2594 = vadd.f32 %v2544, %v2593
        %v2595 = vpop.f32.mrb[0].mxu0
        %v2596 = vadd.f32 %v2544, %v2595
        %v2597 = vpop.f32.mrb[0].mxu0
        %v2598 = vadd.f32 %v2549, %v2597
        %v2599 = vpop.f32.mrb[0].mxu0
        %v2600 = vadd.f32 %v2549, %v2599
        %2601 = vdwg.mxu0
        %2602 = vmatprep.subr.bf16.mxu0 %v2514
        %2603 = vmatpush1.bf16.msra.mxu0 %v2513
        %2604 = vmatprep.subr.bf16.mxu0 %v2522
        %2605 = vmatpush1.bf16.msra.mxu0 %v2521
        %2606 = vmatprep.subr.bf16.mxu0 %v2530
        %2607 = vmatpush1.bf16.msra.mxu0 %v2529
        %2608 = vmatprep.subr.bf16.mxu0 0
        %2609 = vmatpush1.bf16.msra.mxu0 0
        %2610 = vmatprep.subr.bf16.mxu0 0
        %2611 = vmatpush1.bf16.msra.mxu0 0
        %2612 = vmatprep.subr.bf16.mxu0 0
        %2613 = vmatpush1.bf16.msra.mxu0 0
        %2614 = vmatprep.subr.bf16.mxu0 0
        %2615 = vmatpush1.bf16.msra.mxu0 0
        %2616 = vmatprep.subr.bf16.mxu0 0
        %2617 = vmatpush1.bf16.msra.mxu0 0
        %2618 = vmatprep.subr.bf16.mxu0 0
        %2619 = vmatpush1.bf16.msra.mxu0 0
        %2620 = vmatprep.subr.bf16.mxu0 0
        %2621 = vmatpush1.bf16.msra.mxu0 0
        %2622 = vmatprep.subr.bf16.mxu0 0
        %2623 = vmatpush1.bf16.msra.mxu0 0
        %2624 = vmatprep.subr.bf16.mxu0 0
        %2625 = vmatpush1.bf16.msra.mxu0 0
        %2626 = vmatprep.subr.bf16.mxu0 0
        %2627 = vmatpush1.bf16.msra.mxu0 0
        %2628 = vmatprep.subr.bf16.mxu0 0
        %2629 = vmatpush1.bf16.msra.mxu0 0
        %2630 = vmatprep.subr.bf16.mxu0 0
        %2631 = vmatpush1.bf16.msra.mxu0 0
        %2632 = vmatprep.subr.bf16.mxu0 0
        %2633 = vmatpush1.bf16.msra.mxu0 0
        %2634 = vmatprep.mubr.bf16.mxu0 0
        %2635 = vmatmul.mubr.bf16.gmra.mrb[0].mxu0 %v2557
        %v2636 = vpop.f32.mrb[0].mxu0
        %v2637 = vadd.f32 %v2544, %v2636
        %v2638 = vpop.f32.mrb[0].mxu0
        %v2639 = vadd.f32 %v2544, %v2638
        %v2640 = vpop.f32.mrb[0].mxu0
        %v2641 = vadd.f32 %v2549, %v2640
        %v2642 = vpop.f32.mrb[0].mxu0
        %v2643 = vadd.f32 %v2549, %v2642
        %2644 = vdwg.mxu0
        %2645 = vmatprep.subr.bf16.mxu0 %v2516
        %2646 = vmatpush1.bf16.msra.mxu0 %v2515
        %2647 = vmatprep.subr.bf16.mxu0 %v2524
        %2648 = vmatpush1.bf16.msra.mxu0 %v2523
        %2649 = vmatprep.subr.bf16.mxu0 %v2532
        %2650 = vmatpush1.bf16.msra.mxu0 %v2531
        %2651 = vmatprep.subr.bf16.mxu0 0
        %2652 = vmatpush1.bf16.msra.mxu0 0
        %2653 = vmatprep.subr.bf16.mxu0 0
        %2654 = vmatpush1.bf16.msra.mxu0 0
        %2655 = vmatprep.subr.bf16.mxu0 0
        %2656 = vmatpush1.bf16.msra.mxu0 0
        %2657 = vmatprep.subr.bf16.mxu0 0
        %2658 = vmatpush1.bf16.msra.mxu0 0
        %2659 = vmatprep.subr.bf16.mxu0 0
        %2660 = vmatpush1.bf16.msra.mxu0 0
        %2661 = vmatprep.subr.bf16.mxu0 0
        %2662 = vmatpush1.bf16.msra.mxu0 0
        %2663 = vmatprep.subr.bf16.mxu0 0
        %2664 = vmatpush1.bf16.msra.mxu0 0
        %2665 = vmatprep.subr.bf16.mxu0 0
        %2666 = vmatpush1.bf16.msra.mxu0 0
        %2667 = vmatprep.subr.bf16.mxu0 0
        %2668 = vmatpush1.bf16.msra.mxu0 0
        %2669 = vmatprep.subr.bf16.mxu0 0
        %2670 = vmatpush1.bf16.msra.mxu0 0
        %2671 = vmatprep.subr.bf16.mxu0 0
        %2672 = vmatpush1.bf16.msra.mxu0 0
        %2673 = vmatprep.subr.bf16.mxu0 0
        %2674 = vmatpush1.bf16.msra.mxu0 0
        %2675 = vmatprep.subr.bf16.mxu0 0
        %2676 = vmatpush1.bf16.msra.mxu0 0
        %2677 = vmatprep.mubr.bf16.mxu0 0
        %2678 = vmatmul.mubr.bf16.gmra.mrb[0].mxu0 %v2557
        %v2679 = vpop.f32.mrb[0].mxu0
        %v2680 = vadd.f32 %v2544, %v2679
        %v2681 = vpop.f32.mrb[0].mxu0
        %v2682 = vadd.f32 %v2544, %v2681
        %v2683 = vpop.f32.mrb[0].mxu0
        %v2684 = vadd.f32 %v2549, %v2683
        %v2685 = vpop.f32.mrb[0].mxu0
        %v2686 = vadd.f32 %v2549, %v2685
        %2687 = vdwg.mxu0
        %2688 = vmatprep.subr.bf16.mxu0 %v2518
        %2689 = vmatpush1.bf16.msra.mxu0 %v2517
        %2690 = vmatprep.subr.bf16.mxu0 %v2526
        %2691 = vmatpush1.bf16.msra.mxu0 %v2525
        %2692 = vmatprep.subr.bf16.mxu0 %v2534
        %2693 = vmatpush1.bf16.msra.mxu0 %v2533
        %2694 = vmatprep.subr.bf16.mxu0 0
        %2695 = vmatpush1.bf16.msra.mxu0 0
        %2696 = vmatprep.subr.bf16.mxu0 0
        %2697 = vmatpush1.bf16.msra.mxu0 0
        %2698 = vmatprep.subr.bf16.mxu0 0
        %2699 = vmatpush1.bf16.msra.mxu0 0
        %2700 = vmatprep.subr.bf16.mxu0 0
        %2701 = vmatpush1.bf16.msra.mxu0 0
        %2702 = vmatprep.subr.bf16.mxu0 0
        %2703 = vmatpush1.bf16.msra.mxu0 0
        %2704 = vmatprep.subr.bf16.mxu0 0
        %2705 = vmatpush1.bf16.msra.mxu0 0
        %2706 = vmatprep.subr.bf16.mxu0 0
        %2707 = vmatpush1.bf16.msra.mxu0 0
        %2708 = vmatprep.subr.bf16.mxu0 0
        %2709 = vmatpush1.bf16.msra.mxu0 0
        %2710 = vmatprep.subr.bf16.mxu0 0
        %2711 = vmatpush1.bf16.msra.mxu0 0
        %2712 = vmatprep.subr.bf16.mxu0 0
        %2713 = vmatpush1.bf16.msra.mxu0 0
        %2714 = vmatprep.subr.bf16.mxu0 0
        %2715 = vmatpush1.bf16.msra.mxu0 0
        %2716 = vmatprep.subr.bf16.mxu0 0
        %2717 = vmatpush1.bf16.msra.mxu0 0
        %2718 = vmatprep.subr.bf16.mxu0 0
        %2719 = vmatpush1.bf16.msra.mxu0 0
        %2720 = vmatprep.mubr.bf16.mxu0 0
        %2721 = vmatmul.mubr.bf16.gmra.mrb[0].mxu0 %v2557
        %v2722 = vpop.f32.mrb[0].mxu0
        %v2723 = vadd.f32 %v2544, %v2722
        %v2724 = vpop.f32.mrb[0].mxu0
        %v2725 = vadd.f32 %v2544, %v2724
        %v2726 = vpop.f32.mrb[0].mxu0
        %v2727 = vadd.f32 %v2549, %v2726
        %v2728 = vpop.f32.mrb[0].mxu0
        %v2729 = vadd.f32 %v2549, %v2728
        %2730 = vdwg.mxu0
        %v2731 = vmul.f32 %v2594, 0.1
        %v2732 = vmul.f32 %v2596, 0.1
        %v2733 = vmul.f32 %v2637, 0.1
        %v2734 = vmul.f32 %v2639, 0.1
        %v2735 = vmul.f32 %v2680, 0.1
        %v2736 = vmul.f32 %v2682, 0.1
        %v2737 = vmul.f32 %v2723, 0.1
        %v2738 = vmul.f32 %v2725, 0.1
        %v2739 = vtanh.pop %v2731
        %v2740 = vtanh.pop %v2732
        %v2741 = vtanh.pop %v2733
        %v2742 = vtanh.pop %v2734
        %v2743 = vtanh.pop %v2735
        %v2744 = vtanh.pop %v2736
        %v2745 = vtanh.pop %v2737
        %v2746 = vtanh.pop %v2738
        %v2747 = vmul.f32 %v2739, 1.9
        %v2748 = vmul.f32 %v2740, 1.9
        %v2749 = vmul.f32 %v2741, 1.9
        %v2750 = vmul.f32 %v2742, 1.9
        %v2751 = vmul.f32 %v2743, 1.9
        %v2752 = vmul.f32 %v2744, 1.9
        %v2753 = vmul.f32 %v2745, 1.9
        %v2754 = vmul.f32 %v2746, 1.9
        %v2755 = vmul.f32 %v2747, 1.442695
        %v2756 = vpow.pop %v2755
        %v2757 = vmul.f32 %v2748, 1.442695
        %v2758 = vpow.pop %v2757
        %v2759 = vmul.f32 %v2749, 1.442695
        %v2760 = vpow.pop %v2759
        %v2761 = vmul.f32 %v2750, 1.442695
        %v2762 = vpow.pop %v2761
        %v2763 = vmul.f32 %v2751, 1.442695
        %v2764 = vpow.pop %v2763
        %v2765 = vmul.f32 %v2752, 1.442695
        %v2766 = vpow.pop %v2765
        %v2767 = vmul.f32 %v2753, 1.442695
        %v2768 = vpow.pop %v2767
        %v2769 = vmul.f32 %v2754, 1.442695
        %v2770 = vpow.pop %v2769
        %v2771 = vmul.f32 %v2055, %v2756
        %v2772 = vmul.f32 %v2056, %v2758
        %v2773 = vmul.f32 %v2057, %v2760
        %v2774 = vmul.f32 %v2058, %v2762
        %v2775 = vmul.f32 %v2059, %v2764
        %v2776 = vmul.f32 %v2060, %v2766
        %v2777 = vmul.f32 %v2061, %v2768
        %v2778 = vmul.f32 %v2062, %v2770
        %v2779 = vmul.f32 %v2598, 0.1
        %v2780 = vmul.f32 %v2600, 0.1
        %v2781 = vmul.f32 %v2641, 0.1
        %v2782 = vmul.f32 %v2643, 0.1
        %v2783 = vmul.f32 %v2684, 0.1
        %v2784 = vmul.f32 %v2686, 0.1
        %v2785 = vmul.f32 %v2727, 0.1
        %v2786 = vmul.f32 %v2729, 0.1
        %v2787 = vadd.f32 %v2771, %v2779
        %v2788 = vadd.f32 %v2772, %v2780
        %v2789 = vadd.f32 %v2773, %v2781
        %v2790 = vadd.f32 %v2774, %v2782
        %v2791 = vadd.f32 %v2775, %v2783
        %v2792 = vadd.f32 %v2776, %v2784
        %v2793 = vadd.f32 %v2777, %v2785
        %v2794 = vadd.f32 %v2778, %v2786
        %v2795 = vadd.f32 %v1631, %v2747
        %v2796 = vadd.f32 %v1632, %v2748
        %v2797 = vadd.f32 %v1633, %v2749
        %v2798 = vadd.f32 %v1634, %v2750
        %v2799 = vadd.f32 %v1635, %v2751
        %v2800 = vadd.f32 %v1636, %v2752
        %v2801 = vadd.f32 %v1637, %v2753
        %v2802 = vadd.f32 %v1638, %v2754
        %s2803 = scalar_lea.vmem %s7, 8
        %v2804 = vld [vmem:[%s2803] sm:$0xf]
        %v2805 = vld [vmem:[%s2803 + $0x4] sm:$0xf]
        %s2806 = scalar_lea.vmem %s8, 8
        %v2807 = vld [vmem:[%s2806] sm:$0xf]
        %v2808 = vld [vmem:[%s2806 + $0x4] sm:$0xf]
        %v2809 = vpack.c.bf16 %v2787, %v2787
        %v2810 = vpack.c.bf16 %v2788, %v2788
        %v2811 = vpack.c.bf16 %v2789, %v2789
        %v2812 = vpack.c.bf16 %v2790, %v2790
        %v2813 = vpack.c.bf16 %v2791, %v2791
        %v2814 = vpack.c.bf16 %v2792, %v2792
        %v2815 = vpack.c.bf16 %v2793, %v2793
        %v2816 = vpack.c.bf16 %v2794, %v2794
        %v2819 = vunpack.c.l.b16 %v2807
        %v2820 = vunpack.c.l.b16 %v2808
        %v2821 = vpack.c.b16 %v2820, %v2819
        %v2823 = vsel %vm929, %v2821, 0
        %v2826 = vsel %vm939, %v2809, 0
        %v2829 = vsel %vm939, %v2810, 0
        %v2832 = vsel %vm939, %v2811, 0
        %v2835 = vsel %vm939, %v2812, 0
        %v2838 = vsel %vm939, %v2813, 0
        %v2841 = vsel %vm939, %v2814, 0
        %v2844 = vsel %vm939, %v2815, 0
        %v2847 = vsel %vm939, %v2816, 0
        %2849 = vmatprep.subr.bf16.mxu0 %v2829
        %2850 = vmatpush1.bf16.msra.mxu0 %v2826
        %2851 = vmatprep.subr.bf16.mxu0 0
        %2852 = vmatpush1.bf16.msra.mxu0 0
        %2853 = vmatprep.subr.bf16.mxu0 0
        %2854 = vmatpush1.bf16.msra.mxu0 0
        %2855 = vmatprep.subr.bf16.mxu0 0
        %2856 = vmatpush1.bf16.msra.mxu0 0
        %2857 = vmatprep.subr.bf16.mxu0 0
        %2858 = vmatpush1.bf16.msra.mxu0 0
        %2859 = vmatprep.subr.bf16.mxu0 0
        %2860 = vmatpush1.bf16.msra.mxu0 0
        %2861 = vmatprep.subr.bf16.mxu0 0
        %2862 = vmatpush1.bf16.msra.mxu0 0
        %2863 = vmatprep.subr.bf16.mxu0 0
        %2864 = vmatpush1.bf16.msra.mxu0 0
        %2865 = vmatprep.subr.bf16.mxu0 0
        %2866 = vmatpush1.bf16.msra.mxu0 0
        %2867 = vmatprep.subr.bf16.mxu0 0
        %2868 = vmatpush1.bf16.msra.mxu0 0
        %2869 = vmatprep.subr.bf16.mxu0 0
        %2870 = vmatpush1.bf16.msra.mxu0 0
        %2871 = vmatprep.subr.bf16.mxu0 0
        %2872 = vmatpush1.bf16.msra.mxu0 0
        %2873 = vmatprep.subr.bf16.mxu0 0
        %2874 = vmatpush1.bf16.msra.mxu0 0
        %2875 = vmatprep.subr.bf16.mxu0 0
        %2876 = vmatpush1.bf16.msra.mxu0 0
        %2877 = vmatprep.subr.bf16.mxu0 0
        %2878 = vmatpush1.bf16.msra.mxu0 0
        %2879 = vmatprep.subr.bf16.mxu0 0
        %2880 = vmatpush1.bf16.msra.mxu0 0
        %2881 = vmatprep.mubr.bf16.mxu0 0
        %2882 = vmatmul.mubr.bf16.gmra.mrb[0].mxu0 %v2823
        %v2883 = vpop.f32.mrb[0].mxu0
        %v2884 = vadd.f32 0.0, %v2883
        %v2885 = vpop.f32.mrb[0].mxu0
        %v2886 = vadd.f32 0.0, %v2885
        %v2887 = vpop.f32.mrb[0].mxu0
        %v2888 = vadd.f32 0.0, %v2887
        %v2889 = vpop.f32.mrb[0].mxu0
        %v2890 = vadd.f32 0.0, %v2889
        %2891 = vdwg.mxu0
        %2892 = vmatprep.subr.bf16.mxu0 %v2835
        %2893 = vmatpush1.bf16.msra.mxu0 %v2832
        %2894 = vmatprep.subr.bf16.mxu0 0
        %2895 = vmatpush1.bf16.msra.mxu0 0
        %2896 = vmatprep.subr.bf16.mxu0 0
        %2897 = vmatpush1.bf16.msra.mxu0 0
        %2898 = vmatprep.subr.bf16.mxu0 0
        %2899 = vmatpush1.bf16.msra.mxu0 0
        %2900 = vmatprep.subr.bf16.mxu0 0
        %2901 = vmatpush1.bf16.msra.mxu0 0
        %2902 = vmatprep.subr.bf16.mxu0 0
        %2903 = vmatpush1.bf16.msra.mxu0 0
        %2904 = vmatprep.subr.bf16.mxu0 0
        %2905 = vmatpush1.bf16.msra.mxu0 0
        %2906 = vmatprep.subr.bf16.mxu0 0
        %2907 = vmatpush1.bf16.msra.mxu0 0
        %2908 = vmatprep.subr.bf16.mxu0 0
        %2909 = vmatpush1.bf16.msra.mxu0 0
        %2910 = vmatprep.subr.bf16.mxu0 0
        %2911 = vmatpush1.bf16.msra.mxu0 0
        %2912 = vmatprep.subr.bf16.mxu0 0
        %2913 = vmatpush1.bf16.msra.mxu0 0
        %2914 = vmatprep.subr.bf16.mxu0 0
        %2915 = vmatpush1.bf16.msra.mxu0 0
        %2916 = vmatprep.subr.bf16.mxu0 0
        %2917 = vmatpush1.bf16.msra.mxu0 0
        %2918 = vmatprep.subr.bf16.mxu0 0
        %2919 = vmatpush1.bf16.msra.mxu0 0
        %2920 = vmatprep.subr.bf16.mxu0 0
        %2921 = vmatpush1.bf16.msra.mxu0 0
        %2922 = vmatprep.subr.bf16.mxu0 0
        %2923 = vmatpush1.bf16.msra.mxu0 0
        %2924 = vmatprep.mubr.bf16.mxu0 0
        %2925 = vmatmul.mubr.bf16.gmra.mrb[0].mxu0 %v2823
        %v2926 = vpop.f32.mrb[0].mxu0
        %v2927 = vadd.f32 0.0, %v2926
        %v2928 = vpop.f32.mrb[0].mxu0
        %v2929 = vadd.f32 0.0, %v2928
        %v2930 = vpop.f32.mrb[0].mxu0
        %v2931 = vadd.f32 0.0, %v2930
        %v2932 = vpop.f32.mrb[0].mxu0
        %v2933 = vadd.f32 0.0, %v2932
        %2934 = vdwg.mxu0
        %2935 = vmatprep.subr.bf16.mxu0 %v2841
        %2936 = vmatpush1.bf16.msra.mxu0 %v2838
        %2937 = vmatprep.subr.bf16.mxu0 0
        %2938 = vmatpush1.bf16.msra.mxu0 0
        %2939 = vmatprep.subr.bf16.mxu0 0
        %2940 = vmatpush1.bf16.msra.mxu0 0
        %2941 = vmatprep.subr.bf16.mxu0 0
        %2942 = vmatpush1.bf16.msra.mxu0 0
        %2943 = vmatprep.subr.bf16.mxu0 0
        %2944 = vmatpush1.bf16.msra.mxu0 0
        %2945 = vmatprep.subr.bf16.mxu0 0
        %2946 = vmatpush1.bf16.msra.mxu0 0
        %2947 = vmatprep.subr.bf16.mxu0 0
        %2948 = vmatpush1.bf16.msra.mxu0 0
        %2949 = vmatprep.subr.bf16.mxu0 0
        %2950 = vmatpush1.bf16.msra.mxu0 0
        %2951 = vmatprep.subr.bf16.mxu0 0
        %2952 = vmatpush1.bf16.msra.mxu0 0
        %2953 = vmatprep.subr.bf16.mxu0 0
        %2954 = vmatpush1.bf16.msra.mxu0 0
        %2955 = vmatprep.subr.bf16.mxu0 0
        %2956 = vmatpush1.bf16.msra.mxu0 0
        %2957 = vmatprep.subr.bf16.mxu0 0
        %2958 = vmatpush1.bf16.msra.mxu0 0
        %2959 = vmatprep.subr.bf16.mxu0 0
        %2960 = vmatpush1.bf16.msra.mxu0 0
        %2961 = vmatprep.subr.bf16.mxu0 0
        %2962 = vmatpush1.bf16.msra.mxu0 0
        %2963 = vmatprep.subr.bf16.mxu0 0
        %2964 = vmatpush1.bf16.msra.mxu0 0
        %2965 = vmatprep.subr.bf16.mxu0 0
        %2966 = vmatpush1.bf16.msra.mxu0 0
        %2967 = vmatprep.mubr.bf16.mxu0 0
        %2968 = vmatmul.mubr.bf16.gmra.mrb[0].mxu0 %v2823
        %v2969 = vpop.f32.mrb[0].mxu0
        %v2970 = vadd.f32 0.0, %v2969
        %v2971 = vpop.f32.mrb[0].mxu0
        %v2972 = vadd.f32 0.0, %v2971
        %v2973 = vpop.f32.mrb[0].mxu0
        %v2974 = vadd.f32 0.0, %v2973
        %v2975 = vpop.f32.mrb[0].mxu0
        %v2976 = vadd.f32 0.0, %v2975
        %2977 = vdwg.mxu0
        %2978 = vmatprep.subr.bf16.mxu0 %v2847
        %2979 = vmatpush1.bf16.msra.mxu0 %v2844
        %2980 = vmatprep.subr.bf16.mxu0 0
        %2981 = vmatpush1.bf16.msra.mxu0 0
        %2982 = vmatprep.subr.bf16.mxu0 0
        %2983 = vmatpush1.bf16.msra.mxu0 0
        %2984 = vmatprep.subr.bf16.mxu0 0
        %2985 = vmatpush1.bf16.msra.mxu0 0
        %2986 = vmatprep.subr.bf16.mxu0 0
        %2987 = vmatpush1.bf16.msra.mxu0 0
        %2988 = vmatprep.subr.bf16.mxu0 0
        %2989 = vmatpush1.bf16.msra.mxu0 0
        %2990 = vmatprep.subr.bf16.mxu0 0
        %2991 = vmatpush1.bf16.msra.mxu0 0
        %2992 = vmatprep.subr.bf16.mxu0 0
        %2993 = vmatpush1.bf16.msra.mxu0 0
        %2994 = vmatprep.subr.bf16.mxu0 0
        %2995 = vmatpush1.bf16.msra.mxu0 0
        %2996 = vmatprep.subr.bf16.mxu0 0
        %2997 = vmatpush1.bf16.msra.mxu0 0
        %2998 = vmatprep.subr.bf16.mxu0 0
        %2999 = vmatpush1.bf16.msra.mxu0 0
        %3000 = vmatprep.subr.bf16.mxu0 0
        %3001 = vmatpush1.bf16.msra.mxu0 0
        %3002 = vmatprep.subr.bf16.mxu0 0
        %3003 = vmatpush1.bf16.msra.mxu0 0
        %3004 = vmatprep.subr.bf16.mxu0 0
        %3005 = vmatpush1.bf16.msra.mxu0 0
        %3006 = vmatprep.subr.bf16.mxu0 0
        %3007 = vmatpush1.bf16.msra.mxu0 0
        %3008 = vmatprep.subr.bf16.mxu0 0
        %3009 = vmatpush1.bf16.msra.mxu0 0
        %3010 = vmatprep.mubr.bf16.mxu0 0
        %3011 = vmatmul.mubr.bf16.gmra.mrb[0].mxu0 %v2823
        %v3012 = vpop.f32.mrb[0].mxu0
        %v3013 = vadd.f32 0.0, %v3012
        %v3014 = vpop.f32.mrb[0].mxu0
        %v3015 = vadd.f32 0.0, %v3014
        %v3016 = vpop.f32.mrb[0].mxu0
        %v3017 = vadd.f32 0.0, %v3016
        %v3018 = vpop.f32.mrb[0].mxu0
        %v3019 = vadd.f32 0.0, %v3018
        %3020 = vdwg.mxu0
        %v3023 = vunpack.c.l.b16 %v2804
        %v3024 = vunpack.c.l.b16 %v2805
        %v3025 = vpack.c.b16 %v3024, %v3023
        %v3027 = vsel %vm929, %v3025, 0
        %3029 = vmatprep.subr.bf16.mxu0 %v2106
        %3030 = vmatpush1.bf16.msra.mxu0 %v2103
        %3031 = vmatprep.subr.bf16.mxu0 0
        %3032 = vmatpush1.bf16.msra.mxu0 0
        %3033 = vmatprep.subr.bf16.mxu0 0
        %3034 = vmatpush1.bf16.msra.mxu0 0
        %3035 = vmatprep.subr.bf16.mxu0 0
        %3036 = vmatpush1.bf16.msra.mxu0 0
        %3037 = vmatprep.subr.bf16.mxu0 0
        %3038 = vmatpush1.bf16.msra.mxu0 0
        %3039 = vmatprep.subr.bf16.mxu0 0
        %3040 = vmatpush1.bf16.msra.mxu0 0
        %3041 = vmatprep.subr.bf16.mxu0 0
        %3042 = vmatpush1.bf16.msra.mxu0 0
        %3043 = vmatprep.subr.bf16.mxu0 0
        %3044 = vmatpush1.bf16.msra.mxu0 0
        %3045 = vmatprep.subr.bf16.mxu0 0
        %3046 = vmatpush1.bf16.msra.mxu0 0
        %3047 = vmatprep.subr.bf16.mxu0 0
        %3048 = vmatpush1.bf16.msra.mxu0 0
        %3049 = vmatprep.subr.bf16.mxu0 0
        %3050 = vmatpush1.bf16.msra.mxu0 0
        %3051 = vmatprep.subr.bf16.mxu0 0
        %3052 = vmatpush1.bf16.msra.mxu0 0
        %3053 = vmatprep.subr.bf16.mxu0 0
        %3054 = vmatpush1.bf16.msra.mxu0 0
        %3055 = vmatprep.subr.bf16.mxu0 0
        %3056 = vmatpush1.bf16.msra.mxu0 0
        %3057 = vmatprep.subr.bf16.mxu0 0
        %3058 = vmatpush1.bf16.msra.mxu0 0
        %3059 = vmatprep.subr.bf16.mxu0 0
        %3060 = vmatpush1.bf16.msra.mxu0 0
        %3061 = vmatprep.mubr.bf16.mxu0 0
        %3062 = vmatmul.mubr.bf16.gmra.mrb[0].mxu0 %v3027
        %v3063 = vpop.f32.mrb[0].mxu0
        %v3064 = vadd.f32 %v2884, %v3063
        %v3065 = vpop.f32.mrb[0].mxu0
        %v3066 = vadd.f32 %v2886, %v3065
        %v3067 = vpop.f32.mrb[0].mxu0
        %v3068 = vadd.f32 %v2888, %v3067
        %v3069 = vpop.f32.mrb[0].mxu0
        %v3070 = vadd.f32 %v2890, %v3069
        %3071 = vdwg.mxu0
        %3072 = vmatprep.subr.bf16.mxu0 %v2112
        %3073 = vmatpush1.bf16.msra.mxu0 %v2109
        %3074 = vmatprep.subr.bf16.mxu0 0
        %3075 = vmatpush1.bf16.msra.mxu0 0
        %3076 = vmatprep.subr.bf16.mxu0 0
        %3077 = vmatpush1.bf16.msra.mxu0 0
        %3078 = vmatprep.subr.bf16.mxu0 0
        %3079 = vmatpush1.bf16.msra.mxu0 0
        %3080 = vmatprep.subr.bf16.mxu0 0
        %3081 = vmatpush1.bf16.msra.mxu0 0
        %3082 = vmatprep.subr.bf16.mxu0 0
        %3083 = vmatpush1.bf16.msra.mxu0 0
        %3084 = vmatprep.subr.bf16.mxu0 0
        %3085 = vmatpush1.bf16.msra.mxu0 0
        %3086 = vmatprep.subr.bf16.mxu0 0
        %3087 = vmatpush1.bf16.msra.mxu0 0
        %3088 = vmatprep.subr.bf16.mxu0 0
        %3089 = vmatpush1.bf16.msra.mxu0 0
        %3090 = vmatprep.subr.bf16.mxu0 0
        %3091 = vmatpush1.bf16.msra.mxu0 0
        %3092 = vmatprep.subr.bf16.mxu0 0
        %3093 = vmatpush1.bf16.msra.mxu0 0
        %3094 = vmatprep.subr.bf16.mxu0 0
        %3095 = vmatpush1.bf16.msra.mxu0 0
        %3096 = vmatprep.subr.bf16.mxu0 0
        %3097 = vmatpush1.bf16.msra.mxu0 0
        %3098 = vmatprep.subr.bf16.mxu0 0
        %3099 = vmatpush1.bf16.msra.mxu0 0
        %3100 = vmatprep.subr.bf16.mxu0 0
        %3101 = vmatpush1.bf16.msra.mxu0 0
        %3102 = vmatprep.subr.bf16.mxu0 0
        %3103 = vmatpush1.bf16.msra.mxu0 0
        %3104 = vmatprep.mubr.bf16.mxu0 0
        %3105 = vmatmul.mubr.bf16.gmra.mrb[0].mxu0 %v3027
        %v3106 = vpop.f32.mrb[0].mxu0
        %v3107 = vadd.f32 %v2927, %v3106
        %v3108 = vpop.f32.mrb[0].mxu0
        %v3109 = vadd.f32 %v2929, %v3108
        %v3110 = vpop.f32.mrb[0].mxu0
        %v3111 = vadd.f32 %v2931, %v3110
        %v3112 = vpop.f32.mrb[0].mxu0
        %v3113 = vadd.f32 %v2933, %v3112
        %3114 = vdwg.mxu0
        %3115 = vmatprep.subr.bf16.mxu0 %v2118
        %3116 = vmatpush1.bf16.msra.mxu0 %v2115
        %3117 = vmatprep.subr.bf16.mxu0 0
        %3118 = vmatpush1.bf16.msra.mxu0 0
        %3119 = vmatprep.subr.bf16.mxu0 0
        %3120 = vmatpush1.bf16.msra.mxu0 0
        %3121 = vmatprep.subr.bf16.mxu0 0
        %3122 = vmatpush1.bf16.msra.mxu0 0
        %3123 = vmatprep.subr.bf16.mxu0 0
        %3124 = vmatpush1.bf16.msra.mxu0 0
        %3125 = vmatprep.subr.bf16.mxu0 0
        %3126 = vmatpush1.bf16.msra.mxu0 0
        %3127 = vmatprep.subr.bf16.mxu0 0
        %3128 = vmatpush1.bf16.msra.mxu0 0
        %3129 = vmatprep.subr.bf16.mxu0 0
        %3130 = vmatpush1.bf16.msra.mxu0 0
        %3131 = vmatprep.subr.bf16.mxu0 0
        %3132 = vmatpush1.bf16.msra.mxu0 0
        %3133 = vmatprep.subr.bf16.mxu0 0
        %3134 = vmatpush1.bf16.msra.mxu0 0
        %3135 = vmatprep.subr.bf16.mxu0 0
        %3136 = vmatpush1.bf16.msra.mxu0 0
        %3137 = vmatprep.subr.bf16.mxu0 0
        %3138 = vmatpush1.bf16.msra.mxu0 0
        %3139 = vmatprep.subr.bf16.mxu0 0
        %3140 = vmatpush1.bf16.msra.mxu0 0
        %3141 = vmatprep.subr.bf16.mxu0 0
        %3142 = vmatpush1.bf16.msra.mxu0 0
        %3143 = vmatprep.subr.bf16.mxu0 0
        %3144 = vmatpush1.bf16.msra.mxu0 0
        %3145 = vmatprep.subr.bf16.mxu0 0
        %3146 = vmatpush1.bf16.msra.mxu0 0
        %3147 = vmatprep.mubr.bf16.mxu0 0
        %3148 = vmatmul.mubr.bf16.gmra.mrb[0].mxu0 %v3027
        %v3149 = vpop.f32.mrb[0].mxu0
        %v3150 = vadd.f32 %v2970, %v3149
        %v3151 = vpop.f32.mrb[0].mxu0
        %v3152 = vadd.f32 %v2972, %v3151
        %v3153 = vpop.f32.mrb[0].mxu0
        %v3154 = vadd.f32 %v2974, %v3153
        %v3155 = vpop.f32.mrb[0].mxu0
        %v3156 = vadd.f32 %v2976, %v3155
        %3157 = vdwg.mxu0
        %3158 = vmatprep.subr.bf16.mxu0 %v2124
        %3159 = vmatpush1.bf16.msra.mxu0 %v2121
        %3160 = vmatprep.subr.bf16.mxu0 0
        %3161 = vmatpush1.bf16.msra.mxu0 0
        %3162 = vmatprep.subr.bf16.mxu0 0
        %3163 = vmatpush1.bf16.msra.mxu0 0
        %3164 = vmatprep.subr.bf16.mxu0 0
        %3165 = vmatpush1.bf16.msra.mxu0 0
        %3166 = vmatprep.subr.bf16.mxu0 0
        %3167 = vmatpush1.bf16.msra.mxu0 0
        %3168 = vmatprep.subr.bf16.mxu0 0
        %3169 = vmatpush1.bf16.msra.mxu0 0
        %3170 = vmatprep.subr.bf16.mxu0 0
        %3171 = vmatpush1.bf16.msra.mxu0 0
        %3172 = vmatprep.subr.bf16.mxu0 0
        %3173 = vmatpush1.bf16.msra.mxu0 0
        %3174 = vmatprep.subr.bf16.mxu0 0
        %3175 = vmatpush1.bf16.msra.mxu0 0
        %3176 = vmatprep.subr.bf16.mxu0 0
        %3177 = vmatpush1.bf16.msra.mxu0 0
        %3178 = vmatprep.subr.bf16.mxu0 0
        %3179 = vmatpush1.bf16.msra.mxu0 0
        %3180 = vmatprep.subr.bf16.mxu0 0
        %3181 = vmatpush1.bf16.msra.mxu0 0
        %3182 = vmatprep.subr.bf16.mxu0 0
        %3183 = vmatpush1.bf16.msra.mxu0 0
        %3184 = vmatprep.subr.bf16.mxu0 0
        %3185 = vmatpush1.bf16.msra.mxu0 0
        %3186 = vmatprep.subr.bf16.mxu0 0
        %3187 = vmatpush1.bf16.msra.mxu0 0
        %3188 = vmatprep.subr.bf16.mxu0 0
        %3189 = vmatpush1.bf16.msra.mxu0 0
        %3190 = vmatprep.mubr.bf16.mxu0 0
        %3191 = vmatmul.mubr.bf16.gmra.mrb[0].mxu0 %v3027
        %v3192 = vpop.f32.mrb[0].mxu0
        %v3193 = vadd.f32 %v3013, %v3192
        %v3194 = vpop.f32.mrb[0].mxu0
        %v3195 = vadd.f32 %v3015, %v3194
        %v3196 = vpop.f32.mrb[0].mxu0
        %v3197 = vadd.f32 %v3017, %v3196
        %v3198 = vpop.f32.mrb[0].mxu0
        %v3199 = vadd.f32 %v3019, %v3198
        %3200 = vdwg.mxu0
        %s3201 = scalar_lea.vmem %s9, 16
        %v3202 = vld [vmem:[%s3201] sm:$0xff]
        %v3203 = vld [vmem:[%s3201 + $0x8] sm:$0xff]
        %3205 = vset.pattern.permute.xlu0 0
        %3206 = vperm.xlu0 %3205, %v3202
        %v3207 = vpop.permute.xlu0 %3206
        %3210 = vset.pattern.permute.xlu0 0
        %3211 = vperm.xlu0 %3210, %v3203
        %v3212 = vpop.permute.xlu0 %3211
        %v3214 = vadd.f32 %v3064, %v3207
        %v3215 = vadd.f32 %v3066, %v3207
        %v3216 = vadd.f32 %v3107, %v3207
        %v3217 = vadd.f32 %v3109, %v3207
        %v3218 = vadd.f32 %v3150, %v3207
        %v3219 = vadd.f32 %v3152, %v3207
        %v3220 = vadd.f32 %v3193, %v3207
        %v3221 = vadd.f32 %v3195, %v3207
        %v3222 = vadd.f32 %v3068, %v3212
        %v3223 = vadd.f32 %v3070, %v3212
        %v3224 = vadd.f32 %v3111, %v3212
        %v3225 = vadd.f32 %v3113, %v3212
        %v3226 = vadd.f32 %v3154, %v3212
        %v3227 = vadd.f32 %v3156, %v3212
        %v3228 = vadd.f32 %v3197, %v3212
        %v3229 = vadd.f32 %v3199, %v3212
        %v3230 = vmul.f32 %v3214, %v3214
        %v3231 = vmul.f32 %v3215, %v3215
        %v3232 = vmul.f32 %v3216, %v3216
        %v3233 = vmul.f32 %v3217, %v3217
        %v3234 = vmul.f32 %v3218, %v3218
        %v3235 = vmul.f32 %v3219, %v3219
        %v3236 = vmul.f32 %v3220, %v3220
        %v3237 = vmul.f32 %v3221, %v3221
        %v3238 = vrot.slane %v3230, 4
        %v3239 = vadd.f32 %v3230, %v3238
        %v3240 = vrot.slane %v3239, 2
        %v3241 = vadd.f32 %v3239, %v3240
        %v3242 = vrot.slane %v3241, 1
        %v3243 = vadd.f32 %v3241, %v3242
        %v3244 = vrot.slane %v3231, 4
        %v3245 = vadd.f32 %v3231, %v3244
        %v3246 = vrot.slane %v3245, 2
        %v3247 = vadd.f32 %v3245, %v3246
        %v3248 = vrot.slane %v3247, 1
        %v3249 = vadd.f32 %v3247, %v3248
        %v3250 = vrot.slane %v3232, 4
        %v3251 = vadd.f32 %v3232, %v3250
        %v3252 = vrot.slane %v3251, 2
        %v3253 = vadd.f32 %v3251, %v3252
        %v3254 = vrot.slane %v3253, 1
        %v3255 = vadd.f32 %v3253, %v3254
        %v3256 = vrot.slane %v3233, 4
        %v3257 = vadd.f32 %v3233, %v3256
        %v3258 = vrot.slane %v3257, 2
        %v3259 = vadd.f32 %v3257, %v3258
        %v3260 = vrot.slane %v3259, 1
        %v3261 = vadd.f32 %v3259, %v3260
        %v3262 = vrot.slane %v3234, 4
        %v3263 = vadd.f32 %v3234, %v3262
        %v3264 = vrot.slane %v3263, 2
        %v3265 = vadd.f32 %v3263, %v3264
        %v3266 = vrot.slane %v3265, 1
        %v3267 = vadd.f32 %v3265, %v3266
        %v3268 = vrot.slane %v3235, 4
        %v3269 = vadd.f32 %v3235, %v3268
        %v3270 = vrot.slane %v3269, 2
        %v3271 = vadd.f32 %v3269, %v3270
        %v3272 = vrot.slane %v3271, 1
        %v3273 = vadd.f32 %v3271, %v3272
        %v3274 = vrot.slane %v3236, 4
        %v3275 = vadd.f32 %v3236, %v3274
        %v3276 = vrot.slane %v3275, 2
        %v3277 = vadd.f32 %v3275, %v3276
        %v3278 = vrot.slane %v3277, 1
        %v3279 = vadd.f32 %v3277, %v3278
        %v3280 = vrot.slane %v3237, 4
        %v3281 = vadd.f32 %v3237, %v3280
        %v3282 = vrot.slane %v3281, 2
        %v3283 = vadd.f32 %v3281, %v3282
        %v3284 = vrot.slane %v3283, 1
        %v3285 = vadd.f32 %v3283, %v3284
        %v3286 = vmul.f32 %v3222, %v3222
        %v3287 = vmul.f32 %v3223, %v3223
        %v3288 = vmul.f32 %v3224, %v3224
        %v3289 = vmul.f32 %v3225, %v3225
        %v3290 = vmul.f32 %v3226, %v3226
        %v3291 = vmul.f32 %v3227, %v3227
        %v3292 = vmul.f32 %v3228, %v3228
        %v3293 = vmul.f32 %v3229, %v3229
        %v3294 = vrot.slane %v3286, 4
        %v3295 = vadd.f32 %v3286, %v3294
        %v3296 = vrot.slane %v3295, 2
        %v3297 = vadd.f32 %v3295, %v3296
        %v3298 = vrot.slane %v3297, 1
        %v3299 = vadd.f32 %v3297, %v3298
        %v3300 = vrot.slane %v3287, 4
        %v3301 = vadd.f32 %v3287, %v3300
        %v3302 = vrot.slane %v3301, 2
        %v3303 = vadd.f32 %v3301, %v3302
        %v3304 = vrot.slane %v3303, 1
        %v3305 = vadd.f32 %v3303, %v3304
        %v3306 = vrot.slane %v3288, 4
        %v3307 = vadd.f32 %v3288, %v3306
        %v3308 = vrot.slane %v3307, 2
        %v3309 = vadd.f32 %v3307, %v3308
        %v3310 = vrot.slane %v3309, 1
        %v3311 = vadd.f32 %v3309, %v3310
        %v3312 = vrot.slane %v3289, 4
        %v3313 = vadd.f32 %v3289, %v3312
        %v3314 = vrot.slane %v3313, 2
        %v3315 = vadd.f32 %v3313, %v3314
        %v3316 = vrot.slane %v3315, 1
        %v3317 = vadd.f32 %v3315, %v3316
        %v3318 = vrot.slane %v3290, 4
        %v3319 = vadd.f32 %v3290, %v3318
        %v3320 = vrot.slane %v3319, 2
        %v3321 = vadd.f32 %v3319, %v3320
        %v3322 = vrot.slane %v3321, 1
        %v3323 = vadd.f32 %v3321, %v3322
        %v3324 = vrot.slane %v3291, 4
        %v3325 = vadd.f32 %v3291, %v3324
        %v3326 = vrot.slane %v3325, 2
        %v3327 = vadd.f32 %v3325, %v3326
        %v3328 = vrot.slane %v3327, 1
        %v3329 = vadd.f32 %v3327, %v3328
        %v3330 = vrot.slane %v3292, 4
        %v3331 = vadd.f32 %v3292, %v3330
        %v3332 = vrot.slane %v3331, 2
        %v3333 = vadd.f32 %v3331, %v3332
        %v3334 = vrot.slane %v3333, 1
        %v3335 = vadd.f32 %v3333, %v3334
        %v3336 = vrot.slane %v3293, 4
        %v3337 = vadd.f32 %v3293, %v3336
        %v3338 = vrot.slane %v3337, 2
        %v3339 = vadd.f32 %v3337, %v3338
        %v3340 = vrot.slane %v3339, 1
        %v3341 = vadd.f32 %v3339, %v3340
        %v3342 = vadd.f32 %v3243, %v3299
        %v3343 = vadd.f32 %v3249, %v3305
        %v3344 = vadd.f32 %v3255, %v3311
        %v3345 = vadd.f32 %v3261, %v3317
        %v3346 = vadd.f32 %v3267, %v3323
        %v3347 = vadd.f32 %v3273, %v3329
        %v3348 = vadd.f32 %v3279, %v3335
        %v3349 = vadd.f32 %v3285, %v3341
        %v3350 = vrot.slane %v2795, 4
        %v3351 = vadd.f32 %v2795, %v3350
        %v3352 = vrot.slane %v3351, 2
        %v3353 = vadd.f32 %v3351, %v3352
        %v3354 = vrot.slane %v3353, 1
        %v3355 = vadd.f32 %v3353, %v3354
        %v3356 = vrot.slane %v2796, 4
        %v3357 = vadd.f32 %v2796, %v3356
        %v3358 = vrot.slane %v3357, 2
        %v3359 = vadd.f32 %v3357, %v3358
        %v3360 = vrot.slane %v3359, 1
        %v3361 = vadd.f32 %v3359, %v3360
        %v3362 = vrot.slane %v2797, 4
        %v3363 = vadd.f32 %v2797, %v3362
        %v3364 = vrot.slane %v3363, 2
        %v3365 = vadd.f32 %v3363, %v3364
        %v3366 = vrot.slane %v3365, 1
        %v3367 = vadd.f32 %v3365, %v3366
        %v3368 = vrot.slane %v2798, 4
        %v3369 = vadd.f32 %v2798, %v3368
        %v3370 = vrot.slane %v3369, 2
        %v3371 = vadd.f32 %v3369, %v3370
        %v3372 = vrot.slane %v3371, 1
        %v3373 = vadd.f32 %v3371, %v3372
        %v3374 = vrot.slane %v2799, 4
        %v3375 = vadd.f32 %v2799, %v3374
        %v3376 = vrot.slane %v3375, 2
        %v3377 = vadd.f32 %v3375, %v3376
        %v3378 = vrot.slane %v3377, 1
        %v3379 = vadd.f32 %v3377, %v3378
        %v3380 = vrot.slane %v2800, 4
        %v3381 = vadd.f32 %v2800, %v3380
        %v3382 = vrot.slane %v3381, 2
        %v3383 = vadd.f32 %v3381, %v3382
        %v3384 = vrot.slane %v3383, 1
        %v3385 = vadd.f32 %v3383, %v3384
        %v3386 = vrot.slane %v2801, 4
        %v3387 = vadd.f32 %v2801, %v3386
        %v3388 = vrot.slane %v3387, 2
        %v3389 = vadd.f32 %v3387, %v3388
        %v3390 = vrot.slane %v3389, 1
        %v3391 = vadd.f32 %v3389, %v3390
        %v3392 = vrot.slane %v2802, 4
        %v3393 = vadd.f32 %v2802, %v3392
        %v3394 = vrot.slane %v3393, 2
        %v3395 = vadd.f32 %v3393, %v3394
        %v3396 = vrot.slane %v3395, 1
        %v3397 = vadd.f32 %v3395, %v3396
        %v3398 = vmul.f32 %v3342, 0.5
        %v3399 = vmul.f32 %v3343, 0.5
        %v3400 = vmul.f32 %v3344, 0.5
        %v3401 = vmul.f32 %v3345, 0.5
        %v3402 = vmul.f32 %v3346, 0.5
        %v3403 = vmul.f32 %v3347, 0.5
        %v3404 = vmul.f32 %v3348, 0.5
        %v3405 = vmul.f32 %v3349, 0.5
        %v3406 = vsub.f32 -14.6954565, %v3398
        %v3407 = vsub.f32 -14.6954565, %v3399
        %v3408 = vsub.f32 -14.6954565, %v3400
        %v3409 = vsub.f32 -14.6954565, %v3401
        %v3410 = vsub.f32 -14.6954565, %v3402
        %v3411 = vsub.f32 -14.6954565, %v3403
        %v3412 = vsub.f32 -14.6954565, %v3404
        %v3413 = vsub.f32 -14.6954565, %v3405
        %v3414 = vadd.f32 %v3406, %v3355
        %v3415 = vadd.f32 %v3407, %v3361
        %v3416 = vadd.f32 %v3408, %v3367
        %v3417 = vadd.f32 %v3409, %v3373
        %v3418 = vadd.f32 %v3410, %v3379
        %v3419 = vadd.f32 %v3411, %v3385
        %v3420 = vadd.f32 %v3412, %v3391
        %v3421 = vadd.f32 %v3413, %v3397
        %v3422 = vmul.f32 %v3414, 0.0625
        %v3423 = vmul.f32 %v3415, 0.0625
        %v3424 = vmul.f32 %v3416, 0.0625
        %v3425 = vmul.f32 %v3417, 0.0625
        %v3426 = vmul.f32 %v3418, 0.0625
        %v3427 = vmul.f32 %v3419, 0.0625
        %v3428 = vmul.f32 %v3420, 0.0625
        %v3429 = vmul.f32 %v3421, 0.0625
        %v3438 = vcombine.low %v3422, %v3423
        %v3439 = vcombine.low %v3424, %v3425
        %v3440 = vcombine.low %v3426, %v3427
        %v3441 = vcombine.low %v3428, %v3429
        %v3443 = vunpack.c.l.s4 1966171168
        %v3444 = vunpack.c.0.s8 %v3443
        %v3445 = vlaneseq
        %v3446 = vshrl.u32 %v3445, 7
        %v3447 = vsub.s32 %v3444, %v3446
        %v3448 = vrot.slane %v3438, %v3447
        %v3450 = vunpack.c.l.s4 1966171168
        %v3451 = vunpack.c.0.s8 %v3450
        %v3452 = vlaneseq
        %v3453 = vshrl.u32 %v3452, 7
        %v3454 = vsub.s32 %v3451, %v3453
        %v3455 = vrot.slane %v3439, %v3454
        %v3457 = vunpack.c.l.s4 1966171168
        %v3458 = vunpack.c.0.s8 %v3457
        %v3459 = vlaneseq
        %v3460 = vshrl.u32 %v3459, 7
        %v3461 = vsub.s32 %v3458, %v3460
        %v3462 = vrot.slane %v3440, %v3461
        %v3464 = vunpack.c.l.s4 1966171168
        %v3465 = vunpack.c.0.s8 %v3464
        %v3466 = vlaneseq
        %v3467 = vshrl.u32 %v3466, 7
        %v3468 = vsub.s32 %v3465, %v3467
        %v3469 = vrot.slane %v3441, %v3468
        %v3470 = vcombine.low %v3448, %v3455
        %v3471 = vcombine.low %v3462, %v3469
        %v3473 = vunpack.c.l.s4 1966171168
        %v3474 = vunpack.c.0.s8 %v3473
        %v3475 = vlaneseq
        %v3476 = vshrl.u32 %v3475, 7
        %v3477 = vsub.s32 %v3474, %v3476
        %v3478 = vrot.slane %v3470, %v3477
        %v3480 = vunpack.c.l.s4 1966171168
        %v3481 = vunpack.c.0.s8 %v3480
        %v3482 = vlaneseq
        %v3483 = vshrl.u32 %v3482, 7
        %v3484 = vsub.s32 %v3481, %v3483
        %v3485 = vrot.slane %v3471, %v3484
        %v3486 = vcombine.low %v3478, %v3485
        %3488 = vst [vmem:[%s391] sm:$0xff] %v3486
        %s3489 = sand.u32 %s247, 1
        %s3490 = scalar_lea.sflag [#allocation4], %s3489
        %s3491 = sand.u32 %s247, 1
        %s3492 = smul.addr %s3491, 8
        %s3493 = scalar_lea.vmem [#allocation3], %s3492
        // Predicated region
        $region84: #{tpu_custom_call.1} parent=78 // pred_check
          %p3494 = pneg %p257
        $region85: #{tpu_custom_call.1} parent=78 // pred_check_branch
          %3496 = sbr.rel (%p3494) target = $region87
        $region86: #{tpu_custom_call.1} parent=78 // pred_region
          %s3497 = smul.u32 8, %s24
          %s3499 = ssub.s32 128, 128
          %3500 = vsyncadd %s3490, %s3499
          %s3501 = smul.addr %s3497, 16
          %s3502 = scalar_lea.hbm %s10, %s3501
          %s3504 = sshll.u32 %s3493, 4
          %s3505 = int_to_ptr.vmem [resolvable:$true] %s3504
          %3507 = dma.vmem_to_hbm [thread:$0]  %s3505, 128, %s3502, %s3490
        $region87: #{tpu_custom_call.1} parent=78 // pred_fallthru
          _
      $region79: #{tpu_custom_call.1} parent=5 // pred_fallthru
        _
      %p3508 = scmp.le.s32.totalorder 2, %s19
      // Predicated region
      $region88: #{tpu_custom_call.1} parent=5 // pred_check
        %p3509 = pneg %p3508
      $region89: #{tpu_custom_call.1} parent=5 // pred_check_branch
        %3511 = sbr.rel (%p3509) target = $region91
      $region90: #{tpu_custom_call.1} parent=5 // pred_region
        %s3512 = ssub.s32 %s19, 2
        // Predicated region
        $region92: #{tpu_custom_call.1} parent=90 // pred_check
          %p3513 = pneg %p263
        $region93: #{tpu_custom_call.1} parent=90 // pred_check_branch
          %3515 = sbr.rel (%p3513) target = $region95
        $region94: #{tpu_custom_call.1} parent=90 // pred_region
          %s3516 = sand.u32 %s248, 1
          %s3517 = scalar_lea.sflag [#allocation4], %s3516
          %s3518 = sand.u32 %s248, 1
          %s3519 = smul.addr %s3518, 8
          %s3520 = scalar_lea.vmem [#allocation3], %s3519
          %3521 = dma.done %s3517, 128
        $region95: #{tpu_custom_call.1} parent=90 // pred_fallthru
          _
      $region91: #{tpu_custom_call.1} parent=5 // pred_fallthru
        _
    $region6: #{tpu_custom_call.1} parent=1 // loop_footer
      %s23 = sadd.s32 1, %s19
    $region7: #{tpu_custom_call.1} parent=1 // loop_footer_branch
      %18 = sbr.rel target = $region3
    $region8: #{tpu_custom_call.1} parent=1 // loop_exit
      _
    %3522 = vsyncpa [#allocation4], 1
    %s3523 = scalar_lea.sflag [#allocation4], 1
    %3524 = vsyncpa %s3523, 1

</llo_original>
